<compile_context>
chip_gen: v7x
topology: tpu7x:2x2x1
jax: 0.10.0
libtpu: 0.0.40
codegen_flags: <defaults>
</compile_context>

<pallas_src>
import math

import jax
import jax.numpy as jnp
from jax.experimental import pallas as pl
from jax.experimental.pallas import tpu as pltpu


# ---------------------------------------------------------------------------
# Fused kernel: all RNN layers (both directions) + fc + sigmoid in one call
# ---------------------------------------------------------------------------
def make_fused_rnn_kernel(*, T, B, D_in, H, num_dir, L, D_out):
    NH = num_dir * H
    f32 = jnp.float32

    def kernel(*refs):
        # ---- unpack refs ---------------------------------------------------
        x_ref = refs[0]
        layer_refs = []
        i = 1
        for _ in range(L):
            layer_refs.append((refs[i], refs[i + 1], refs[i + 2]))
            i += 3
        w_fc_ref, b_fc_ref, out_ref = refs[i], refs[i + 1], refs[i + 2]

        # Layer input is a list of per-direction "streams": each stream is a
        # list of T (B, width) activations (kept as values, never re-DMAed).
        # Layer 0 has the single x stream.
        streams = [[x_ref[t] for t in range(T)]]          # T x (B, D_in)

        for (w_ih_ref, w_hh_ref, b_ref) in layer_refs:
            bias = b_ref[...]                              # (1, NH), hoisted once

            # Per-stream row-slices of the pre-transposed, direction-concatenated
            # W_ih^T (in_dim, NH); hoisted out of the time loop.
            w_parts = []
            off = 0
            for stream in streams:
                w = stream[0].shape[-1]
                w_parts.append(w_ih_ref[off:off + w, :])
                off += w

            # ---- hoisted input projection (off the serial chain) ------------
            pre = []
            for t in range(T):
                z = bias
                for stream, wp in zip(streams, w_parts):
                    z = z + jnp.dot(stream[t], wp, preferred_element_type=f32)
                pre.append(z)                              # (B, NH)

            # ---- serial recurrences (fully unrolled; the fwd and bwd chains
            #      are independent, so their MXU/EUP ops interleave) ----------
            w_hh_f = w_hh_ref[0]                           # (H, H), pre-transposed
            acts_f = [None] * T
            h = jnp.zeros((B, H), f32)                     # h0 = 0 (PyTorch default)
            for s in range(T):
                h = jnp.tanh(pre[s][:, 0:H] +
                             jnp.dot(h, w_hh_f, preferred_element_type=f32))
                acts_f[s] = h
            new_streams = [acts_f]

            if num_dir == 2:
                w_hh_b = w_hh_ref[1]
                acts_b = [None] * T
                h = jnp.zeros((B, H), f32)
                for s in range(T):
                    t = T - 1 - s
                    h = jnp.tanh(pre[t][:, H:NH] +
                                 jnp.dot(h, w_hh_b, preferred_element_type=f32))
                    acts_b[t] = h
                new_streams.append(acts_b)

            streams = new_streams

        # ---- fc + sigmoid epilogue (fused; no separate kernel launch) -------
        b_fc = b_fc_ref[...]                               # (1, D_out)
        fc_parts = []
        off = 0
        for stream in streams:
            w = stream[0].shape[-1]
            fc_parts.append(w_fc_ref[off:off + w, :])      # (w, D_out)
            off += w

        for t in range(T):
            y = b_fc
            for stream, wp in zip(streams, fc_parts):
                y = y + jnp.dot(stream[t], wp, preferred_element_type=f32)
            out_ref[t] = jax.nn.sigmoid(y)

    return kernel


# ---------------------------------------------------------------------------
# Wrapper: one-time XLA layout prep + single pallas_call
# ---------------------------------------------------------------------------
def rnn_forward(x, rnn_layers, w_fc, b_fc):
    """x: (B, T, D_in) batch_first. rnn_layers: list over layers of per-direction
    (w_ih (H,in), w_hh (H,H), b (H,)) tuples in PyTorch layout."""
    B, T, D_in = x.shape
    L = len(rnn_layers)
    num_dir = len(rnn_layers[0])
    H = rnn_layers[0][0][1].shape[0]
    NH = num_dir * H
    D_out = w_fc.shape[0]

    # One-time XLA layout prep (outside the kernel): time-major x; weights
    # transposed so every in-kernel dot contracts on the lane axis; both
    # directions' W_ih / bias concatenated along the lane axis.
    x_tbd = jnp.transpose(x, (1, 0, 2))                    # (T, B, D_in)

    inputs = [x_tbd]
    for dirs in rnn_layers:
        w_ih_t = jnp.concatenate([jnp.transpose(w_ih) for (w_ih, _, _) in dirs],
                                 axis=-1)                  # (in_dim, NH)
        w_hh_t = jnp.stack([jnp.transpose(w_hh) for (_, w_hh, _) in dirs],
                           axis=0)                         # (num_dir, H, H)
        b_cat = jnp.concatenate([b for (_, _, b) in dirs], axis=-1).reshape(1, NH)
        inputs += [w_ih_t, w_hh_t, b_cat]
    inputs += [jnp.transpose(w_fc), b_fc.reshape(1, D_out)]

    kernel = make_fused_rnn_kernel(T=T, B=B, D_in=D_in, H=H,
                                   num_dir=num_dir, L=L, D_out=D_out)

    vmem = pltpu.MemorySpace.VMEM
    out_tbd = pl.pallas_call(
        kernel,
        out_shape=jax.ShapeDtypeStruct((T, B, D_out), jnp.float32),
        in_specs=[pl.BlockSpec(memory_space=vmem) for _ in inputs],
        out_specs=pl.BlockSpec(memory_space=vmem),
    )(*inputs)

    return jnp.transpose(out_tbd, (1, 0, 2))               # back to (B, T, D_out)


# ---------------------------------------------------------------------------
# Parameter init (mirrors the module's init_weights)
# ---------------------------------------------------------------------------
def init_params(key, config):
    D_in = config['input_dim']
    H = config['hidden_dim']
    L = config['num_layers']
    num_dir = 2 if config['bidirectional'] else 1
    D_out = config['output_dim']

    layers = []
    for l in range(L):
        in_dim = D_in if l == 0 else H * num_dir
        dirs = []
        for _ in range(num_dir):
            key, k1, k2 = jax.random.split(key, 3)
            a_ih = math.sqrt(6.0 / (in_dim + H))           # xavier_uniform_
            a_hh = math.sqrt(6.0 / (H + H))
            w_ih = jax.random.uniform(k1, (H, in_dim), minval=-a_ih, maxval=a_ih,
                                      dtype=jnp.float32)
            w_hh = jax.random.uniform(k2, (H, H), minval=-a_hh, maxval=a_hh,
                                      dtype=jnp.float32)
            b = jnp.zeros((H,), jnp.float32)               # b_ih + b_hh, both zero
            dirs.append((w_ih, w_hh, b))
        layers.append(dirs)

    key, kf = jax.random.split(key)
    fc_in = H * num_dir
    w_fc = 0.01 * jax.random.normal(kf, (D_out, fc_in), dtype=jnp.float32)
    b_fc = jnp.zeros((D_out,), jnp.float32)
    return layers, w_fc, b_fc


# ---------------------------------------------------------------------------
# Pure-JAX reference (lax.scan recurrence) for correctness checking
# ---------------------------------------------------------------------------
def rnn_ref(x, rnn_layers, w_fc, b_fc):
    B, T, _ = x.shape
    hp = jax.lax.Precision.HIGHEST
    h_seq = x
    for dirs in rnn_layers:
        outs = []
        for d, (w_ih, w_hh, b) in enumerate(dirs):
            seq = h_seq[:, ::-1, :] if d == 1 else h_seq
            H = w_hh.shape[0]

            def step(hprev, xt, w_ih=w_ih, w_hh=w_hh, b=b):
                hnew = jnp.tanh(jnp.dot(xt, w_ih.T, precision=hp)
                                + jnp.dot(hprev, w_hh.T, precision=hp) + b)
                return hnew, hnew

            _, ys = jax.lax.scan(step, jnp.zeros((B, H), jnp.float32),
                                 jnp.transpose(seq, (1, 0, 2)))
            ys = jnp.transpose(ys, (1, 0, 2))
            if d == 1:
                ys = ys[:, ::-1, :]
            outs.append(ys)
        h_seq = outs[0] if len(outs) == 1 else jnp.concatenate(outs, axis=-1)
    y = jnp.dot(h_seq, w_fc.T, precision=hp) + b_fc
    return jax.nn.sigmoid(y)


if __name__ == "__main__":
    config = {
        'task': 'classification',
        'input_dim': 32,
        'hidden_dim': 32,
        'num_layers': 2,
        'dropout': 0.0,
        'bidirectional': True,
        'output_dim': 4,
        'output_activation': 'sigmoid',
    }
    batch, seq = 4, 8

    key = jax.random.PRNGKey(0)
    key, kx = jax.random.split(key)
    x = jax.random.normal(kx, (batch, seq, config['input_dim']), dtype=jnp.float32)

    rnn_layers, w_fc, b_fc = init_params(key, config)

    y = rnn_forward(x, rnn_layers, w_fc, b_fc)
    jax.block_until_ready(y)

    y_ref = rnn_ref(x, rnn_layers, w_fc, b_fc)
    assert y.shape == (batch, seq, config['output_dim']), y.shape
    assert jnp.allclose(y, y_ref, atol=1e-4, rtol=1e-4), (
        float(jnp.max(jnp.abs(y - y_ref))))

    print("KERNEL_OK")
</pallas_src>

<mosaic_0001>
module attributes {stable_mosaic.version = 11 : i64} {
  func.func @kernel(%arg0: memref<8x4x32xf32, #tpu.memory_space<vmem>>, %arg1: memref<32x64xf32, #tpu.memory_space<vmem>>, %arg2: memref<2x32x32xf32, #tpu.memory_space<vmem>>, %arg3: memref<1x64xf32, #tpu.memory_space<vmem>>, %arg4: memref<64x64xf32, #tpu.memory_space<vmem>>, %arg5: memref<2x32x32xf32, #tpu.memory_space<vmem>>, %arg6: memref<1x64xf32, #tpu.memory_space<vmem>>, %arg7: memref<64x4xf32, #tpu.memory_space<vmem>>, %arg8: memref<1x4xf32, #tpu.memory_space<vmem>>, %arg9: memref<8x4x4xf32, #tpu.memory_space<vmem>>) attributes {dimension_semantics = [], scalar_prefetch = 0 : i64, scratch_operands = 0 : i64, tpu.core_type = #tpu.core_type<tc>} {
    %c0 = arith.constant 0 : index
    %c0_0 = arith.constant 0 : index
    %c0_1 = arith.constant 0 : index
    %0 = vector.load %arg0[%c0, %c0_0, %c0_1] : memref<8x4x32xf32, #tpu.memory_space<vmem>>, vector<1x4x32xf32>
    %1 = vector.shape_cast %0 : vector<1x4x32xf32> to vector<4x32xf32>
    %c1 = arith.constant 1 : index
    %c0_2 = arith.constant 0 : index
    %c0_3 = arith.constant 0 : index
    %2 = vector.load %arg0[%c1, %c0_2, %c0_3] : memref<8x4x32xf32, #tpu.memory_space<vmem>>, vector<1x4x32xf32>
    %3 = vector.shape_cast %2 : vector<1x4x32xf32> to vector<4x32xf32>
    %c2 = arith.constant 2 : index
    %c0_4 = arith.constant 0 : index
    %c0_5 = arith.constant 0 : index
    %4 = vector.load %arg0[%c2, %c0_4, %c0_5] : memref<8x4x32xf32, #tpu.memory_space<vmem>>, vector<1x4x32xf32>
    %5 = vector.shape_cast %4 : vector<1x4x32xf32> to vector<4x32xf32>
    %c3 = arith.constant 3 : index
    %c0_6 = arith.constant 0 : index
    %c0_7 = arith.constant 0 : index
    %6 = vector.load %arg0[%c3, %c0_6, %c0_7] : memref<8x4x32xf32, #tpu.memory_space<vmem>>, vector<1x4x32xf32>
    %7 = vector.shape_cast %6 : vector<1x4x32xf32> to vector<4x32xf32>
    %c4 = arith.constant 4 : index
    %c0_8 = arith.constant 0 : index
    %c0_9 = arith.constant 0 : index
    %8 = vector.load %arg0[%c4, %c0_8, %c0_9] : memref<8x4x32xf32, #tpu.memory_space<vmem>>, vector<1x4x32xf32>
    %9 = vector.shape_cast %8 : vector<1x4x32xf32> to vector<4x32xf32>
    %c5 = arith.constant 5 : index
    %c0_10 = arith.constant 0 : index
    %c0_11 = arith.constant 0 : index
    %10 = vector.load %arg0[%c5, %c0_10, %c0_11] : memref<8x4x32xf32, #tpu.memory_space<vmem>>, vector<1x4x32xf32>
    %11 = vector.shape_cast %10 : vector<1x4x32xf32> to vector<4x32xf32>
    %c6 = arith.constant 6 : index
    %c0_12 = arith.constant 0 : index
    %c0_13 = arith.constant 0 : index
    %12 = vector.load %arg0[%c6, %c0_12, %c0_13] : memref<8x4x32xf32, #tpu.memory_space<vmem>>, vector<1x4x32xf32>
    %13 = vector.shape_cast %12 : vector<1x4x32xf32> to vector<4x32xf32>
    %c7 = arith.constant 7 : index
    %c0_14 = arith.constant 0 : index
    %c0_15 = arith.constant 0 : index
    %14 = vector.load %arg0[%c7, %c0_14, %c0_15] : memref<8x4x32xf32, #tpu.memory_space<vmem>>, vector<1x4x32xf32>
    %15 = vector.shape_cast %14 : vector<1x4x32xf32> to vector<4x32xf32>
    %c0_16 = arith.constant 0 : index
    %c0_17 = arith.constant 0 : index
    %16 = vector.load %arg3[%c0_16, %c0_17] : memref<1x64xf32, #tpu.memory_space<vmem>>, vector<1x64xf32>
    %c0_18 = arith.constant 0 : index
    %c0_19 = arith.constant 0 : index
    %17 = vector.load %arg1[%c0_18, %c0_19] : memref<32x64xf32, #tpu.memory_space<vmem>>, vector<32x64xf32>
    %cst = arith.constant dense<0.000000e+00> : vector<4x64xf32>
    %18 = tpu.matmul %1, %17, %cst {dimension_numbers = #tpu.dot_dimension_numbers<[1], [0], [0], [1], [0, 0, 1, 1], [], []>} : vector<4x32xf32>, vector<32x64xf32>, vector<4x64xf32> -> vector<4x64xf32>
    %19 = vector.broadcast %16 : vector<1x64xf32> to vector<4x64xf32>
    %20 = arith.addf %19, %18 : vector<4x64xf32>
    %cst_20 = arith.constant dense<0.000000e+00> : vector<4x64xf32>
    %21 = tpu.matmul %3, %17, %cst_20 {dimension_numbers = #tpu.dot_dimension_numbers<[1], [0], [0], [1], [0, 0, 1, 1], [], []>} : vector<4x32xf32>, vector<32x64xf32>, vector<4x64xf32> -> vector<4x64xf32>
    %22 = vector.broadcast %16 : vector<1x64xf32> to vector<4x64xf32>
    %23 = arith.addf %22, %21 : vector<4x64xf32>
    %cst_21 = arith.constant dense<0.000000e+00> : vector<4x64xf32>
    %24 = tpu.matmul %5, %17, %cst_21 {dimension_numbers = #tpu.dot_dimension_numbers<[1], [0], [0], [1], [0, 0, 1, 1], [], []>} : vector<4x32xf32>, vector<32x64xf32>, vector<4x64xf32> -> vector<4x64xf32>
    %25 = vector.broadcast %16 : vector<1x64xf32> to vector<4x64xf32>
    %26 = arith.addf %25, %24 : vector<4x64xf32>
    %cst_22 = arith.constant dense<0.000000e+00> : vector<4x64xf32>
    %27 = tpu.matmul %7, %17, %cst_22 {dimension_numbers = #tpu.dot_dimension_numbers<[1], [0], [0], [1], [0, 0, 1, 1], [], []>} : vector<4x32xf32>, vector<32x64xf32>, vector<4x64xf32> -> vector<4x64xf32>
    %28 = vector.broadcast %16 : vector<1x64xf32> to vector<4x64xf32>
    %29 = arith.addf %28, %27 : vector<4x64xf32>
    %cst_23 = arith.constant dense<0.000000e+00> : vector<4x64xf32>
    %30 = tpu.matmul %9, %17, %cst_23 {dimension_numbers = #tpu.dot_dimension_numbers<[1], [0], [0], [1], [0, 0, 1, 1], [], []>} : vector<4x32xf32>, vector<32x64xf32>, vector<4x64xf32> -> vector<4x64xf32>
    %31 = vector.broadcast %16 : vector<1x64xf32> to vector<4x64xf32>
    %32 = arith.addf %31, %30 : vector<4x64xf32>
    %cst_24 = arith.constant dense<0.000000e+00> : vector<4x64xf32>
    %33 = tpu.matmul %11, %17, %cst_24 {dimension_numbers = #tpu.dot_dimension_numbers<[1], [0], [0], [1], [0, 0, 1, 1], [], []>} : vector<4x32xf32>, vector<32x64xf32>, vector<4x64xf32> -> vector<4x64xf32>
    %34 = vector.broadcast %16 : vector<1x64xf32> to vector<4x64xf32>
    %35 = arith.addf %34, %33 : vector<4x64xf32>
    %cst_25 = arith.constant dense<0.000000e+00> : vector<4x64xf32>
    %36 = tpu.matmul %13, %17, %cst_25 {dimension_numbers = #tpu.dot_dimension_numbers<[1], [0], [0], [1], [0, 0, 1, 1], [], []>} : vector<4x32xf32>, vector<32x64xf32>, vector<4x64xf32> -> vector<4x64xf32>
    %37 = vector.broadcast %16 : vector<1x64xf32> to vector<4x64xf32>
    %38 = arith.addf %37, %36 : vector<4x64xf32>
    %cst_26 = arith.constant dense<0.000000e+00> : vector<4x64xf32>
    %39 = tpu.matmul %15, %17, %cst_26 {dimension_numbers = #tpu.dot_dimension_numbers<[1], [0], [0], [1], [0, 0, 1, 1], [], []>} : vector<4x32xf32>, vector<32x64xf32>, vector<4x64xf32> -> vector<4x64xf32>
    %40 = vector.broadcast %16 : vector<1x64xf32> to vector<4x64xf32>
    %41 = arith.addf %40, %39 : vector<4x64xf32>
    %c0_27 = arith.constant 0 : index
    %c0_28 = arith.constant 0 : index
    %c0_29 = arith.constant 0 : index
    %42 = vector.load %arg2[%c0_27, %c0_28, %c0_29] : memref<2x32x32xf32, #tpu.memory_space<vmem>>, vector<1x32x32xf32>
    %43 = vector.shape_cast %42 : vector<1x32x32xf32> to vector<32x32xf32>
    %cst_30 = arith.constant 0.000000e+00 : f32
    %44 = vector.broadcast %cst_30 : f32 to vector<4x32xf32>
    %45 = vector.extract_strided_slice %20 {offsets = [0, 0], sizes = [4, 32], strides = [1, 1]} : vector<4x64xf32> to vector<4x32xf32>
    %cst_31 = arith.constant dense<0.000000e+00> : vector<4x32xf32>
    %46 = tpu.matmul %44, %43, %cst_31 {dimension_numbers = #tpu.dot_dimension_numbers<[1], [0], [0], [1], [0, 0, 1, 1], [], []>} : vector<4x32xf32>, vector<32x32xf32>, vector<4x32xf32> -> vector<4x32xf32>
    %47 = arith.addf %45, %46 : vector<4x32xf32>
    %48 = math.tanh %47 : vector<4x32xf32>
    %49 = vector.extract_strided_slice %23 {offsets = [0, 0], sizes = [4, 32], strides = [1, 1]} : vector<4x64xf32> to vector<4x32xf32>
    %cst_32 = arith.constant dense<0.000000e+00> : vector<4x32xf32>
    %50 = tpu.matmul %48, %43, %cst_32 {dimension_numbers = #tpu.dot_dimension_numbers<[1], [0], [0], [1], [0, 0, 1, 1], [], []>} : vector<4x32xf32>, vector<32x32xf32>, vector<4x32xf32> -> vector<4x32xf32>
    %51 = arith.addf %49, %50 : vector<4x32xf32>
    %52 = math.tanh %51 : vector<4x32xf32>
    %53 = vector.extract_strided_slice %26 {offsets = [0, 0], sizes = [4, 32], strides = [1, 1]} : vector<4x64xf32> to vector<4x32xf32>
    %cst_33 = arith.constant dense<0.000000e+00> : vector<4x32xf32>
    %54 = tpu.matmul %52, %43, %cst_33 {dimension_numbers = #tpu.dot_dimension_numbers<[1], [0], [0], [1], [0, 0, 1, 1], [], []>} : vector<4x32xf32>, vector<32x32xf32>, vector<4x32xf32> -> vector<4x32xf32>
    %55 = arith.addf %53, %54 : vector<4x32xf32>
    %56 = math.tanh %55 : vector<4x32xf32>
    %57 = vector.extract_strided_slice %29 {offsets = [0, 0], sizes = [4, 32], strides = [1, 1]} : vector<4x64xf32> to vector<4x32xf32>
    %cst_34 = arith.constant dense<0.000000e+00> : vector<4x32xf32>
    %58 = tpu.matmul %56, %43, %cst_34 {dimension_numbers = #tpu.dot_dimension_numbers<[1], [0], [0], [1], [0, 0, 1, 1], [], []>} : vector<4x32xf32>, vector<32x32xf32>, vector<4x32xf32> -> vector<4x32xf32>
    %59 = arith.addf %57, %58 : vector<4x32xf32>
    %60 = math.tanh %59 : vector<4x32xf32>
    %61 = vector.extract_strided_slice %32 {offsets = [0, 0], sizes = [4, 32], strides = [1, 1]} : vector<4x64xf32> to vector<4x32xf32>
    %cst_35 = arith.constant dense<0.000000e+00> : vector<4x32xf32>
    %62 = tpu.matmul %60, %43, %cst_35 {dimension_numbers = #tpu.dot_dimension_numbers<[1], [0], [0], [1], [0, 0, 1, 1], [], []>} : vector<4x32xf32>, vector<32x32xf32>, vector<4x32xf32> -> vector<4x32xf32>
    %63 = arith.addf %61, %62 : vector<4x32xf32>
    %64 = math.tanh %63 : vector<4x32xf32>
    %65 = vector.extract_strided_slice %35 {offsets = [0, 0], sizes = [4, 32], strides = [1, 1]} : vector<4x64xf32> to vector<4x32xf32>
    %cst_36 = arith.constant dense<0.000000e+00> : vector<4x32xf32>
    %66 = tpu.matmul %64, %43, %cst_36 {dimension_numbers = #tpu.dot_dimension_numbers<[1], [0], [0], [1], [0, 0, 1, 1], [], []>} : vector<4x32xf32>, vector<32x32xf32>, vector<4x32xf32> -> vector<4x32xf32>
    %67 = arith.addf %65, %66 : vector<4x32xf32>
    %68 = math.tanh %67 : vector<4x32xf32>
    %69 = vector.extract_strided_slice %38 {offsets = [0, 0], sizes = [4, 32], strides = [1, 1]} : vector<4x64xf32> to vector<4x32xf32>
    %cst_37 = arith.constant dense<0.000000e+00> : vector<4x32xf32>
    %70 = tpu.matmul %68, %43, %cst_37 {dimension_numbers = #tpu.dot_dimension_numbers<[1], [0], [0], [1], [0, 0, 1, 1], [], []>} : vector<4x32xf32>, vector<32x32xf32>, vector<4x32xf32> -> vector<4x32xf32>
    %71 = arith.addf %69, %70 : vector<4x32xf32>
    %72 = math.tanh %71 : vector<4x32xf32>
    %73 = vector.extract_strided_slice %41 {offsets = [0, 0], sizes = [4, 32], strides = [1, 1]} : vector<4x64xf32> to vector<4x32xf32>
    %cst_38 = arith.constant dense<0.000000e+00> : vector<4x32xf32>
    %74 = tpu.matmul %72, %43, %cst_38 {dimension_numbers = #tpu.dot_dimension_numbers<[1], [0], [0], [1], [0, 0, 1, 1], [], []>} : vector<4x32xf32>, vector<32x32xf32>, vector<4x32xf32> -> vector<4x32xf32>
    %75 = arith.addf %73, %74 : vector<4x32xf32>
    %76 = math.tanh %75 : vector<4x32xf32>
    %c1_39 = arith.constant 1 : index
    %c0_40 = arith.constant 0 : index
    %c0_41 = arith.constant 0 : index
    %77 = vector.load %arg2[%c1_39, %c0_40, %c0_41] : memref<2x32x32xf32, #tpu.memory_space<vmem>>, vector<1x32x32xf32>
    %78 = vector.shape_cast %77 : vector<1x32x32xf32> to vector<32x32xf32>
    %cst_42 = arith.constant 0.000000e+00 : f32
    %79 = vector.broadcast %cst_42 : f32 to vector<4x32xf32>
    %80 = vector.extract_strided_slice %41 {offsets = [0, 32], sizes = [4, 32], strides = [1, 1]} : vector<4x64xf32> to vector<4x32xf32>
    %cst_43 = arith.constant dense<0.000000e+00> : vector<4x32xf32>
    %81 = tpu.matmul %79, %78, %cst_43 {dimension_numbers = #tpu.dot_dimension_numbers<[1], [0], [0], [1], [0, 0, 1, 1], [], []>} : vector<4x32xf32>, vector<32x32xf32>, vector<4x32xf32> -> vector<4x32xf32>
    %82 = arith.addf %80, %81 : vector<4x32xf32>
    %83 = math.tanh %82 : vector<4x32xf32>
    %84 = vector.extract_strided_slice %38 {offsets = [0, 32], sizes = [4, 32], strides = [1, 1]} : vector<4x64xf32> to vector<4x32xf32>
    %cst_44 = arith.constant dense<0.000000e+00> : vector<4x32xf32>
    %85 = tpu.matmul %83, %78, %cst_44 {dimension_numbers = #tpu.dot_dimension_numbers<[1], [0], [0], [1], [0, 0, 1, 1], [], []>} : vector<4x32xf32>, vector<32x32xf32>, vector<4x32xf32> -> vector<4x32xf32>
    %86 = arith.addf %84, %85 : vector<4x32xf32>
    %87 = math.tanh %86 : vector<4x32xf32>
    %88 = vector.extract_strided_slice %35 {offsets = [0, 32], sizes = [4, 32], strides = [1, 1]} : vector<4x64xf32> to vector<4x32xf32>
    %cst_45 = arith.constant dense<0.000000e+00> : vector<4x32xf32>
    %89 = tpu.matmul %87, %78, %cst_45 {dimension_numbers = #tpu.dot_dimension_numbers<[1], [0], [0], [1], [0, 0, 1, 1], [], []>} : vector<4x32xf32>, vector<32x32xf32>, vector<4x32xf32> -> vector<4x32xf32>
    %90 = arith.addf %88, %89 : vector<4x32xf32>
    %91 = math.tanh %90 : vector<4x32xf32>
    %92 = vector.extract_strided_slice %32 {offsets = [0, 32], sizes = [4, 32], strides = [1, 1]} : vector<4x64xf32> to vector<4x32xf32>
    %cst_46 = arith.constant dense<0.000000e+00> : vector<4x32xf32>
    %93 = tpu.matmul %91, %78, %cst_46 {dimension_numbers = #tpu.dot_dimension_numbers<[1], [0], [0], [1], [0, 0, 1, 1], [], []>} : vector<4x32xf32>, vector<32x32xf32>, vector<4x32xf32> -> vector<4x32xf32>
    %94 = arith.addf %92, %93 : vector<4x32xf32>
    %95 = math.tanh %94 : vector<4x32xf32>
    %96 = vector.extract_strided_slice %29 {offsets = [0, 32], sizes = [4, 32], strides = [1, 1]} : vector<4x64xf32> to vector<4x32xf32>
    %cst_47 = arith.constant dense<0.000000e+00> : vector<4x32xf32>
    %97 = tpu.matmul %95, %78, %cst_47 {dimension_numbers = #tpu.dot_dimension_numbers<[1], [0], [0], [1], [0, 0, 1, 1], [], []>} : vector<4x32xf32>, vector<32x32xf32>, vector<4x32xf32> -> vector<4x32xf32>
    %98 = arith.addf %96, %97 : vector<4x32xf32>
    %99 = math.tanh %98 : vector<4x32xf32>
    %100 = vector.extract_strided_slice %26 {offsets = [0, 32], sizes = [4, 32], strides = [1, 1]} : vector<4x64xf32> to vector<4x32xf32>
    %cst_48 = arith.constant dense<0.000000e+00> : vector<4x32xf32>
    %101 = tpu.matmul %99, %78, %cst_48 {dimension_numbers = #tpu.dot_dimension_numbers<[1], [0], [0], [1], [0, 0, 1, 1], [], []>} : vector<4x32xf32>, vector<32x32xf32>, vector<4x32xf32> -> vector<4x32xf32>
    %102 = arith.addf %100, %101 : vector<4x32xf32>
    %103 = math.tanh %102 : vector<4x32xf32>
    %104 = vector.extract_strided_slice %23 {offsets = [0, 32], sizes = [4, 32], strides = [1, 1]} : vector<4x64xf32> to vector<4x32xf32>
    %cst_49 = arith.constant dense<0.000000e+00> : vector<4x32xf32>
    %105 = tpu.matmul %103, %78, %cst_49 {dimension_numbers = #tpu.dot_dimension_numbers<[1], [0], [0], [1], [0, 0, 1, 1], [], []>} : vector<4x32xf32>, vector<32x32xf32>, vector<4x32xf32> -> vector<4x32xf32>
    %106 = arith.addf %104, %105 : vector<4x32xf32>
    %107 = math.tanh %106 : vector<4x32xf32>
    %108 = vector.extract_strided_slice %20 {offsets = [0, 32], sizes = [4, 32], strides = [1, 1]} : vector<4x64xf32> to vector<4x32xf32>
    %cst_50 = arith.constant dense<0.000000e+00> : vector<4x32xf32>
    %109 = tpu.matmul %107, %78, %cst_50 {dimension_numbers = #tpu.dot_dimension_numbers<[1], [0], [0], [1], [0, 0, 1, 1], [], []>} : vector<4x32xf32>, vector<32x32xf32>, vector<4x32xf32> -> vector<4x32xf32>
    %110 = arith.addf %108, %109 : vector<4x32xf32>
    %111 = math.tanh %110 : vector<4x32xf32>
    %c0_51 = arith.constant 0 : index
    %c0_52 = arith.constant 0 : index
    %112 = vector.load %arg6[%c0_51, %c0_52] : memref<1x64xf32, #tpu.memory_space<vmem>>, vector<1x64xf32>
    %c0_53 = arith.constant 0 : index
    %c0_54 = arith.constant 0 : index
    %113 = vector.load %arg4[%c0_53, %c0_54] : memref<64x64xf32, #tpu.memory_space<vmem>>, vector<32x64xf32>
    %c32 = arith.constant 32 : index
    %c0_55 = arith.constant 0 : index
    %114 = vector.load %arg4[%c32, %c0_55] : memref<64x64xf32, #tpu.memory_space<vmem>>, vector<32x64xf32>
    %cst_56 = arith.constant dense<0.000000e+00> : vector<4x64xf32>
    %115 = tpu.matmul %48, %113, %cst_56 {dimension_numbers = #tpu.dot_dimension_numbers<[1], [0], [0], [1], [0, 0, 1, 1], [], []>} : vector<4x32xf32>, vector<32x64xf32>, vector<4x64xf32> -> vector<4x64xf32>
    %116 = vector.broadcast %112 : vector<1x64xf32> to vector<4x64xf32>
    %117 = arith.addf %116, %115 : vector<4x64xf32>
    %cst_57 = arith.constant dense<0.000000e+00> : vector<4x64xf32>
    %118 = tpu.matmul %111, %114, %cst_57 {dimension_numbers = #tpu.dot_dimension_numbers<[1], [0], [0], [1], [0, 0, 1, 1], [], []>} : vector<4x32xf32>, vector<32x64xf32>, vector<4x64xf32> -> vector<4x64xf32>
    %119 = arith.addf %117, %118 : vector<4x64xf32>
    %cst_58 = arith.constant dense<0.000000e+00> : vector<4x64xf32>
    %120 = tpu.matmul %52, %113, %cst_58 {dimension_numbers = #tpu.dot_dimension_numbers<[1], [0], [0], [1], [0, 0, 1, 1], [], []>} : vector<4x32xf32>, vector<32x64xf32>, vector<4x64xf32> -> vector<4x64xf32>
    %121 = vector.broadcast %112 : vector<1x64xf32> to vector<4x64xf32>
    %122 = arith.addf %121, %120 : vector<4x64xf32>
    %cst_59 = arith.constant dense<0.000000e+00> : vector<4x64xf32>
    %123 = tpu.matmul %107, %114, %cst_59 {dimension_numbers = #tpu.dot_dimension_numbers<[1], [0], [0], [1], [0, 0, 1, 1], [], []>} : vector<4x32xf32>, vector<32x64xf32>, vector<4x64xf32> -> vector<4x64xf32>
    %124 = arith.addf %122, %123 : vector<4x64xf32>
    %cst_60 = arith.constant dense<0.000000e+00> : vector<4x64xf32>
    %125 = tpu.matmul %56, %113, %cst_60 {dimension_numbers = #tpu.dot_dimension_numbers<[1], [0], [0], [1], [0, 0, 1, 1], [], []>} : vector<4x32xf32>, vector<32x64xf32>, vector<4x64xf32> -> vector<4x64xf32>
    %126 = vector.broadcast %112 : vector<1x64xf32> to vector<4x64xf32>
    %127 = arith.addf %126, %125 : vector<4x64xf32>
    %cst_61 = arith.constant dense<0.000000e+00> : vector<4x64xf32>
    %128 = tpu.matmul %103, %114, %cst_61 {dimension_numbers = #tpu.dot_dimension_numbers<[1], [0], [0], [1], [0, 0, 1, 1], [], []>} : vector<4x32xf32>, vector<32x64xf32>, vector<4x64xf32> -> vector<4x64xf32>
    %129 = arith.addf %127, %128 : vector<4x64xf32>
    %cst_62 = arith.constant dense<0.000000e+00> : vector<4x64xf32>
    %130 = tpu.matmul %60, %113, %cst_62 {dimension_numbers = #tpu.dot_dimension_numbers<[1], [0], [0], [1], [0, 0, 1, 1], [], []>} : vector<4x32xf32>, vector<32x64xf32>, vector<4x64xf32> -> vector<4x64xf32>
    %131 = vector.broadcast %112 : vector<1x64xf32> to vector<4x64xf32>
    %132 = arith.addf %131, %130 : vector<4x64xf32>
    %cst_63 = arith.constant dense<0.000000e+00> : vector<4x64xf32>
    %133 = tpu.matmul %99, %114, %cst_63 {dimension_numbers = #tpu.dot_dimension_numbers<[1], [0], [0], [1], [0, 0, 1, 1], [], []>} : vector<4x32xf32>, vector<32x64xf32>, vector<4x64xf32> -> vector<4x64xf32>
    %134 = arith.addf %132, %133 : vector<4x64xf32>
    %cst_64 = arith.constant dense<0.000000e+00> : vector<4x64xf32>
    %135 = tpu.matmul %64, %113, %cst_64 {dimension_numbers = #tpu.dot_dimension_numbers<[1], [0], [0], [1], [0, 0, 1, 1], [], []>} : vector<4x32xf32>, vector<32x64xf32>, vector<4x64xf32> -> vector<4x64xf32>
    %136 = vector.broadcast %112 : vector<1x64xf32> to vector<4x64xf32>
    %137 = arith.addf %136, %135 : vector<4x64xf32>
    %cst_65 = arith.constant dense<0.000000e+00> : vector<4x64xf32>
    %138 = tpu.matmul %95, %114, %cst_65 {dimension_numbers = #tpu.dot_dimension_numbers<[1], [0], [0], [1], [0, 0, 1, 1], [], []>} : vector<4x32xf32>, vector<32x64xf32>, vector<4x64xf32> -> vector<4x64xf32>
    %139 = arith.addf %137, %138 : vector<4x64xf32>
    %cst_66 = arith.constant dense<0.000000e+00> : vector<4x64xf32>
    %140 = tpu.matmul %68, %113, %cst_66 {dimension_numbers = #tpu.dot_dimension_numbers<[1], [0], [0], [1], [0, 0, 1, 1], [], []>} : vector<4x32xf32>, vector<32x64xf32>, vector<4x64xf32> -> vector<4x64xf32>
    %141 = vector.broadcast %112 : vector<1x64xf32> to vector<4x64xf32>
    %142 = arith.addf %141, %140 : vector<4x64xf32>
    %cst_67 = arith.constant dense<0.000000e+00> : vector<4x64xf32>
    %143 = tpu.matmul %91, %114, %cst_67 {dimension_numbers = #tpu.dot_dimension_numbers<[1], [0], [0], [1], [0, 0, 1, 1], [], []>} : vector<4x32xf32>, vector<32x64xf32>, vector<4x64xf32> -> vector<4x64xf32>
    %144 = arith.addf %142, %143 : vector<4x64xf32>
    %cst_68 = arith.constant dense<0.000000e+00> : vector<4x64xf32>
    %145 = tpu.matmul %72, %113, %cst_68 {dimension_numbers = #tpu.dot_dimension_numbers<[1], [0], [0], [1], [0, 0, 1, 1], [], []>} : vector<4x32xf32>, vector<32x64xf32>, vector<4x64xf32> -> vector<4x64xf32>
    %146 = vector.broadcast %112 : vector<1x64xf32> to vector<4x64xf32>
    %147 = arith.addf %146, %145 : vector<4x64xf32>
    %cst_69 = arith.constant dense<0.000000e+00> : vector<4x64xf32>
    %148 = tpu.matmul %87, %114, %cst_69 {dimension_numbers = #tpu.dot_dimension_numbers<[1], [0], [0], [1], [0, 0, 1, 1], [], []>} : vector<4x32xf32>, vector<32x64xf32>, vector<4x64xf32> -> vector<4x64xf32>
    %149 = arith.addf %147, %148 : vector<4x64xf32>
    %cst_70 = arith.constant dense<0.000000e+00> : vector<4x64xf32>
    %150 = tpu.matmul %76, %113, %cst_70 {dimension_numbers = #tpu.dot_dimension_numbers<[1], [0], [0], [1], [0, 0, 1, 1], [], []>} : vector<4x32xf32>, vector<32x64xf32>, vector<4x64xf32> -> vector<4x64xf32>
    %151 = vector.broadcast %112 : vector<1x64xf32> to vector<4x64xf32>
    %152 = arith.addf %151, %150 : vector<4x64xf32>
    %cst_71 = arith.constant dense<0.000000e+00> : vector<4x64xf32>
    %153 = tpu.matmul %83, %114, %cst_71 {dimension_numbers = #tpu.dot_dimension_numbers<[1], [0], [0], [1], [0, 0, 1, 1], [], []>} : vector<4x32xf32>, vector<32x64xf32>, vector<4x64xf32> -> vector<4x64xf32>
    %154 = arith.addf %152, %153 : vector<4x64xf32>
    %c0_72 = arith.constant 0 : index
    %c0_73 = arith.constant 0 : index
    %c0_74 = arith.constant 0 : index
    %155 = vector.load %arg5[%c0_72, %c0_73, %c0_74] : memref<2x32x32xf32, #tpu.memory_space<vmem>>, vector<1x32x32xf32>
    %156 = vector.shape_cast %155 : vector<1x32x32xf32> to vector<32x32xf32>
    %cst_75 = arith.constant 0.000000e+00 : f32
    %157 = vector.broadcast %cst_75 : f32 to vector<4x32xf32>
    %158 = vector.extract_strided_slice %119 {offsets = [0, 0], sizes = [4, 32], strides = [1, 1]} : vector<4x64xf32> to vector<4x32xf32>
    %cst_76 = arith.constant dense<0.000000e+00> : vector<4x32xf32>
    %159 = tpu.matmul %157, %156, %cst_76 {dimension_numbers = #tpu.dot_dimension_numbers<[1], [0], [0], [1], [0, 0, 1, 1], [], []>} : vector<4x32xf32>, vector<32x32xf32>, vector<4x32xf32> -> vector<4x32xf32>
    %160 = arith.addf %158, %159 : vector<4x32xf32>
    %161 = math.tanh %160 : vector<4x32xf32>
    %162 = vector.extract_strided_slice %124 {offsets = [0, 0], sizes = [4, 32], strides = [1, 1]} : vector<4x64xf32> to vector<4x32xf32>
    %cst_77 = arith.constant dense<0.000000e+00> : vector<4x32xf32>
    %163 = tpu.matmul %161, %156, %cst_77 {dimension_numbers = #tpu.dot_dimension_numbers<[1], [0], [0], [1], [0, 0, 1, 1], [], []>} : vector<4x32xf32>, vector<32x32xf32>, vector<4x32xf32> -> vector<4x32xf32>
    %164 = arith.addf %162, %163 : vector<4x32xf32>
    %165 = math.tanh %164 : vector<4x32xf32>
    %166 = vector.extract_strided_slice %129 {offsets = [0, 0], sizes = [4, 32], strides = [1, 1]} : vector<4x64xf32> to vector<4x32xf32>
    %cst_78 = arith.constant dense<0.000000e+00> : vector<4x32xf32>
    %167 = tpu.matmul %165, %156, %cst_78 {dimension_numbers = #tpu.dot_dimension_numbers<[1], [0], [0], [1], [0, 0, 1, 1], [], []>} : vector<4x32xf32>, vector<32x32xf32>, vector<4x32xf32> -> vector<4x32xf32>
    %168 = arith.addf %166, %167 : vector<4x32xf32>
    %169 = math.tanh %168 : vector<4x32xf32>
    %170 = vector.extract_strided_slice %134 {offsets = [0, 0], sizes = [4, 32], strides = [1, 1]} : vector<4x64xf32> to vector<4x32xf32>
    %cst_79 = arith.constant dense<0.000000e+00> : vector<4x32xf32>
    %171 = tpu.matmul %169, %156, %cst_79 {dimension_numbers = #tpu.dot_dimension_numbers<[1], [0], [0], [1], [0, 0, 1, 1], [], []>} : vector<4x32xf32>, vector<32x32xf32>, vector<4x32xf32> -> vector<4x32xf32>
    %172 = arith.addf %170, %171 : vector<4x32xf32>
    %173 = math.tanh %172 : vector<4x32xf32>
    %174 = vector.extract_strided_slice %139 {offsets = [0, 0], sizes = [4, 32], strides = [1, 1]} : vector<4x64xf32> to vector<4x32xf32>
    %cst_80 = arith.constant dense<0.000000e+00> : vector<4x32xf32>
    %175 = tpu.matmul %173, %156, %cst_80 {dimension_numbers = #tpu.dot_dimension_numbers<[1], [0], [0], [1], [0, 0, 1, 1], [], []>} : vector<4x32xf32>, vector<32x32xf32>, vector<4x32xf32> -> vector<4x32xf32>
    %176 = arith.addf %174, %175 : vector<4x32xf32>
    %177 = math.tanh %176 : vector<4x32xf32>
    %178 = vector.extract_strided_slice %144 {offsets = [0, 0], sizes = [4, 32], strides = [1, 1]} : vector<4x64xf32> to vector<4x32xf32>
    %cst_81 = arith.constant dense<0.000000e+00> : vector<4x32xf32>
    %179 = tpu.matmul %177, %156, %cst_81 {dimension_numbers = #tpu.dot_dimension_numbers<[1], [0], [0], [1], [0, 0, 1, 1], [], []>} : vector<4x32xf32>, vector<32x32xf32>, vector<4x32xf32> -> vector<4x32xf32>
    %180 = arith.addf %178, %179 : vector<4x32xf32>
    %181 = math.tanh %180 : vector<4x32xf32>
    %182 = vector.extract_strided_slice %149 {offsets = [0, 0], sizes = [4, 32], strides = [1, 1]} : vector<4x64xf32> to vector<4x32xf32>
    %cst_82 = arith.constant dense<0.000000e+00> : vector<4x32xf32>
    %183 = tpu.matmul %181, %156, %cst_82 {dimension_numbers = #tpu.dot_dimension_numbers<[1], [0], [0], [1], [0, 0, 1, 1], [], []>} : vector<4x32xf32>, vector<32x32xf32>, vector<4x32xf32> -> vector<4x32xf32>
    %184 = arith.addf %182, %183 : vector<4x32xf32>
    %185 = math.tanh %184 : vector<4x32xf32>
    %186 = vector.extract_strided_slice %154 {offsets = [0, 0], sizes = [4, 32], strides = [1, 1]} : vector<4x64xf32> to vector<4x32xf32>
    %cst_83 = arith.constant dense<0.000000e+00> : vector<4x32xf32>
    %187 = tpu.matmul %185, %156, %cst_83 {dimension_numbers = #tpu.dot_dimension_numbers<[1], [0], [0], [1], [0, 0, 1, 1], [], []>} : vector<4x32xf32>, vector<32x32xf32>, vector<4x32xf32> -> vector<4x32xf32>
    %188 = arith.addf %186, %187 : vector<4x32xf32>
    %189 = math.tanh %188 : vector<4x32xf32>
    %c1_84 = arith.constant 1 : index
    %c0_85 = arith.constant 0 : index
    %c0_86 = arith.constant 0 : index
    %190 = vector.load %arg5[%c1_84, %c0_85, %c0_86] : memref<2x32x32xf32, #tpu.memory_space<vmem>>, vector<1x32x32xf32>
    %191 = vector.shape_cast %190 : vector<1x32x32xf32> to vector<32x32xf32>
    %cst_87 = arith.constant 0.000000e+00 : f32
    %192 = vector.broadcast %cst_87 : f32 to vector<4x32xf32>
    %193 = vector.extract_strided_slice %154 {offsets = [0, 32], sizes = [4, 32], strides = [1, 1]} : vector<4x64xf32> to vector<4x32xf32>
    %cst_88 = arith.constant dense<0.000000e+00> : vector<4x32xf32>
    %194 = tpu.matmul %192, %191, %cst_88 {dimension_numbers = #tpu.dot_dimension_numbers<[1], [0], [0], [1], [0, 0, 1, 1], [], []>} : vector<4x32xf32>, vector<32x32xf32>, vector<4x32xf32> -> vector<4x32xf32>
    %195 = arith.addf %193, %194 : vector<4x32xf32>
    %196 = math.tanh %195 : vector<4x32xf32>
    %197 = vector.extract_strided_slice %149 {offsets = [0, 32], sizes = [4, 32], strides = [1, 1]} : vector<4x64xf32> to vector<4x32xf32>
    %cst_89 = arith.constant dense<0.000000e+00> : vector<4x32xf32>
    %198 = tpu.matmul %196, %191, %cst_89 {dimension_numbers = #tpu.dot_dimension_numbers<[1], [0], [0], [1], [0, 0, 1, 1], [], []>} : vector<4x32xf32>, vector<32x32xf32>, vector<4x32xf32> -> vector<4x32xf32>
    %199 = arith.addf %197, %198 : vector<4x32xf32>
    %200 = math.tanh %199 : vector<4x32xf32>
    %201 = vector.extract_strided_slice %144 {offsets = [0, 32], sizes = [4, 32], strides = [1, 1]} : vector<4x64xf32> to vector<4x32xf32>
    %cst_90 = arith.constant dense<0.000000e+00> : vector<4x32xf32>
    %202 = tpu.matmul %200, %191, %cst_90 {dimension_numbers = #tpu.dot_dimension_numbers<[1], [0], [0], [1], [0, 0, 1, 1], [], []>} : vector<4x32xf32>, vector<32x32xf32>, vector<4x32xf32> -> vector<4x32xf32>
    %203 = arith.addf %201, %202 : vector<4x32xf32>
    %204 = math.tanh %203 : vector<4x32xf32>
    %205 = vector.extract_strided_slice %139 {offsets = [0, 32], sizes = [4, 32], strides = [1, 1]} : vector<4x64xf32> to vector<4x32xf32>
    %cst_91 = arith.constant dense<0.000000e+00> : vector<4x32xf32>
    %206 = tpu.matmul %204, %191, %cst_91 {dimension_numbers = #tpu.dot_dimension_numbers<[1], [0], [0], [1], [0, 0, 1, 1], [], []>} : vector<4x32xf32>, vector<32x32xf32>, vector<4x32xf32> -> vector<4x32xf32>
    %207 = arith.addf %205, %206 : vector<4x32xf32>
    %208 = math.tanh %207 : vector<4x32xf32>
    %209 = vector.extract_strided_slice %134 {offsets = [0, 32], sizes = [4, 32], strides = [1, 1]} : vector<4x64xf32> to vector<4x32xf32>
    %cst_92 = arith.constant dense<0.000000e+00> : vector<4x32xf32>
    %210 = tpu.matmul %208, %191, %cst_92 {dimension_numbers = #tpu.dot_dimension_numbers<[1], [0], [0], [1], [0, 0, 1, 1], [], []>} : vector<4x32xf32>, vector<32x32xf32>, vector<4x32xf32> -> vector<4x32xf32>
    %211 = arith.addf %209, %210 : vector<4x32xf32>
    %212 = math.tanh %211 : vector<4x32xf32>
    %213 = vector.extract_strided_slice %129 {offsets = [0, 32], sizes = [4, 32], strides = [1, 1]} : vector<4x64xf32> to vector<4x32xf32>
    %cst_93 = arith.constant dense<0.000000e+00> : vector<4x32xf32>
    %214 = tpu.matmul %212, %191, %cst_93 {dimension_numbers = #tpu.dot_dimension_numbers<[1], [0], [0], [1], [0, 0, 1, 1], [], []>} : vector<4x32xf32>, vector<32x32xf32>, vector<4x32xf32> -> vector<4x32xf32>
    %215 = arith.addf %213, %214 : vector<4x32xf32>
    %216 = math.tanh %215 : vector<4x32xf32>
    %217 = vector.extract_strided_slice %124 {offsets = [0, 32], sizes = [4, 32], strides = [1, 1]} : vector<4x64xf32> to vector<4x32xf32>
    %cst_94 = arith.constant dense<0.000000e+00> : vector<4x32xf32>
    %218 = tpu.matmul %216, %191, %cst_94 {dimension_numbers = #tpu.dot_dimension_numbers<[1], [0], [0], [1], [0, 0, 1, 1], [], []>} : vector<4x32xf32>, vector<32x32xf32>, vector<4x32xf32> -> vector<4x32xf32>
    %219 = arith.addf %217, %218 : vector<4x32xf32>
    %220 = math.tanh %219 : vector<4x32xf32>
    %221 = vector.extract_strided_slice %119 {offsets = [0, 32], sizes = [4, 32], strides = [1, 1]} : vector<4x64xf32> to vector<4x32xf32>
    %cst_95 = arith.constant dense<0.000000e+00> : vector<4x32xf32>
    %222 = tpu.matmul %220, %191, %cst_95 {dimension_numbers = #tpu.dot_dimension_numbers<[1], [0], [0], [1], [0, 0, 1, 1], [], []>} : vector<4x32xf32>, vector<32x32xf32>, vector<4x32xf32> -> vector<4x32xf32>
    %223 = arith.addf %221, %222 : vector<4x32xf32>
    %224 = math.tanh %223 : vector<4x32xf32>
    %c0_96 = arith.constant 0 : index
    %c0_97 = arith.constant 0 : index
    %225 = vector.load %arg8[%c0_96, %c0_97] : memref<1x4xf32, #tpu.memory_space<vmem>>, vector<1x4xf32>
    %c0_98 = arith.constant 0 : index
    %c0_99 = arith.constant 0 : index
    %226 = vector.load %arg7[%c0_98, %c0_99] : memref<64x4xf32, #tpu.memory_space<vmem>>, vector<32x4xf32>
    %c32_100 = arith.constant 32 : index
    %c0_101 = arith.constant 0 : index
    %227 = vector.load %arg7[%c32_100, %c0_101] : memref<64x4xf32, #tpu.memory_space<vmem>>, vector<32x4xf32>
    %cst_102 = arith.constant dense<0.000000e+00> : vector<4x4xf32>
    %228 = tpu.matmul %161, %226, %cst_102 {dimension_numbers = #tpu.dot_dimension_numbers<[1], [0], [0], [1], [0, 0, 1, 1], [], []>} : vector<4x32xf32>, vector<32x4xf32>, vector<4x4xf32> -> vector<4x4xf32>
    %229 = vector.broadcast %225 : vector<1x4xf32> to vector<4x4xf32>
    %230 = arith.addf %229, %228 : vector<4x4xf32>
    %cst_103 = arith.constant dense<0.000000e+00> : vector<4x4xf32>
    %231 = tpu.matmul %224, %227, %cst_103 {dimension_numbers = #tpu.dot_dimension_numbers<[1], [0], [0], [1], [0, 0, 1, 1], [], []>} : vector<4x32xf32>, vector<32x4xf32>, vector<4x4xf32> -> vector<4x4xf32>
    %232 = arith.addf %230, %231 : vector<4x4xf32>
    %233 = arith.negf %232 : vector<4x4xf32>
    %234 = math.exp %233 : vector<4x4xf32>
    %cst_104 = arith.constant 1.000000e+00 : f32
    %235 = vector.broadcast %cst_104 : f32 to vector<4x4xf32>
    %236 = arith.addf %235, %234 : vector<4x4xf32>
    %237 = arith.divf %235, %236 : vector<4x4xf32>
    %c0_105 = arith.constant 0 : index
    %c0_106 = arith.constant 0 : index
    %c0_107 = arith.constant 0 : index
    %238 = vector.load %arg9[%c0_105, %c0_106, %c0_107] : memref<8x4x4xf32, #tpu.memory_space<vmem>>, vector<1x4x4xf32>
    %239 = vector.shape_cast %238 : vector<1x4x4xf32> to vector<4x4xf32>
    %240 = vector.shape_cast %237 : vector<4x4xf32> to vector<1x4x4xf32>
    tpu.vector_store %arg9[%c0_105, %c0_106, %c0_107], %240 {strides = array<i32>} : memref<8x4x4xf32, #tpu.memory_space<vmem>>, vector<1x4x4xf32>,
    %cst_108 = arith.constant dense<0.000000e+00> : vector<4x4xf32>
    %241 = tpu.matmul %165, %226, %cst_108 {dimension_numbers = #tpu.dot_dimension_numbers<[1], [0], [0], [1], [0, 0, 1, 1], [], []>} : vector<4x32xf32>, vector<32x4xf32>, vector<4x4xf32> -> vector<4x4xf32>
    %242 = vector.broadcast %225 : vector<1x4xf32> to vector<4x4xf32>
    %243 = arith.addf %242, %241 : vector<4x4xf32>
    %cst_109 = arith.constant dense<0.000000e+00> : vector<4x4xf32>
    %244 = tpu.matmul %220, %227, %cst_109 {dimension_numbers = #tpu.dot_dimension_numbers<[1], [0], [0], [1], [0, 0, 1, 1], [], []>} : vector<4x32xf32>, vector<32x4xf32>, vector<4x4xf32> -> vector<4x4xf32>
    %245 = arith.addf %243, %244 : vector<4x4xf32>
    %246 = arith.negf %245 : vector<4x4xf32>
    %247 = math.exp %246 : vector<4x4xf32>
    %cst_110 = arith.constant 1.000000e+00 : f32
    %248 = vector.broadcast %cst_110 : f32 to vector<4x4xf32>
    %249 = arith.addf %248, %247 : vector<4x4xf32>
    %250 = arith.divf %248, %249 : vector<4x4xf32>
    %c1_111 = arith.constant 1 : index
    %c0_112 = arith.constant 0 : index
    %c0_113 = arith.constant 0 : index
    %251 = vector.load %arg9[%c1_111, %c0_112, %c0_113] : memref<8x4x4xf32, #tpu.memory_space<vmem>>, vector<1x4x4xf32>
    %252 = vector.shape_cast %251 : vector<1x4x4xf32> to vector<4x4xf32>
    %253 = vector.shape_cast %250 : vector<4x4xf32> to vector<1x4x4xf32>
    tpu.vector_store %arg9[%c1_111, %c0_112, %c0_113], %253 {strides = array<i32>} : memref<8x4x4xf32, #tpu.memory_space<vmem>>, vector<1x4x4xf32>,
    %cst_114 = arith.constant dense<0.000000e+00> : vector<4x4xf32>
    %254 = tpu.matmul %169, %226, %cst_114 {dimension_numbers = #tpu.dot_dimension_numbers<[1], [0], [0], [1], [0, 0, 1, 1], [], []>} : vector<4x32xf32>, vector<32x4xf32>, vector<4x4xf32> -> vector<4x4xf32>
    %255 = vector.broadcast %225 : vector<1x4xf32> to vector<4x4xf32>
    %256 = arith.addf %255, %254 : vector<4x4xf32>
    %cst_115 = arith.constant dense<0.000000e+00> : vector<4x4xf32>
    %257 = tpu.matmul %216, %227, %cst_115 {dimension_numbers = #tpu.dot_dimension_numbers<[1], [0], [0], [1], [0, 0, 1, 1], [], []>} : vector<4x32xf32>, vector<32x4xf32>, vector<4x4xf32> -> vector<4x4xf32>
    %258 = arith.addf %256, %257 : vector<4x4xf32>
    %259 = arith.negf %258 : vector<4x4xf32>
    %260 = math.exp %259 : vector<4x4xf32>
    %cst_116 = arith.constant 1.000000e+00 : f32
    %261 = vector.broadcast %cst_116 : f32 to vector<4x4xf32>
    %262 = arith.addf %261, %260 : vector<4x4xf32>
    %263 = arith.divf %261, %262 : vector<4x4xf32>
    %c2_117 = arith.constant 2 : index
    %c0_118 = arith.constant 0 : index
    %c0_119 = arith.constant 0 : index
    %264 = vector.load %arg9[%c2_117, %c0_118, %c0_119] : memref<8x4x4xf32, #tpu.memory_space<vmem>>, vector<1x4x4xf32>
    %265 = vector.shape_cast %264 : vector<1x4x4xf32> to vector<4x4xf32>
    %266 = vector.shape_cast %263 : vector<4x4xf32> to vector<1x4x4xf32>
    tpu.vector_store %arg9[%c2_117, %c0_118, %c0_119], %266 {strides = array<i32>} : memref<8x4x4xf32, #tpu.memory_space<vmem>>, vector<1x4x4xf32>,
    %cst_120 = arith.constant dense<0.000000e+00> : vector<4x4xf32>
    %267 = tpu.matmul %173, %226, %cst_120 {dimension_numbers = #tpu.dot_dimension_numbers<[1], [0], [0], [1], [0, 0, 1, 1], [], []>} : vector<4x32xf32>, vector<32x4xf32>, vector<4x4xf32> -> vector<4x4xf32>
    %268 = vector.broadcast %225 : vector<1x4xf32> to vector<4x4xf32>
    %269 = arith.addf %268, %267 : vector<4x4xf32>
    %cst_121 = arith.constant dense<0.000000e+00> : vector<4x4xf32>
    %270 = tpu.matmul %212, %227, %cst_121 {dimension_numbers = #tpu.dot_dimension_numbers<[1], [0], [0], [1], [0, 0, 1, 1], [], []>} : vector<4x32xf32>, vector<32x4xf32>, vector<4x4xf32> -> vector<4x4xf32>
    %271 = arith.addf %269, %270 : vector<4x4xf32>
    %272 = arith.negf %271 : vector<4x4xf32>
    %273 = math.exp %272 : vector<4x4xf32>
    %cst_122 = arith.constant 1.000000e+00 : f32
    %274 = vector.broadcast %cst_122 : f32 to vector<4x4xf32>
    %275 = arith.addf %274, %273 : vector<4x4xf32>
    %276 = arith.divf %274, %275 : vector<4x4xf32>
    %c3_123 = arith.constant 3 : index
    %c0_124 = arith.constant 0 : index
    %c0_125 = arith.constant 0 : index
    %277 = vector.load %arg9[%c3_123, %c0_124, %c0_125] : memref<8x4x4xf32, #tpu.memory_space<vmem>>, vector<1x4x4xf32>
    %278 = vector.shape_cast %277 : vector<1x4x4xf32> to vector<4x4xf32>
    %279 = vector.shape_cast %276 : vector<4x4xf32> to vector<1x4x4xf32>
    tpu.vector_store %arg9[%c3_123, %c0_124, %c0_125], %279 {strides = array<i32>} : memref<8x4x4xf32, #tpu.memory_space<vmem>>, vector<1x4x4xf32>,
    %cst_126 = arith.constant dense<0.000000e+00> : vector<4x4xf32>
    %280 = tpu.matmul %177, %226, %cst_126 {dimension_numbers = #tpu.dot_dimension_numbers<[1], [0], [0], [1], [0, 0, 1, 1], [], []>} : vector<4x32xf32>, vector<32x4xf32>, vector<4x4xf32> -> vector<4x4xf32>
    %281 = vector.broadcast %225 : vector<1x4xf32> to vector<4x4xf32>
    %282 = arith.addf %281, %280 : vector<4x4xf32>
    %cst_127 = arith.constant dense<0.000000e+00> : vector<4x4xf32>
    %283 = tpu.matmul %208, %227, %cst_127 {dimension_numbers = #tpu.dot_dimension_numbers<[1], [0], [0], [1], [0, 0, 1, 1], [], []>} : vector<4x32xf32>, vector<32x4xf32>, vector<4x4xf32> -> vector<4x4xf32>
    %284 = arith.addf %282, %283 : vector<4x4xf32>
    %285 = arith.negf %284 : vector<4x4xf32>
    %286 = math.exp %285 : vector<4x4xf32>
    %cst_128 = arith.constant 1.000000e+00 : f32
    %287 = vector.broadcast %cst_128 : f32 to vector<4x4xf32>
    %288 = arith.addf %287, %286 : vector<4x4xf32>
    %289 = arith.divf %287, %288 : vector<4x4xf32>
    %c4_129 = arith.constant 4 : index
    %c0_130 = arith.constant 0 : index
    %c0_131 = arith.constant 0 : index
    %290 = vector.load %arg9[%c4_129, %c0_130, %c0_131] : memref<8x4x4xf32, #tpu.memory_space<vmem>>, vector<1x4x4xf32>
    %291 = vector.shape_cast %290 : vector<1x4x4xf32> to vector<4x4xf32>
    %292 = vector.shape_cast %289 : vector<4x4xf32> to vector<1x4x4xf32>
    tpu.vector_store %arg9[%c4_129, %c0_130, %c0_131], %292 {strides = array<i32>} : memref<8x4x4xf32, #tpu.memory_space<vmem>>, vector<1x4x4xf32>,
    %cst_132 = arith.constant dense<0.000000e+00> : vector<4x4xf32>
    %293 = tpu.matmul %181, %226, %cst_132 {dimension_numbers = #tpu.dot_dimension_numbers<[1], [0], [0], [1], [0, 0, 1, 1], [], []>} : vector<4x32xf32>, vector<32x4xf32>, vector<4x4xf32> -> vector<4x4xf32>
    %294 = vector.broadcast %225 : vector<1x4xf32> to vector<4x4xf32>
    %295 = arith.addf %294, %293 : vector<4x4xf32>
    %cst_133 = arith.constant dense<0.000000e+00> : vector<4x4xf32>
    %296 = tpu.matmul %204, %227, %cst_133 {dimension_numbers = #tpu.dot_dimension_numbers<[1], [0], [0], [1], [0, 0, 1, 1], [], []>} : vector<4x32xf32>, vector<32x4xf32>, vector<4x4xf32> -> vector<4x4xf32>
    %297 = arith.addf %295, %296 : vector<4x4xf32>
    %298 = arith.negf %297 : vector<4x4xf32>
    %299 = math.exp %298 : vector<4x4xf32>
    %cst_134 = arith.constant 1.000000e+00 : f32
    %300 = vector.broadcast %cst_134 : f32 to vector<4x4xf32>
    %301 = arith.addf %300, %299 : vector<4x4xf32>
    %302 = arith.divf %300, %301 : vector<4x4xf32>
    %c5_135 = arith.constant 5 : index
    %c0_136 = arith.constant 0 : index
    %c0_137 = arith.constant 0 : index
    %303 = vector.load %arg9[%c5_135, %c0_136, %c0_137] : memref<8x4x4xf32, #tpu.memory_space<vmem>>, vector<1x4x4xf32>
    %304 = vector.shape_cast %303 : vector<1x4x4xf32> to vector<4x4xf32>
    %305 = vector.shape_cast %302 : vector<4x4xf32> to vector<1x4x4xf32>
    tpu.vector_store %arg9[%c5_135, %c0_136, %c0_137], %305 {strides = array<i32>} : memref<8x4x4xf32, #tpu.memory_space<vmem>>, vector<1x4x4xf32>,
    %cst_138 = arith.constant dense<0.000000e+00> : vector<4x4xf32>
    %306 = tpu.matmul %185, %226, %cst_138 {dimension_numbers = #tpu.dot_dimension_numbers<[1], [0], [0], [1], [0, 0, 1, 1], [], []>} : vector<4x32xf32>, vector<32x4xf32>, vector<4x4xf32> -> vector<4x4xf32>
    %307 = vector.broadcast %225 : vector<1x4xf32> to vector<4x4xf32>
    %308 = arith.addf %307, %306 : vector<4x4xf32>
    %cst_139 = arith.constant dense<0.000000e+00> : vector<4x4xf32>
    %309 = tpu.matmul %200, %227, %cst_139 {dimension_numbers = #tpu.dot_dimension_numbers<[1], [0], [0], [1], [0, 0, 1, 1], [], []>} : vector<4x32xf32>, vector<32x4xf32>, vector<4x4xf32> -> vector<4x4xf32>
    %310 = arith.addf %308, %309 : vector<4x4xf32>
    %311 = arith.negf %310 : vector<4x4xf32>
    %312 = math.exp %311 : vector<4x4xf32>
    %cst_140 = arith.constant 1.000000e+00 : f32
    %313 = vector.broadcast %cst_140 : f32 to vector<4x4xf32>
    %314 = arith.addf %313, %312 : vector<4x4xf32>
    %315 = arith.divf %313, %314 : vector<4x4xf32>
    %c6_141 = arith.constant 6 : index
    %c0_142 = arith.constant 0 : index
    %c0_143 = arith.constant 0 : index
    %316 = vector.load %arg9[%c6_141, %c0_142, %c0_143] : memref<8x4x4xf32, #tpu.memory_space<vmem>>, vector<1x4x4xf32>
    %317 = vector.shape_cast %316 : vector<1x4x4xf32> to vector<4x4xf32>
    %318 = vector.shape_cast %315 : vector<4x4xf32> to vector<1x4x4xf32>
    tpu.vector_store %arg9[%c6_141, %c0_142, %c0_143], %318 {strides = array<i32>} : memref<8x4x4xf32, #tpu.memory_space<vmem>>, vector<1x4x4xf32>,
    %cst_144 = arith.constant dense<0.000000e+00> : vector<4x4xf32>
    %319 = tpu.matmul %189, %226, %cst_144 {dimension_numbers = #tpu.dot_dimension_numbers<[1], [0], [0], [1], [0, 0, 1, 1], [], []>} : vector<4x32xf32>, vector<32x4xf32>, vector<4x4xf32> -> vector<4x4xf32>
    %320 = vector.broadcast %225 : vector<1x4xf32> to vector<4x4xf32>
    %321 = arith.addf %320, %319 : vector<4x4xf32>
    %cst_145 = arith.constant dense<0.000000e+00> : vector<4x4xf32>
    %322 = tpu.matmul %196, %227, %cst_145 {dimension_numbers = #tpu.dot_dimension_numbers<[1], [0], [0], [1], [0, 0, 1, 1], [], []>} : vector<4x32xf32>, vector<32x4xf32>, vector<4x4xf32> -> vector<4x4xf32>
    %323 = arith.addf %321, %322 : vector<4x4xf32>
    %324 = arith.negf %323 : vector<4x4xf32>
    %325 = math.exp %324 : vector<4x4xf32>
    %cst_146 = arith.constant 1.000000e+00 : f32
    %326 = vector.broadcast %cst_146 : f32 to vector<4x4xf32>
    %327 = arith.addf %326, %325 : vector<4x4xf32>
    %328 = arith.divf %326, %327 : vector<4x4xf32>
    %c7_147 = arith.constant 7 : index
    %c0_148 = arith.constant 0 : index
    %c0_149 = arith.constant 0 : index
    %329 = vector.load %arg9[%c7_147, %c0_148, %c0_149] : memref<8x4x4xf32, #tpu.memory_space<vmem>>, vector<1x4x4xf32>
    %330 = vector.shape_cast %329 : vector<1x4x4xf32> to vector<4x4xf32>
    %331 = vector.shape_cast %328 : vector<4x4xf32> to vector<1x4x4xf32>
    tpu.vector_store %arg9[%c7_147, %c0_148, %c0_149], %331 {strides = array<i32>} : memref<8x4x4xf32, #tpu.memory_space<vmem>>, vector<1x4x4xf32>,
    return
  }
}

</mosaic_0001>

<llo_original>
// kernel: tpu_custom_call.1
$region0: #{tpu_custom_call.1}
  #allocation0 [shape = 'u32[]', space=smem, size = 0x4, offset = 0x4, fixed_abs, tag = 'smem constant byte address 0x4 - core index']
  #allocation1 [shape = 'u32[144,128]{1,0:T(1,128)}', space=vmem, size = 0x12000, scoped, tag = 'internal scratch']
  %s0 = inlined_call_operand.hbm [shape: f32[8,4,32], index: 0, kind: input, shape index: {}]
  %s1 = inlined_call_operand.hbm [shape: f32[32,64], index: 1, kind: input, shape index: {}]
  %s2 = inlined_call_operand.vmem [shape: f32[2,32,32], index: 2, kind: input, shape index: {}]
  %s3 = inlined_call_operand.vmem [shape: f32[1,64], index: 3, kind: input, shape index: {}]
  %s4 = inlined_call_operand.hbm [shape: f32[64,64], index: 4, kind: input, shape index: {}]
  %s5 = inlined_call_operand.hbm [shape: f32[2,32,32], index: 5, kind: input, shape index: {}]
  %s6 = inlined_call_operand.vmem [shape: f32[1,64], index: 6, kind: input, shape index: {}]
  %s7 = inlined_call_operand.vmem [shape: f32[64,4], index: 7, kind: input, shape index: {}]
  %s8 = inlined_call_operand.vmem [shape: f32[1,4], index: 8, kind: input, shape index: {}]
  %s9 = inlined_call_operand.vmem [shape: f32[8,4,4], index: 9, kind: output, shape index: {}]
  %s10 = sld [smem:[#allocation0]]
  $region62: #{tpu_custom_call.1} parent=0
    _
  %s12 = ssub.s32 1, %s10
  %s13 = scalar_select 0, %s12, %s10
  $region1: #{tpu_custom_call.1} parent=0
    #allocation2 [shape = 'u8[16384]{0}', space=vmem, size = 0x4000, scoped, tag = 'input window, operand 0, single buffered']
    #allocation3 [shape = 's32[1]{0}', space=sflag, size = 0x4, scoped, tag = 'scoped memory for tpu_custom_call.1']
    #allocation4 [shape = 'u8[16384]{0}', space=vmem, size = 0x4000, scoped, tag = 'input window, operand 1, single buffered']
    #allocation5 [shape = 's32[1]{0}', space=sflag, size = 0x4, scoped, tag = 'scoped memory for tpu_custom_call.1']
    #allocation6 [shape = 'u8[32768]{0}', space=vmem, size = 0x8000, scoped, tag = 'input window, operand 4, single buffered']
    #allocation7 [shape = 'u8[32768]{0}', space=vmem, size = 0x8000, scoped, tag = 'input window, operand 5, single buffered']
    #allocation8 [shape = 's32[1]{0}', space=sflag, size = 0x4, scoped, tag = 'scoped memory for tpu_custom_call.1']
    %14 = vsyncpa [#allocation3], 0
    %15 = vsyncpa [#allocation5], 0
    %16 = vsyncpa [#allocation8], 0
    // Predicated region
    $region2: #{tpu_custom_call.1} parent=1 // pred_check
      _
    $region3: #{tpu_custom_call.1} parent=1 // pred_check_branch
      %18 = sbr.rel (0) target = $region5
    $region4: #{tpu_custom_call.1} parent=1 // pred_region
      %s20 = ssub.s32 512, 512
      %21 = vsyncadd [#allocation3], %s20
      %s22 = sshll.u32 [#allocation2], 4
      %s23 = int_to_ptr.vmem [resolvable:$true] %s22
      %28 = dma.hbm_to_vmem [thread:$0]  %s0, 512, %s23, [#allocation3], 64, 64, 4
    $region5: #{tpu_custom_call.1} parent=1 // pred_fallthru
      _
    // Predicated region
    $region6: #{tpu_custom_call.1} parent=1 // pred_check
      _
    $region7: #{tpu_custom_call.1} parent=1 // pred_check_branch
      %30 = sbr.rel (0) target = $region9
    $region8: #{tpu_custom_call.1} parent=1 // pred_region
      %s32 = ssub.s32 512, 512
      %33 = vsyncadd [#allocation5], %s32
      %s34 = sshll.u32 [#allocation4], 4
      %s35 = int_to_ptr.vmem [resolvable:$true] %s34
      %40 = dma.hbm_to_vmem [thread:$0]  %s1, 512, %s35, [#allocation5], 128, 128, 8
    $region9: #{tpu_custom_call.1} parent=1 // pred_fallthru
      _
    // Predicated region
    $region10: #{tpu_custom_call.1} parent=1 // pred_check
      _
    $region11: #{tpu_custom_call.1} parent=1 // pred_check_branch
      %42 = sbr.rel (0) target = $region13
    $region12: #{tpu_custom_call.1} parent=1 // pred_region
      _
    $region13: #{tpu_custom_call.1} parent=1 // pred_fallthru
      _
    // Predicated region
    $region14: #{tpu_custom_call.1} parent=1 // pred_check
      _
    $region15: #{tpu_custom_call.1} parent=1 // pred_check_branch
      %44 = sbr.rel (0) target = $region17
    $region16: #{tpu_custom_call.1} parent=1 // pred_region
      _
    $region17: #{tpu_custom_call.1} parent=1 // pred_fallthru
      _
    // Predicated region
    $region18: #{tpu_custom_call.1} parent=1 // pred_check
      _
    $region19: #{tpu_custom_call.1} parent=1 // pred_check_branch
      %46 = sbr.rel (0) target = $region21
    $region20: #{tpu_custom_call.1} parent=1 // pred_region
      %s48 = ssub.s32 1024, 1024
      %49 = vsyncadd [#allocation5], %s48
      %s50 = sshll.u32 [#allocation6], 4
      %s51 = int_to_ptr.vmem [resolvable:$true] %s50
      %56 = dma.hbm_to_vmem [thread:$0]  %s4, 1024, %s51, [#allocation5], 128, 128, 8
    $region21: #{tpu_custom_call.1} parent=1 // pred_fallthru
      _
    // Predicated region
    $region22: #{tpu_custom_call.1} parent=1 // pred_check
      _
    $region23: #{tpu_custom_call.1} parent=1 // pred_check_branch
      %58 = sbr.rel (0) target = $region25
    $region24: #{tpu_custom_call.1} parent=1 // pred_region
      %s60 = ssub.s32 1024, 1024
      %61 = vsyncadd [#allocation8], %s60
      %s62 = sshll.u32 [#allocation7], 4
      %s63 = int_to_ptr.vmem [resolvable:$true] %s62
      %68 = dma.hbm_to_vmem [thread:$0]  %s5, 1024, %s63, [#allocation8], 128, 128, 8
    $region25: #{tpu_custom_call.1} parent=1 // pred_fallthru
      _
    // Predicated region
    $region26: #{tpu_custom_call.1} parent=1 // pred_check
      _
    $region27: #{tpu_custom_call.1} parent=1 // pred_check_branch
      %70 = sbr.rel (0) target = $region29
    $region28: #{tpu_custom_call.1} parent=1 // pred_region
      _
    $region29: #{tpu_custom_call.1} parent=1 // pred_fallthru
      _
    // Predicated region
    $region30: #{tpu_custom_call.1} parent=1 // pred_check
      _
    $region31: #{tpu_custom_call.1} parent=1 // pred_check_branch
      %72 = sbr.rel (0) target = $region33
    $region32: #{tpu_custom_call.1} parent=1 // pred_region
      _
    $region33: #{tpu_custom_call.1} parent=1 // pred_fallthru
      _
    // Predicated region
    $region34: #{tpu_custom_call.1} parent=1 // pred_check
      _
    $region35: #{tpu_custom_call.1} parent=1 // pred_check_branch
      %74 = sbr.rel (0) target = $region37
    $region36: #{tpu_custom_call.1} parent=1 // pred_region
      _
    $region37: #{tpu_custom_call.1} parent=1 // pred_fallthru
      _
    // Predicated region
    $region38: #{tpu_custom_call.1} parent=1 // pred_check
      _
    $region39: #{tpu_custom_call.1} parent=1 // pred_check_branch
      %76 = sbr.rel (0) target = $region41
    $region40: #{tpu_custom_call.1} parent=1 // pred_region
      %77 = dma.done [#allocation3], 512
    $region41: #{tpu_custom_call.1} parent=1 // pred_fallthru
      _
    // Predicated region
    $region42: #{tpu_custom_call.1} parent=1 // pred_check
      _
    $region43: #{tpu_custom_call.1} parent=1 // pred_check_branch
      %79 = sbr.rel (0) target = $region45
    $region44: #{tpu_custom_call.1} parent=1 // pred_region
      %80 = dma.done [#allocation5], 512
    $region45: #{tpu_custom_call.1} parent=1 // pred_fallthru
      _
    // Predicated region
    $region46: #{tpu_custom_call.1} parent=1 // pred_check
      _
    $region47: #{tpu_custom_call.1} parent=1 // pred_check_branch
      %82 = sbr.rel (0) target = $region49
    $region48: #{tpu_custom_call.1} parent=1 // pred_region
      %83 = dma.done [#allocation5], 1024
    $region49: #{tpu_custom_call.1} parent=1 // pred_fallthru
      _
    // Predicated region
    $region50: #{tpu_custom_call.1} parent=1 // pred_check
      _
    $region51: #{tpu_custom_call.1} parent=1 // pred_check_branch
      %85 = sbr.rel (0) target = $region53
    $region52: #{tpu_custom_call.1} parent=1 // pred_region
      %86 = dma.done [#allocation8], 1024
    $region53: #{tpu_custom_call.1} parent=1 // pred_fallthru
      _
    %v87 = vld [vmem:[#allocation2] sm:$0xf]
    %s88 = scalar_lea.vmem [#allocation2], 4
    %v89 = vld [vmem:[%s88] sm:$0xf]
    %s90 = scalar_lea.vmem [#allocation2], 8
    %v91 = vld [vmem:[%s90] sm:$0xf]
    %s92 = scalar_lea.vmem [#allocation2], 12
    %v93 = vld [vmem:[%s92] sm:$0xf]
    %s94 = scalar_lea.vmem [#allocation2], 16
    %v95 = vld [vmem:[%s94] sm:$0xf]
    %s96 = scalar_lea.vmem [#allocation2], 20
    %v97 = vld [vmem:[%s96] sm:$0xf]
    %s98 = scalar_lea.vmem [#allocation2], 24
    %v99 = vld [vmem:[%s98] sm:$0xf]
    %s100 = scalar_lea.vmem [#allocation2], 28
    %v101 = vld [vmem:[%s100] sm:$0xf]
    %v102 = vld [vmem:[%s3] sm:$0x1]
    %v103 = vld [vmem:[#allocation4] sm:$0xff]
    %v104 = vld [vmem:[#allocation4 + $0x8] sm:$0xff]
    %v105 = vld [vmem:[#allocation4 + $0x10] sm:$0xff]
    %v106 = vld [vmem:[#allocation4 + $0x18] sm:$0xff]
    %vm107 = vcmask 261120
    %v109 = vsel %vm107, %v87, 0
    %111 = vmatprep.subr.mxu0 0.0
    %112 = vmatpush1.msra.mxu0 %v103
    %113 = vmatprep.subr.mxu0 0.0
    %114 = vmatpush1.msra.mxu0 %v104
    %115 = vmatprep.subr.mxu0 0.0
    %116 = vmatpush1.msra.mxu0 %v105
    %117 = vmatprep.subr.mxu0 0.0
    %118 = vmatpush1.msra.mxu0 %v106
    %119 = vmatprep.subr.mxu0 0.0
    %120 = vmatpush1.msra.mxu0 0.0
    %121 = vmatprep.subr.mxu0 0.0
    %122 = vmatpush1.msra.mxu0 0.0
    %123 = vmatprep.subr.mxu0 0.0
    %124 = vmatpush1.msra.mxu0 0.0
    %125 = vmatprep.subr.mxu0 0.0
    %126 = vmatpush1.msra.mxu0 0.0
    %127 = vmatprep.subr.mxu0 0.0
    %128 = vmatpush1.msra.mxu0 0.0
    %129 = vmatprep.subr.mxu0 0.0
    %130 = vmatpush1.msra.mxu0 0.0
    %131 = vmatprep.subr.mxu0 0.0
    %132 = vmatpush1.msra.mxu0 0.0
    %133 = vmatprep.subr.mxu0 0.0
    %134 = vmatpush1.msra.mxu0 0.0
    %135 = vmatprep.subr.mxu0 0.0
    %136 = vmatpush1.msra.mxu0 0.0
    %137 = vmatprep.subr.mxu0 0.0
    %138 = vmatpush1.msra.mxu0 0.0
    %139 = vmatprep.subr.mxu0 0.0
    %140 = vmatpush1.msra.mxu0 0.0
    %141 = vmatprep.subr.mxu0 0.0
    %142 = vmatpush1.msra.mxu0 0.0
    %143 = vmatprep.subr.mxu0 0.0
    %144 = vmatpush1.msra.mxu0 0.0
    %145 = vmatprep.subr.mxu0 0.0
    %146 = vmatpush1.msra.mxu0 0.0
    %147 = vmatprep.subr.mxu0 0.0
    %148 = vmatpush1.msra.mxu0 0.0
    %149 = vmatprep.subr.mxu0 0.0
    %150 = vmatpush1.msra.mxu0 0.0
    %151 = vmatprep.subr.mxu0 0.0
    %152 = vmatpush1.msra.mxu0 0.0
    %153 = vmatprep.subr.mxu0 0.0
    %154 = vmatpush1.msra.mxu0 0.0
    %155 = vmatprep.subr.mxu0 0.0
    %156 = vmatpush1.msra.mxu0 0.0
    %157 = vmatprep.subr.mxu0 0.0
    %158 = vmatpush1.msra.mxu0 0.0
    %159 = vmatprep.subr.mxu0 0.0
    %160 = vmatpush1.msra.mxu0 0.0
    %161 = vmatprep.subr.mxu0 0.0
    %162 = vmatpush1.msra.mxu0 0.0
    %163 = vmatprep.subr.mxu0 0.0
    %164 = vmatpush1.msra.mxu0 0.0
    %165 = vmatprep.subr.mxu0 0.0
    %166 = vmatpush1.msra.mxu0 0.0
    %167 = vmatprep.subr.mxu0 0.0
    %168 = vmatpush1.msra.mxu0 0.0
    %169 = vmatprep.subr.mxu0 0.0
    %170 = vmatpush1.msra.mxu0 0.0
    %171 = vmatprep.subr.mxu0 0.0
    %172 = vmatpush1.msra.mxu0 0.0
    %173 = vmatprep.subr.mxu0 0.0
    %174 = vmatpush1.msra.mxu0 0.0
    %175 = vmatprep.mubr.f32.mxu0 0.0
    %176 = vmatmul.mubr.f32.gmra.mrb[0].mxu0 %v109
    %v177 = vpop.f32.mrb[0].mxu0
    %v178 = vadd.f32 0.0, %v177
    %v179 = vpop.f32.mrb[0].mxu0
    %180 = vdwg.mxu0
    %v182 = vlaneseq
    %v183 = vshrl.u32 %v182, 7
    %v184 = vsub.s32 0, %v183
    %v185 = vrot.slane %v102, %v184
    %v187 = vadd.f32 %v185, %v178
    %v189 = vsel %vm107, %v89, 0
    %191 = vmatprep.subr.mxu0 0.0
    %192 = vmatpush1.msra.mxu0 %v103
    %193 = vmatprep.subr.mxu0 0.0
    %194 = vmatpush1.msra.mxu0 %v104
    %195 = vmatprep.subr.mxu0 0.0
    %196 = vmatpush1.msra.mxu0 %v105
    %197 = vmatprep.subr.mxu0 0.0
    %198 = vmatpush1.msra.mxu0 %v106
    %199 = vmatprep.subr.mxu0 0.0
    %200 = vmatpush1.msra.mxu0 0.0
    %201 = vmatprep.subr.mxu0 0.0
    %202 = vmatpush1.msra.mxu0 0.0
    %203 = vmatprep.subr.mxu0 0.0
    %204 = vmatpush1.msra.mxu0 0.0
    %205 = vmatprep.subr.mxu0 0.0
    %206 = vmatpush1.msra.mxu0 0.0
    %207 = vmatprep.subr.mxu0 0.0
    %208 = vmatpush1.msra.mxu0 0.0
    %209 = vmatprep.subr.mxu0 0.0
    %210 = vmatpush1.msra.mxu0 0.0
    %211 = vmatprep.subr.mxu0 0.0
    %212 = vmatpush1.msra.mxu0 0.0
    %213 = vmatprep.subr.mxu0 0.0
    %214 = vmatpush1.msra.mxu0 0.0
    %215 = vmatprep.subr.mxu0 0.0
    %216 = vmatpush1.msra.mxu0 0.0
    %217 = vmatprep.subr.mxu0 0.0
    %218 = vmatpush1.msra.mxu0 0.0
    %219 = vmatprep.subr.mxu0 0.0
    %220 = vmatpush1.msra.mxu0 0.0
    %221 = vmatprep.subr.mxu0 0.0
    %222 = vmatpush1.msra.mxu0 0.0
    %223 = vmatprep.subr.mxu0 0.0
    %224 = vmatpush1.msra.mxu0 0.0
    %225 = vmatprep.subr.mxu0 0.0
    %226 = vmatpush1.msra.mxu0 0.0
    %227 = vmatprep.subr.mxu0 0.0
    %228 = vmatpush1.msra.mxu0 0.0
    %229 = vmatprep.subr.mxu0 0.0
    %230 = vmatpush1.msra.mxu0 0.0
    %231 = vmatprep.subr.mxu0 0.0
    %232 = vmatpush1.msra.mxu0 0.0
    %233 = vmatprep.subr.mxu0 0.0
    %234 = vmatpush1.msra.mxu0 0.0
    %235 = vmatprep.subr.mxu0 0.0
    %236 = vmatpush1.msra.mxu0 0.0
    %237 = vmatprep.subr.mxu0 0.0
    %238 = vmatpush1.msra.mxu0 0.0
    %239 = vmatprep.subr.mxu0 0.0
    %240 = vmatpush1.msra.mxu0 0.0
    %241 = vmatprep.subr.mxu0 0.0
    %242 = vmatpush1.msra.mxu0 0.0
    %243 = vmatprep.subr.mxu0 0.0
    %244 = vmatpush1.msra.mxu0 0.0
    %245 = vmatprep.subr.mxu0 0.0
    %246 = vmatpush1.msra.mxu0 0.0
    %247 = vmatprep.subr.mxu0 0.0
    %248 = vmatpush1.msra.mxu0 0.0
    %249 = vmatprep.subr.mxu0 0.0
    %250 = vmatpush1.msra.mxu0 0.0
    %251 = vmatprep.subr.mxu0 0.0
    %252 = vmatpush1.msra.mxu0 0.0
    %253 = vmatprep.subr.mxu0 0.0
    %254 = vmatpush1.msra.mxu0 0.0
    %255 = vmatprep.mubr.f32.mxu0 0.0
    %256 = vmatmul.mubr.f32.gmra.mrb[0].mxu0 %v189
    %v257 = vpop.f32.mrb[0].mxu0
    %v258 = vadd.f32 0.0, %v257
    %v259 = vpop.f32.mrb[0].mxu0
    %260 = vdwg.mxu0
    %v261 = vadd.f32 %v185, %v258
    %v263 = vsel %vm107, %v91, 0
    %265 = vmatprep.subr.mxu0 0.0
    %266 = vmatpush1.msra.mxu0 %v103
    %267 = vmatprep.subr.mxu0 0.0
    %268 = vmatpush1.msra.mxu0 %v104
    %269 = vmatprep.subr.mxu0 0.0
    %270 = vmatpush1.msra.mxu0 %v105
    %271 = vmatprep.subr.mxu0 0.0
    %272 = vmatpush1.msra.mxu0 %v106
    %273 = vmatprep.subr.mxu0 0.0
    %274 = vmatpush1.msra.mxu0 0.0
    %275 = vmatprep.subr.mxu0 0.0
    %276 = vmatpush1.msra.mxu0 0.0
    %277 = vmatprep.subr.mxu0 0.0
    %278 = vmatpush1.msra.mxu0 0.0
    %279 = vmatprep.subr.mxu0 0.0
    %280 = vmatpush1.msra.mxu0 0.0
    %281 = vmatprep.subr.mxu0 0.0
    %282 = vmatpush1.msra.mxu0 0.0
    %283 = vmatprep.subr.mxu0 0.0
    %284 = vmatpush1.msra.mxu0 0.0
    %285 = vmatprep.subr.mxu0 0.0
    %286 = vmatpush1.msra.mxu0 0.0
    %287 = vmatprep.subr.mxu0 0.0
    %288 = vmatpush1.msra.mxu0 0.0
    %289 = vmatprep.subr.mxu0 0.0
    %290 = vmatpush1.msra.mxu0 0.0
    %291 = vmatprep.subr.mxu0 0.0
    %292 = vmatpush1.msra.mxu0 0.0
    %293 = vmatprep.subr.mxu0 0.0
    %294 = vmatpush1.msra.mxu0 0.0
    %295 = vmatprep.subr.mxu0 0.0
    %296 = vmatpush1.msra.mxu0 0.0
    %297 = vmatprep.subr.mxu0 0.0
    %298 = vmatpush1.msra.mxu0 0.0
    %299 = vmatprep.subr.mxu0 0.0
    %300 = vmatpush1.msra.mxu0 0.0
    %301 = vmatprep.subr.mxu0 0.0
    %302 = vmatpush1.msra.mxu0 0.0
    %303 = vmatprep.subr.mxu0 0.0
    %304 = vmatpush1.msra.mxu0 0.0
    %305 = vmatprep.subr.mxu0 0.0
    %306 = vmatpush1.msra.mxu0 0.0
    %307 = vmatprep.subr.mxu0 0.0
    %308 = vmatpush1.msra.mxu0 0.0
    %309 = vmatprep.subr.mxu0 0.0
    %310 = vmatpush1.msra.mxu0 0.0
    %311 = vmatprep.subr.mxu0 0.0
    %312 = vmatpush1.msra.mxu0 0.0
    %313 = vmatprep.subr.mxu0 0.0
    %314 = vmatpush1.msra.mxu0 0.0
    %315 = vmatprep.subr.mxu0 0.0
    %316 = vmatpush1.msra.mxu0 0.0
    %317 = vmatprep.subr.mxu0 0.0
    %318 = vmatpush1.msra.mxu0 0.0
    %319 = vmatprep.subr.mxu0 0.0
    %320 = vmatpush1.msra.mxu0 0.0
    %321 = vmatprep.subr.mxu0 0.0
    %322 = vmatpush1.msra.mxu0 0.0
    %323 = vmatprep.subr.mxu0 0.0
    %324 = vmatpush1.msra.mxu0 0.0
    %325 = vmatprep.subr.mxu0 0.0
    %326 = vmatpush1.msra.mxu0 0.0
    %327 = vmatprep.subr.mxu0 0.0
    %328 = vmatpush1.msra.mxu0 0.0
    %329 = vmatprep.mubr.f32.mxu0 0.0
    %330 = vmatmul.mubr.f32.gmra.mrb[0].mxu0 %v263
    %v331 = vpop.f32.mrb[0].mxu0
    %v332 = vadd.f32 0.0, %v331
    %v333 = vpop.f32.mrb[0].mxu0
    %334 = vdwg.mxu0
    %v335 = vadd.f32 %v185, %v332
    %v337 = vsel %vm107, %v93, 0
    %339 = vmatprep.subr.mxu0 0.0
    %340 = vmatpush1.msra.mxu0 %v103
    %341 = vmatprep.subr.mxu0 0.0
    %342 = vmatpush1.msra.mxu0 %v104
    %343 = vmatprep.subr.mxu0 0.0
    %344 = vmatpush1.msra.mxu0 %v105
    %345 = vmatprep.subr.mxu0 0.0
    %346 = vmatpush1.msra.mxu0 %v106
    %347 = vmatprep.subr.mxu0 0.0
    %348 = vmatpush1.msra.mxu0 0.0
    %349 = vmatprep.subr.mxu0 0.0
    %350 = vmatpush1.msra.mxu0 0.0
    %351 = vmatprep.subr.mxu0 0.0
    %352 = vmatpush1.msra.mxu0 0.0
    %353 = vmatprep.subr.mxu0 0.0
    %354 = vmatpush1.msra.mxu0 0.0
    %355 = vmatprep.subr.mxu0 0.0
    %356 = vmatpush1.msra.mxu0 0.0
    %357 = vmatprep.subr.mxu0 0.0
    %358 = vmatpush1.msra.mxu0 0.0
    %359 = vmatprep.subr.mxu0 0.0
    %360 = vmatpush1.msra.mxu0 0.0
    %361 = vmatprep.subr.mxu0 0.0
    %362 = vmatpush1.msra.mxu0 0.0
    %363 = vmatprep.subr.mxu0 0.0
    %364 = vmatpush1.msra.mxu0 0.0
    %365 = vmatprep.subr.mxu0 0.0
    %366 = vmatpush1.msra.mxu0 0.0
    %367 = vmatprep.subr.mxu0 0.0
    %368 = vmatpush1.msra.mxu0 0.0
    %369 = vmatprep.subr.mxu0 0.0
    %370 = vmatpush1.msra.mxu0 0.0
    %371 = vmatprep.subr.mxu0 0.0
    %372 = vmatpush1.msra.mxu0 0.0
    %373 = vmatprep.subr.mxu0 0.0
    %374 = vmatpush1.msra.mxu0 0.0
    %375 = vmatprep.subr.mxu0 0.0
    %376 = vmatpush1.msra.mxu0 0.0
    %377 = vmatprep.subr.mxu0 0.0
    %378 = vmatpush1.msra.mxu0 0.0
    %379 = vmatprep.subr.mxu0 0.0
    %380 = vmatpush1.msra.mxu0 0.0
    %381 = vmatprep.subr.mxu0 0.0
    %382 = vmatpush1.msra.mxu0 0.0
    %383 = vmatprep.subr.mxu0 0.0
    %384 = vmatpush1.msra.mxu0 0.0
    %385 = vmatprep.subr.mxu0 0.0
    %386 = vmatpush1.msra.mxu0 0.0
    %387 = vmatprep.subr.mxu0 0.0
    %388 = vmatpush1.msra.mxu0 0.0
    %389 = vmatprep.subr.mxu0 0.0
    %390 = vmatpush1.msra.mxu0 0.0
    %391 = vmatprep.subr.mxu0 0.0
    %392 = vmatpush1.msra.mxu0 0.0
    %393 = vmatprep.subr.mxu0 0.0
    %394 = vmatpush1.msra.mxu0 0.0
    %395 = vmatprep.subr.mxu0 0.0
    %396 = vmatpush1.msra.mxu0 0.0
    %397 = vmatprep.subr.mxu0 0.0
    %398 = vmatpush1.msra.mxu0 0.0
    %399 = vmatprep.subr.mxu0 0.0
    %400 = vmatpush1.msra.mxu0 0.0
    %401 = vmatprep.subr.mxu0 0.0
    %402 = vmatpush1.msra.mxu0 0.0
    %403 = vmatprep.mubr.f32.mxu0 0.0
    %404 = vmatmul.mubr.f32.gmra.mrb[0].mxu0 %v337
    %v405 = vpop.f32.mrb[0].mxu0
    %v406 = vadd.f32 0.0, %v405
    %v407 = vpop.f32.mrb[0].mxu0
    %408 = vdwg.mxu0
    %v409 = vadd.f32 %v185, %v406
    %v411 = vsel %vm107, %v95, 0
    %413 = vmatprep.subr.mxu0 0.0
    %414 = vmatpush1.msra.mxu0 %v103
    %415 = vmatprep.subr.mxu0 0.0
    %416 = vmatpush1.msra.mxu0 %v104
    %417 = vmatprep.subr.mxu0 0.0
    %418 = vmatpush1.msra.mxu0 %v105
    %419 = vmatprep.subr.mxu0 0.0
    %420 = vmatpush1.msra.mxu0 %v106
    %421 = vmatprep.subr.mxu0 0.0
    %422 = vmatpush1.msra.mxu0 0.0
    %423 = vmatprep.subr.mxu0 0.0
    %424 = vmatpush1.msra.mxu0 0.0
    %425 = vmatprep.subr.mxu0 0.0
    %426 = vmatpush1.msra.mxu0 0.0
    %427 = vmatprep.subr.mxu0 0.0
    %428 = vmatpush1.msra.mxu0 0.0
    %429 = vmatprep.subr.mxu0 0.0
    %430 = vmatpush1.msra.mxu0 0.0
    %431 = vmatprep.subr.mxu0 0.0
    %432 = vmatpush1.msra.mxu0 0.0
    %433 = vmatprep.subr.mxu0 0.0
    %434 = vmatpush1.msra.mxu0 0.0
    %435 = vmatprep.subr.mxu0 0.0
    %436 = vmatpush1.msra.mxu0 0.0
    %437 = vmatprep.subr.mxu0 0.0
    %438 = vmatpush1.msra.mxu0 0.0
    %439 = vmatprep.subr.mxu0 0.0
    %440 = vmatpush1.msra.mxu0 0.0
    %441 = vmatprep.subr.mxu0 0.0
    %442 = vmatpush1.msra.mxu0 0.0
    %443 = vmatprep.subr.mxu0 0.0
    %444 = vmatpush1.msra.mxu0 0.0
    %445 = vmatprep.subr.mxu0 0.0
    %446 = vmatpush1.msra.mxu0 0.0
    %447 = vmatprep.subr.mxu0 0.0
    %448 = vmatpush1.msra.mxu0 0.0
    %449 = vmatprep.subr.mxu0 0.0
    %450 = vmatpush1.msra.mxu0 0.0
    %451 = vmatprep.subr.mxu0 0.0
    %452 = vmatpush1.msra.mxu0 0.0
    %453 = vmatprep.subr.mxu0 0.0
    %454 = vmatpush1.msra.mxu0 0.0
    %455 = vmatprep.subr.mxu0 0.0
    %456 = vmatpush1.msra.mxu0 0.0
    %457 = vmatprep.subr.mxu0 0.0
    %458 = vmatpush1.msra.mxu0 0.0
    %459 = vmatprep.subr.mxu0 0.0
    %460 = vmatpush1.msra.mxu0 0.0
    %461 = vmatprep.subr.mxu0 0.0
    %462 = vmatpush1.msra.mxu0 0.0
    %463 = vmatprep.subr.mxu0 0.0
    %464 = vmatpush1.msra.mxu0 0.0
    %465 = vmatprep.subr.mxu0 0.0
    %466 = vmatpush1.msra.mxu0 0.0
    %467 = vmatprep.subr.mxu0 0.0
    %468 = vmatpush1.msra.mxu0 0.0
    %469 = vmatprep.subr.mxu0 0.0
    %470 = vmatpush1.msra.mxu0 0.0
    %471 = vmatprep.subr.mxu0 0.0
    %472 = vmatpush1.msra.mxu0 0.0
    %473 = vmatprep.subr.mxu0 0.0
    %474 = vmatpush1.msra.mxu0 0.0
    %475 = vmatprep.subr.mxu0 0.0
    %476 = vmatpush1.msra.mxu0 0.0
    %477 = vmatprep.mubr.f32.mxu0 0.0
    %478 = vmatmul.mubr.f32.gmra.mrb[0].mxu0 %v411
    %v479 = vpop.f32.mrb[0].mxu0
    %v480 = vadd.f32 0.0, %v479
    %v481 = vpop.f32.mrb[0].mxu0
    %482 = vdwg.mxu0
    %v483 = vadd.f32 %v185, %v480
    %v485 = vsel %vm107, %v97, 0
    %487 = vmatprep.subr.mxu0 0.0
    %488 = vmatpush1.msra.mxu0 %v103
    %489 = vmatprep.subr.mxu0 0.0
    %490 = vmatpush1.msra.mxu0 %v104
    %491 = vmatprep.subr.mxu0 0.0
    %492 = vmatpush1.msra.mxu0 %v105
    %493 = vmatprep.subr.mxu0 0.0
    %494 = vmatpush1.msra.mxu0 %v106
    %495 = vmatprep.subr.mxu0 0.0
    %496 = vmatpush1.msra.mxu0 0.0
    %497 = vmatprep.subr.mxu0 0.0
    %498 = vmatpush1.msra.mxu0 0.0
    %499 = vmatprep.subr.mxu0 0.0
    %500 = vmatpush1.msra.mxu0 0.0
    %501 = vmatprep.subr.mxu0 0.0
    %502 = vmatpush1.msra.mxu0 0.0
    %503 = vmatprep.subr.mxu0 0.0
    %504 = vmatpush1.msra.mxu0 0.0
    %505 = vmatprep.subr.mxu0 0.0
    %506 = vmatpush1.msra.mxu0 0.0
    %507 = vmatprep.subr.mxu0 0.0
    %508 = vmatpush1.msra.mxu0 0.0
    %509 = vmatprep.subr.mxu0 0.0
    %510 = vmatpush1.msra.mxu0 0.0
    %511 = vmatprep.subr.mxu0 0.0
    %512 = vmatpush1.msra.mxu0 0.0
    %513 = vmatprep.subr.mxu0 0.0
    %514 = vmatpush1.msra.mxu0 0.0
    %515 = vmatprep.subr.mxu0 0.0
    %516 = vmatpush1.msra.mxu0 0.0
    %517 = vmatprep.subr.mxu0 0.0
    %518 = vmatpush1.msra.mxu0 0.0
    %519 = vmatprep.subr.mxu0 0.0
    %520 = vmatpush1.msra.mxu0 0.0
    %521 = vmatprep.subr.mxu0 0.0
    %522 = vmatpush1.msra.mxu0 0.0
    %523 = vmatprep.subr.mxu0 0.0
    %524 = vmatpush1.msra.mxu0 0.0
    %525 = vmatprep.subr.mxu0 0.0
    %526 = vmatpush1.msra.mxu0 0.0
    %527 = vmatprep.subr.mxu0 0.0
    %528 = vmatpush1.msra.mxu0 0.0
    %529 = vmatprep.subr.mxu0 0.0
    %530 = vmatpush1.msra.mxu0 0.0
    %531 = vmatprep.subr.mxu0 0.0
    %532 = vmatpush1.msra.mxu0 0.0
    %533 = vmatprep.subr.mxu0 0.0
    %534 = vmatpush1.msra.mxu0 0.0
    %535 = vmatprep.subr.mxu0 0.0
    %536 = vmatpush1.msra.mxu0 0.0
    %537 = vmatprep.subr.mxu0 0.0
    %538 = vmatpush1.msra.mxu0 0.0
    %539 = vmatprep.subr.mxu0 0.0
    %540 = vmatpush1.msra.mxu0 0.0
    %541 = vmatprep.subr.mxu0 0.0
    %542 = vmatpush1.msra.mxu0 0.0
    %543 = vmatprep.subr.mxu0 0.0
    %544 = vmatpush1.msra.mxu0 0.0
    %545 = vmatprep.subr.mxu0 0.0
    %546 = vmatpush1.msra.mxu0 0.0
    %547 = vmatprep.subr.mxu0 0.0
    %548 = vmatpush1.msra.mxu0 0.0
    %549 = vmatprep.subr.mxu0 0.0
    %550 = vmatpush1.msra.mxu0 0.0
    %551 = vmatprep.mubr.f32.mxu0 0.0
    %552 = vmatmul.mubr.f32.gmra.mrb[0].mxu0 %v485
    %v553 = vpop.f32.mrb[0].mxu0
    %v554 = vadd.f32 0.0, %v553
    %v555 = vpop.f32.mrb[0].mxu0
    %556 = vdwg.mxu0
    %v557 = vadd.f32 %v185, %v554
    %v559 = vsel %vm107, %v99, 0
    %561 = vmatprep.subr.mxu0 0.0
    %562 = vmatpush1.msra.mxu0 %v103
    %563 = vmatprep.subr.mxu0 0.0
    %564 = vmatpush1.msra.mxu0 %v104
    %565 = vmatprep.subr.mxu0 0.0
    %566 = vmatpush1.msra.mxu0 %v105
    %567 = vmatprep.subr.mxu0 0.0
    %568 = vmatpush1.msra.mxu0 %v106
    %569 = vmatprep.subr.mxu0 0.0
    %570 = vmatpush1.msra.mxu0 0.0
    %571 = vmatprep.subr.mxu0 0.0
    %572 = vmatpush1.msra.mxu0 0.0
    %573 = vmatprep.subr.mxu0 0.0
    %574 = vmatpush1.msra.mxu0 0.0
    %575 = vmatprep.subr.mxu0 0.0
    %576 = vmatpush1.msra.mxu0 0.0
    %577 = vmatprep.subr.mxu0 0.0
    %578 = vmatpush1.msra.mxu0 0.0
    %579 = vmatprep.subr.mxu0 0.0
    %580 = vmatpush1.msra.mxu0 0.0
    %581 = vmatprep.subr.mxu0 0.0
    %582 = vmatpush1.msra.mxu0 0.0
    %583 = vmatprep.subr.mxu0 0.0
    %584 = vmatpush1.msra.mxu0 0.0
    %585 = vmatprep.subr.mxu0 0.0
    %586 = vmatpush1.msra.mxu0 0.0
    %587 = vmatprep.subr.mxu0 0.0
    %588 = vmatpush1.msra.mxu0 0.0
    %589 = vmatprep.subr.mxu0 0.0
    %590 = vmatpush1.msra.mxu0 0.0
    %591 = vmatprep.subr.mxu0 0.0
    %592 = vmatpush1.msra.mxu0 0.0
    %593 = vmatprep.subr.mxu0 0.0
    %594 = vmatpush1.msra.mxu0 0.0
    %595 = vmatprep.subr.mxu0 0.0
    %596 = vmatpush1.msra.mxu0 0.0
    %597 = vmatprep.subr.mxu0 0.0
    %598 = vmatpush1.msra.mxu0 0.0
    %599 = vmatprep.subr.mxu0 0.0
    %600 = vmatpush1.msra.mxu0 0.0
    %601 = vmatprep.subr.mxu0 0.0
    %602 = vmatpush1.msra.mxu0 0.0
    %603 = vmatprep.subr.mxu0 0.0
    %604 = vmatpush1.msra.mxu0 0.0
    %605 = vmatprep.subr.mxu0 0.0
    %606 = vmatpush1.msra.mxu0 0.0
    %607 = vmatprep.subr.mxu0 0.0
    %608 = vmatpush1.msra.mxu0 0.0
    %609 = vmatprep.subr.mxu0 0.0
    %610 = vmatpush1.msra.mxu0 0.0
    %611 = vmatprep.subr.mxu0 0.0
    %612 = vmatpush1.msra.mxu0 0.0
    %613 = vmatprep.subr.mxu0 0.0
    %614 = vmatpush1.msra.mxu0 0.0
    %615 = vmatprep.subr.mxu0 0.0
    %616 = vmatpush1.msra.mxu0 0.0
    %617 = vmatprep.subr.mxu0 0.0
    %618 = vmatpush1.msra.mxu0 0.0
    %619 = vmatprep.subr.mxu0 0.0
    %620 = vmatpush1.msra.mxu0 0.0
    %621 = vmatprep.subr.mxu0 0.0
    %622 = vmatpush1.msra.mxu0 0.0
    %623 = vmatprep.subr.mxu0 0.0
    %624 = vmatpush1.msra.mxu0 0.0
    %625 = vmatprep.mubr.f32.mxu0 0.0
    %626 = vmatmul.mubr.f32.gmra.mrb[0].mxu0 %v559
    %v627 = vpop.f32.mrb[0].mxu0
    %v628 = vadd.f32 0.0, %v627
    %v629 = vpop.f32.mrb[0].mxu0
    %630 = vdwg.mxu0
    %v631 = vadd.f32 %v185, %v628
    %v633 = vsel %vm107, %v101, 0
    %635 = vmatprep.subr.mxu0 0.0
    %636 = vmatpush1.msra.mxu0 %v103
    %637 = vmatprep.subr.mxu0 0.0
    %638 = vmatpush1.msra.mxu0 %v104
    %639 = vmatprep.subr.mxu0 0.0
    %640 = vmatpush1.msra.mxu0 %v105
    %641 = vmatprep.subr.mxu0 0.0
    %642 = vmatpush1.msra.mxu0 %v106
    %643 = vmatprep.subr.mxu0 0.0
    %644 = vmatpush1.msra.mxu0 0.0
    %645 = vmatprep.subr.mxu0 0.0
    %646 = vmatpush1.msra.mxu0 0.0
    %647 = vmatprep.subr.mxu0 0.0
    %648 = vmatpush1.msra.mxu0 0.0
    %649 = vmatprep.subr.mxu0 0.0
    %650 = vmatpush1.msra.mxu0 0.0
    %651 = vmatprep.subr.mxu0 0.0
    %652 = vmatpush1.msra.mxu0 0.0
    %653 = vmatprep.subr.mxu0 0.0
    %654 = vmatpush1.msra.mxu0 0.0
    %655 = vmatprep.subr.mxu0 0.0
    %656 = vmatpush1.msra.mxu0 0.0
    %657 = vmatprep.subr.mxu0 0.0
    %658 = vmatpush1.msra.mxu0 0.0
    %659 = vmatprep.subr.mxu0 0.0
    %660 = vmatpush1.msra.mxu0 0.0
    %661 = vmatprep.subr.mxu0 0.0
    %662 = vmatpush1.msra.mxu0 0.0
    %663 = vmatprep.subr.mxu0 0.0
    %664 = vmatpush1.msra.mxu0 0.0
    %665 = vmatprep.subr.mxu0 0.0
    %666 = vmatpush1.msra.mxu0 0.0
    %667 = vmatprep.subr.mxu0 0.0
    %668 = vmatpush1.msra.mxu0 0.0
    %669 = vmatprep.subr.mxu0 0.0
    %670 = vmatpush1.msra.mxu0 0.0
    %671 = vmatprep.subr.mxu0 0.0
    %672 = vmatpush1.msra.mxu0 0.0
    %673 = vmatprep.subr.mxu0 0.0
    %674 = vmatpush1.msra.mxu0 0.0
    %675 = vmatprep.subr.mxu0 0.0
    %676 = vmatpush1.msra.mxu0 0.0
    %677 = vmatprep.subr.mxu0 0.0
    %678 = vmatpush1.msra.mxu0 0.0
    %679 = vmatprep.subr.mxu0 0.0
    %680 = vmatpush1.msra.mxu0 0.0
    %681 = vmatprep.subr.mxu0 0.0
    %682 = vmatpush1.msra.mxu0 0.0
    %683 = vmatprep.subr.mxu0 0.0
    %684 = vmatpush1.msra.mxu0 0.0
    %685 = vmatprep.subr.mxu0 0.0
    %686 = vmatpush1.msra.mxu0 0.0
    %687 = vmatprep.subr.mxu0 0.0
    %688 = vmatpush1.msra.mxu0 0.0
    %689 = vmatprep.subr.mxu0 0.0
    %690 = vmatpush1.msra.mxu0 0.0
    %691 = vmatprep.subr.mxu0 0.0
    %692 = vmatpush1.msra.mxu0 0.0
    %693 = vmatprep.subr.mxu0 0.0
    %694 = vmatpush1.msra.mxu0 0.0
    %695 = vmatprep.subr.mxu0 0.0
    %696 = vmatpush1.msra.mxu0 0.0
    %697 = vmatprep.subr.mxu0 0.0
    %698 = vmatpush1.msra.mxu0 0.0
    %699 = vmatprep.mubr.f32.mxu0 0.0
    %700 = vmatmul.mubr.f32.gmra.mrb[0].mxu0 %v633
    %v701 = vpop.f32.mrb[0].mxu0
    %v702 = vadd.f32 0.0, %v701
    %v703 = vpop.f32.mrb[0].mxu0
    %704 = vdwg.mxu0
    %v705 = vadd.f32 %v185, %v702
    %v706 = vld [vmem:[%s2] sm:$0xff]
    %v707 = vld [vmem:[%s2 + $0x8] sm:$0xff]
    %v708 = vld [vmem:[%s2 + $0x10] sm:$0xff]
    %v709 = vld [vmem:[%s2 + $0x18] sm:$0xff]
    %v711 = vsel %vm107, 0.0, 0
    %713 = vmatprep.subr.mxu0 0.0
    %714 = vmatpush1.msra.mxu0 %v706
    %715 = vmatprep.subr.mxu0 0.0
    %716 = vmatpush1.msra.mxu0 %v707
    %717 = vmatprep.subr.mxu0 0.0
    %718 = vmatpush1.msra.mxu0 %v708
    %719 = vmatprep.subr.mxu0 0.0
    %720 = vmatpush1.msra.mxu0 %v709
    %721 = vmatprep.subr.mxu0 0.0
    %722 = vmatpush1.msra.mxu0 0.0
    %723 = vmatprep.subr.mxu0 0.0
    %724 = vmatpush1.msra.mxu0 0.0
    %725 = vmatprep.subr.mxu0 0.0
    %726 = vmatpush1.msra.mxu0 0.0
    %727 = vmatprep.subr.mxu0 0.0
    %728 = vmatpush1.msra.mxu0 0.0
    %729 = vmatprep.subr.mxu0 0.0
    %730 = vmatpush1.msra.mxu0 0.0
    %731 = vmatprep.subr.mxu0 0.0
    %732 = vmatpush1.msra.mxu0 0.0
    %733 = vmatprep.subr.mxu0 0.0
    %734 = vmatpush1.msra.mxu0 0.0
    %735 = vmatprep.subr.mxu0 0.0
    %736 = vmatpush1.msra.mxu0 0.0
    %737 = vmatprep.subr.mxu0 0.0
    %738 = vmatpush1.msra.mxu0 0.0
    %739 = vmatprep.subr.mxu0 0.0
    %740 = vmatpush1.msra.mxu0 0.0
    %741 = vmatprep.subr.mxu0 0.0
    %742 = vmatpush1.msra.mxu0 0.0
    %743 = vmatprep.subr.mxu0 0.0
    %744 = vmatpush1.msra.mxu0 0.0
    %745 = vmatprep.subr.mxu0 0.0
    %746 = vmatpush1.msra.mxu0 0.0
    %747 = vmatprep.subr.mxu0 0.0
    %748 = vmatpush1.msra.mxu0 0.0
    %749 = vmatprep.subr.mxu0 0.0
    %750 = vmatpush1.msra.mxu0 0.0
    %751 = vmatprep.subr.mxu0 0.0
    %752 = vmatpush1.msra.mxu0 0.0
    %753 = vmatprep.subr.mxu0 0.0
    %754 = vmatpush1.msra.mxu0 0.0
    %755 = vmatprep.subr.mxu0 0.0
    %756 = vmatpush1.msra.mxu0 0.0
    %757 = vmatprep.subr.mxu0 0.0
    %758 = vmatpush1.msra.mxu0 0.0
    %759 = vmatprep.subr.mxu0 0.0
    %760 = vmatpush1.msra.mxu0 0.0
    %761 = vmatprep.subr.mxu0 0.0
    %762 = vmatpush1.msra.mxu0 0.0
    %763 = vmatprep.subr.mxu0 0.0
    %764 = vmatpush1.msra.mxu0 0.0
    %765 = vmatprep.subr.mxu0 0.0
    %766 = vmatpush1.msra.mxu0 0.0
    %767 = vmatprep.subr.mxu0 0.0
    %768 = vmatpush1.msra.mxu0 0.0
    %769 = vmatprep.subr.mxu0 0.0
    %770 = vmatpush1.msra.mxu0 0.0
    %771 = vmatprep.subr.mxu0 0.0
    %772 = vmatpush1.msra.mxu0 0.0
    %773 = vmatprep.subr.mxu0 0.0
    %774 = vmatpush1.msra.mxu0 0.0
    %775 = vmatprep.subr.mxu0 0.0
    %776 = vmatpush1.msra.mxu0 0.0
    %777 = vmatprep.mubr.f32.mxu0 0.0
    %778 = vmatmul.mubr.f32.gmra.mrb[0].mxu0 %v711
    %v779 = vpop.f32.mrb[0].mxu0
    %v780 = vadd.f32 0.0, %v779
    %v781 = vpop.f32.mrb[0].mxu0
    %782 = vdwg.mxu0
    %v783 = vadd.f32 %v187, %v780
    %v784 = vtanh.pop %v783
    %v786 = vsel %vm107, %v784, 0
    %788 = vmatprep.subr.mxu0 0.0
    %789 = vmatpush1.msra.mxu0 %v706
    %790 = vmatprep.subr.mxu0 0.0
    %791 = vmatpush1.msra.mxu0 %v707
    %792 = vmatprep.subr.mxu0 0.0
    %793 = vmatpush1.msra.mxu0 %v708
    %794 = vmatprep.subr.mxu0 0.0
    %795 = vmatpush1.msra.mxu0 %v709
    %796 = vmatprep.subr.mxu0 0.0
    %797 = vmatpush1.msra.mxu0 0.0
    %798 = vmatprep.subr.mxu0 0.0
    %799 = vmatpush1.msra.mxu0 0.0
    %800 = vmatprep.subr.mxu0 0.0
    %801 = vmatpush1.msra.mxu0 0.0
    %802 = vmatprep.subr.mxu0 0.0
    %803 = vmatpush1.msra.mxu0 0.0
    %804 = vmatprep.subr.mxu0 0.0
    %805 = vmatpush1.msra.mxu0 0.0
    %806 = vmatprep.subr.mxu0 0.0
    %807 = vmatpush1.msra.mxu0 0.0
    %808 = vmatprep.subr.mxu0 0.0
    %809 = vmatpush1.msra.mxu0 0.0
    %810 = vmatprep.subr.mxu0 0.0
    %811 = vmatpush1.msra.mxu0 0.0
    %812 = vmatprep.subr.mxu0 0.0
    %813 = vmatpush1.msra.mxu0 0.0
    %814 = vmatprep.subr.mxu0 0.0
    %815 = vmatpush1.msra.mxu0 0.0
    %816 = vmatprep.subr.mxu0 0.0
    %817 = vmatpush1.msra.mxu0 0.0
    %818 = vmatprep.subr.mxu0 0.0
    %819 = vmatpush1.msra.mxu0 0.0
    %820 = vmatprep.subr.mxu0 0.0
    %821 = vmatpush1.msra.mxu0 0.0
    %822 = vmatprep.subr.mxu0 0.0
    %823 = vmatpush1.msra.mxu0 0.0
    %824 = vmatprep.subr.mxu0 0.0
    %825 = vmatpush1.msra.mxu0 0.0
    %826 = vmatprep.subr.mxu0 0.0
    %827 = vmatpush1.msra.mxu0 0.0
    %828 = vmatprep.subr.mxu0 0.0
    %829 = vmatpush1.msra.mxu0 0.0
    %830 = vmatprep.subr.mxu0 0.0
    %831 = vmatpush1.msra.mxu0 0.0
    %832 = vmatprep.subr.mxu0 0.0
    %833 = vmatpush1.msra.mxu0 0.0
    %834 = vmatprep.subr.mxu0 0.0
    %835 = vmatpush1.msra.mxu0 0.0
    %836 = vmatprep.subr.mxu0 0.0
    %837 = vmatpush1.msra.mxu0 0.0
    %838 = vmatprep.subr.mxu0 0.0
    %839 = vmatpush1.msra.mxu0 0.0
    %840 = vmatprep.subr.mxu0 0.0
    %841 = vmatpush1.msra.mxu0 0.0
    %842 = vmatprep.subr.mxu0 0.0
    %843 = vmatpush1.msra.mxu0 0.0
    %844 = vmatprep.subr.mxu0 0.0
    %845 = vmatpush1.msra.mxu0 0.0
    %846 = vmatprep.subr.mxu0 0.0
    %847 = vmatpush1.msra.mxu0 0.0
    %848 = vmatprep.subr.mxu0 0.0
    %849 = vmatpush1.msra.mxu0 0.0
    %850 = vmatprep.subr.mxu0 0.0
    %851 = vmatpush1.msra.mxu0 0.0
    %852 = vmatprep.mubr.f32.mxu0 0.0
    %853 = vmatmul.mubr.f32.gmra.mrb[0].mxu0 %v786
    %v854 = vpop.f32.mrb[0].mxu0
    %v855 = vadd.f32 0.0, %v854
    %v856 = vpop.f32.mrb[0].mxu0
    %857 = vdwg.mxu0
    %v858 = vadd.f32 %v261, %v855
    %v859 = vtanh.pop %v858
    %v861 = vsel %vm107, %v859, 0
    %863 = vmatprep.subr.mxu0 0.0
    %864 = vmatpush1.msra.mxu0 %v706
    %865 = vmatprep.subr.mxu0 0.0
    %866 = vmatpush1.msra.mxu0 %v707
    %867 = vmatprep.subr.mxu0 0.0
    %868 = vmatpush1.msra.mxu0 %v708
    %869 = vmatprep.subr.mxu0 0.0
    %870 = vmatpush1.msra.mxu0 %v709
    %871 = vmatprep.subr.mxu0 0.0
    %872 = vmatpush1.msra.mxu0 0.0
    %873 = vmatprep.subr.mxu0 0.0
    %874 = vmatpush1.msra.mxu0 0.0
    %875 = vmatprep.subr.mxu0 0.0
    %876 = vmatpush1.msra.mxu0 0.0
    %877 = vmatprep.subr.mxu0 0.0
    %878 = vmatpush1.msra.mxu0 0.0
    %879 = vmatprep.subr.mxu0 0.0
    %880 = vmatpush1.msra.mxu0 0.0
    %881 = vmatprep.subr.mxu0 0.0
    %882 = vmatpush1.msra.mxu0 0.0
    %883 = vmatprep.subr.mxu0 0.0
    %884 = vmatpush1.msra.mxu0 0.0
    %885 = vmatprep.subr.mxu0 0.0
    %886 = vmatpush1.msra.mxu0 0.0
    %887 = vmatprep.subr.mxu0 0.0
    %888 = vmatpush1.msra.mxu0 0.0
    %889 = vmatprep.subr.mxu0 0.0
    %890 = vmatpush1.msra.mxu0 0.0
    %891 = vmatprep.subr.mxu0 0.0
    %892 = vmatpush1.msra.mxu0 0.0
    %893 = vmatprep.subr.mxu0 0.0
    %894 = vmatpush1.msra.mxu0 0.0
    %895 = vmatprep.subr.mxu0 0.0
    %896 = vmatpush1.msra.mxu0 0.0
    %897 = vmatprep.subr.mxu0 0.0
    %898 = vmatpush1.msra.mxu0 0.0
    %899 = vmatprep.subr.mxu0 0.0
    %900 = vmatpush1.msra.mxu0 0.0
    %901 = vmatprep.subr.mxu0 0.0
    %902 = vmatpush1.msra.mxu0 0.0
    %903 = vmatprep.subr.mxu0 0.0
    %904 = vmatpush1.msra.mxu0 0.0
    %905 = vmatprep.subr.mxu0 0.0
    %906 = vmatpush1.msra.mxu0 0.0
    %907 = vmatprep.subr.mxu0 0.0
    %908 = vmatpush1.msra.mxu0 0.0
    %909 = vmatprep.subr.mxu0 0.0
    %910 = vmatpush1.msra.mxu0 0.0
    %911 = vmatprep.subr.mxu0 0.0
    %912 = vmatpush1.msra.mxu0 0.0
    %913 = vmatprep.subr.mxu0 0.0
    %914 = vmatpush1.msra.mxu0 0.0
    %915 = vmatprep.subr.mxu0 0.0
    %916 = vmatpush1.msra.mxu0 0.0
    %917 = vmatprep.subr.mxu0 0.0
    %918 = vmatpush1.msra.mxu0 0.0
    %919 = vmatprep.subr.mxu0 0.0
    %920 = vmatpush1.msra.mxu0 0.0
    %921 = vmatprep.subr.mxu0 0.0
    %922 = vmatpush1.msra.mxu0 0.0
    %923 = vmatprep.subr.mxu0 0.0
    %924 = vmatpush1.msra.mxu0 0.0
    %925 = vmatprep.subr.mxu0 0.0
    %926 = vmatpush1.msra.mxu0 0.0
    %927 = vmatprep.mubr.f32.mxu0 0.0
    %928 = vmatmul.mubr.f32.gmra.mrb[0].mxu0 %v861
    %v929 = vpop.f32.mrb[0].mxu0
    %v930 = vadd.f32 0.0, %v929
    %v931 = vpop.f32.mrb[0].mxu0
    %932 = vdwg.mxu0
    %v933 = vadd.f32 %v335, %v930
    %v934 = vtanh.pop %v933
    %v936 = vsel %vm107, %v934, 0
    %938 = vmatprep.subr.mxu0 0.0
    %939 = vmatpush1.msra.mxu0 %v706
    %940 = vmatprep.subr.mxu0 0.0
    %941 = vmatpush1.msra.mxu0 %v707
    %942 = vmatprep.subr.mxu0 0.0
    %943 = vmatpush1.msra.mxu0 %v708
    %944 = vmatprep.subr.mxu0 0.0
    %945 = vmatpush1.msra.mxu0 %v709
    %946 = vmatprep.subr.mxu0 0.0
    %947 = vmatpush1.msra.mxu0 0.0
    %948 = vmatprep.subr.mxu0 0.0
    %949 = vmatpush1.msra.mxu0 0.0
    %950 = vmatprep.subr.mxu0 0.0
    %951 = vmatpush1.msra.mxu0 0.0
    %952 = vmatprep.subr.mxu0 0.0
    %953 = vmatpush1.msra.mxu0 0.0
    %954 = vmatprep.subr.mxu0 0.0
    %955 = vmatpush1.msra.mxu0 0.0
    %956 = vmatprep.subr.mxu0 0.0
    %957 = vmatpush1.msra.mxu0 0.0
    %958 = vmatprep.subr.mxu0 0.0
    %959 = vmatpush1.msra.mxu0 0.0
    %960 = vmatprep.subr.mxu0 0.0
    %961 = vmatpush1.msra.mxu0 0.0
    %962 = vmatprep.subr.mxu0 0.0
    %963 = vmatpush1.msra.mxu0 0.0
    %964 = vmatprep.subr.mxu0 0.0
    %965 = vmatpush1.msra.mxu0 0.0
    %966 = vmatprep.subr.mxu0 0.0
    %967 = vmatpush1.msra.mxu0 0.0
    %968 = vmatprep.subr.mxu0 0.0
    %969 = vmatpush1.msra.mxu0 0.0
    %970 = vmatprep.subr.mxu0 0.0
    %971 = vmatpush1.msra.mxu0 0.0
    %972 = vmatprep.subr.mxu0 0.0
    %973 = vmatpush1.msra.mxu0 0.0
    %974 = vmatprep.subr.mxu0 0.0
    %975 = vmatpush1.msra.mxu0 0.0
    %976 = vmatprep.subr.mxu0 0.0
    %977 = vmatpush1.msra.mxu0 0.0
    %978 = vmatprep.subr.mxu0 0.0
    %979 = vmatpush1.msra.mxu0 0.0
    %980 = vmatprep.subr.mxu0 0.0
    %981 = vmatpush1.msra.mxu0 0.0
    %982 = vmatprep.subr.mxu0 0.0
    %983 = vmatpush1.msra.mxu0 0.0
    %984 = vmatprep.subr.mxu0 0.0
    %985 = vmatpush1.msra.mxu0 0.0
    %986 = vmatprep.subr.mxu0 0.0
    %987 = vmatpush1.msra.mxu0 0.0
    %988 = vmatprep.subr.mxu0 0.0
    %989 = vmatpush1.msra.mxu0 0.0
    %990 = vmatprep.subr.mxu0 0.0
    %991 = vmatpush1.msra.mxu0 0.0
    %992 = vmatprep.subr.mxu0 0.0
    %993 = vmatpush1.msra.mxu0 0.0
    %994 = vmatprep.subr.mxu0 0.0
    %995 = vmatpush1.msra.mxu0 0.0
    %996 = vmatprep.subr.mxu0 0.0
    %997 = vmatpush1.msra.mxu0 0.0
    %998 = vmatprep.subr.mxu0 0.0
    %999 = vmatpush1.msra.mxu0 0.0
    %1000 = vmatprep.subr.mxu0 0.0
    %1001 = vmatpush1.msra.mxu0 0.0
    %1002 = vmatprep.mubr.f32.mxu0 0.0
    %1003 = vmatmul.mubr.f32.gmra.mrb[0].mxu0 %v936
    %v1004 = vpop.f32.mrb[0].mxu0
    %v1005 = vadd.f32 0.0, %v1004
    %v1006 = vpop.f32.mrb[0].mxu0
    %1007 = vdwg.mxu0
    %v1008 = vadd.f32 %v409, %v1005
    %v1009 = vtanh.pop %v1008
    %v1011 = vsel %vm107, %v1009, 0
    %1013 = vmatprep.subr.mxu0 0.0
    %1014 = vmatpush1.msra.mxu0 %v706
    %1015 = vmatprep.subr.mxu0 0.0
    %1016 = vmatpush1.msra.mxu0 %v707
    %1017 = vmatprep.subr.mxu0 0.0
    %1018 = vmatpush1.msra.mxu0 %v708
    %1019 = vmatprep.subr.mxu0 0.0
    %1020 = vmatpush1.msra.mxu0 %v709
    %1021 = vmatprep.subr.mxu0 0.0
    %1022 = vmatpush1.msra.mxu0 0.0
    %1023 = vmatprep.subr.mxu0 0.0
    %1024 = vmatpush1.msra.mxu0 0.0
    %1025 = vmatprep.subr.mxu0 0.0
    %1026 = vmatpush1.msra.mxu0 0.0
    %1027 = vmatprep.subr.mxu0 0.0
    %1028 = vmatpush1.msra.mxu0 0.0
    %1029 = vmatprep.subr.mxu0 0.0
    %1030 = vmatpush1.msra.mxu0 0.0
    %1031 = vmatprep.subr.mxu0 0.0
    %1032 = vmatpush1.msra.mxu0 0.0
    %1033 = vmatprep.subr.mxu0 0.0
    %1034 = vmatpush1.msra.mxu0 0.0
    %1035 = vmatprep.subr.mxu0 0.0
    %1036 = vmatpush1.msra.mxu0 0.0
    %1037 = vmatprep.subr.mxu0 0.0
    %1038 = vmatpush1.msra.mxu0 0.0
    %1039 = vmatprep.subr.mxu0 0.0
    %1040 = vmatpush1.msra.mxu0 0.0
    %1041 = vmatprep.subr.mxu0 0.0
    %1042 = vmatpush1.msra.mxu0 0.0
    %1043 = vmatprep.subr.mxu0 0.0
    %1044 = vmatpush1.msra.mxu0 0.0
    %1045 = vmatprep.subr.mxu0 0.0
    %1046 = vmatpush1.msra.mxu0 0.0
    %1047 = vmatprep.subr.mxu0 0.0
    %1048 = vmatpush1.msra.mxu0 0.0
    %1049 = vmatprep.subr.mxu0 0.0
    %1050 = vmatpush1.msra.mxu0 0.0
    %1051 = vmatprep.subr.mxu0 0.0
    %1052 = vmatpush1.msra.mxu0 0.0
    %1053 = vmatprep.subr.mxu0 0.0
    %1054 = vmatpush1.msra.mxu0 0.0
    %1055 = vmatprep.subr.mxu0 0.0
    %1056 = vmatpush1.msra.mxu0 0.0
    %1057 = vmatprep.subr.mxu0 0.0
    %1058 = vmatpush1.msra.mxu0 0.0
    %1059 = vmatprep.subr.mxu0 0.0
    %1060 = vmatpush1.msra.mxu0 0.0
    %1061 = vmatprep.subr.mxu0 0.0
    %1062 = vmatpush1.msra.mxu0 0.0
    %1063 = vmatprep.subr.mxu0 0.0
    %1064 = vmatpush1.msra.mxu0 0.0
    %1065 = vmatprep.subr.mxu0 0.0
    %1066 = vmatpush1.msra.mxu0 0.0
    %1067 = vmatprep.subr.mxu0 0.0
    %1068 = vmatpush1.msra.mxu0 0.0
    %1069 = vmatprep.subr.mxu0 0.0
    %1070 = vmatpush1.msra.mxu0 0.0
    %1071 = vmatprep.subr.mxu0 0.0
    %1072 = vmatpush1.msra.mxu0 0.0
    %1073 = vmatprep.subr.mxu0 0.0
    %1074 = vmatpush1.msra.mxu0 0.0
    %1075 = vmatprep.subr.mxu0 0.0
    %1076 = vmatpush1.msra.mxu0 0.0
    %1077 = vmatprep.mubr.f32.mxu0 0.0
    %1078 = vmatmul.mubr.f32.gmra.mrb[0].mxu0 %v1011
    %v1079 = vpop.f32.mrb[0].mxu0
    %v1080 = vadd.f32 0.0, %v1079
    %v1081 = vpop.f32.mrb[0].mxu0
    %1082 = vdwg.mxu0
    %v1083 = vadd.f32 %v483, %v1080
    %v1084 = vtanh.pop %v1083
    %v1086 = vsel %vm107, %v1084, 0
    %1088 = vmatprep.subr.mxu0 0.0
    %1089 = vmatpush1.msra.mxu0 %v706
    %1090 = vmatprep.subr.mxu0 0.0
    %1091 = vmatpush1.msra.mxu0 %v707
    %1092 = vmatprep.subr.mxu0 0.0
    %1093 = vmatpush1.msra.mxu0 %v708
    %1094 = vmatprep.subr.mxu0 0.0
    %1095 = vmatpush1.msra.mxu0 %v709
    %1096 = vmatprep.subr.mxu0 0.0
    %1097 = vmatpush1.msra.mxu0 0.0
    %1098 = vmatprep.subr.mxu0 0.0
    %1099 = vmatpush1.msra.mxu0 0.0
    %1100 = vmatprep.subr.mxu0 0.0
    %1101 = vmatpush1.msra.mxu0 0.0
    %1102 = vmatprep.subr.mxu0 0.0
    %1103 = vmatpush1.msra.mxu0 0.0
    %1104 = vmatprep.subr.mxu0 0.0
    %1105 = vmatpush1.msra.mxu0 0.0
    %1106 = vmatprep.subr.mxu0 0.0
    %1107 = vmatpush1.msra.mxu0 0.0
    %1108 = vmatprep.subr.mxu0 0.0
    %1109 = vmatpush1.msra.mxu0 0.0
    %1110 = vmatprep.subr.mxu0 0.0
    %1111 = vmatpush1.msra.mxu0 0.0
    %1112 = vmatprep.subr.mxu0 0.0
    %1113 = vmatpush1.msra.mxu0 0.0
    %1114 = vmatprep.subr.mxu0 0.0
    %1115 = vmatpush1.msra.mxu0 0.0
    %1116 = vmatprep.subr.mxu0 0.0
    %1117 = vmatpush1.msra.mxu0 0.0
    %1118 = vmatprep.subr.mxu0 0.0
    %1119 = vmatpush1.msra.mxu0 0.0
    %1120 = vmatprep.subr.mxu0 0.0
    %1121 = vmatpush1.msra.mxu0 0.0
    %1122 = vmatprep.subr.mxu0 0.0
    %1123 = vmatpush1.msra.mxu0 0.0
    %1124 = vmatprep.subr.mxu0 0.0
    %1125 = vmatpush1.msra.mxu0 0.0
    %1126 = vmatprep.subr.mxu0 0.0
    %1127 = vmatpush1.msra.mxu0 0.0
    %1128 = vmatprep.subr.mxu0 0.0
    %1129 = vmatpush1.msra.mxu0 0.0
    %1130 = vmatprep.subr.mxu0 0.0
    %1131 = vmatpush1.msra.mxu0 0.0
    %1132 = vmatprep.subr.mxu0 0.0
    %1133 = vmatpush1.msra.mxu0 0.0
    %1134 = vmatprep.subr.mxu0 0.0
    %1135 = vmatpush1.msra.mxu0 0.0
    %1136 = vmatprep.subr.mxu0 0.0
    %1137 = vmatpush1.msra.mxu0 0.0
    %1138 = vmatprep.subr.mxu0 0.0
    %1139 = vmatpush1.msra.mxu0 0.0
    %1140 = vmatprep.subr.mxu0 0.0
    %1141 = vmatpush1.msra.mxu0 0.0
    %1142 = vmatprep.subr.mxu0 0.0
    %1143 = vmatpush1.msra.mxu0 0.0
    %1144 = vmatprep.subr.mxu0 0.0
    %1145 = vmatpush1.msra.mxu0 0.0
    %1146 = vmatprep.subr.mxu0 0.0
    %1147 = vmatpush1.msra.mxu0 0.0
    %1148 = vmatprep.subr.mxu0 0.0
    %1149 = vmatpush1.msra.mxu0 0.0
    %1150 = vmatprep.subr.mxu0 0.0
    %1151 = vmatpush1.msra.mxu0 0.0
    %1152 = vmatprep.mubr.f32.mxu0 0.0
    %1153 = vmatmul.mubr.f32.gmra.mrb[0].mxu0 %v1086
    %v1154 = vpop.f32.mrb[0].mxu0
    %v1155 = vadd.f32 0.0, %v1154
    %v1156 = vpop.f32.mrb[0].mxu0
    %1157 = vdwg.mxu0
    %v1158 = vadd.f32 %v557, %v1155
    %v1159 = vtanh.pop %v1158
    %v1161 = vsel %vm107, %v1159, 0
    %1163 = vmatprep.subr.mxu0 0.0
    %1164 = vmatpush1.msra.mxu0 %v706
    %1165 = vmatprep.subr.mxu0 0.0
    %1166 = vmatpush1.msra.mxu0 %v707
    %1167 = vmatprep.subr.mxu0 0.0
    %1168 = vmatpush1.msra.mxu0 %v708
    %1169 = vmatprep.subr.mxu0 0.0
    %1170 = vmatpush1.msra.mxu0 %v709
    %1171 = vmatprep.subr.mxu0 0.0
    %1172 = vmatpush1.msra.mxu0 0.0
    %1173 = vmatprep.subr.mxu0 0.0
    %1174 = vmatpush1.msra.mxu0 0.0
    %1175 = vmatprep.subr.mxu0 0.0
    %1176 = vmatpush1.msra.mxu0 0.0
    %1177 = vmatprep.subr.mxu0 0.0
    %1178 = vmatpush1.msra.mxu0 0.0
    %1179 = vmatprep.subr.mxu0 0.0
    %1180 = vmatpush1.msra.mxu0 0.0
    %1181 = vmatprep.subr.mxu0 0.0
    %1182 = vmatpush1.msra.mxu0 0.0
    %1183 = vmatprep.subr.mxu0 0.0
    %1184 = vmatpush1.msra.mxu0 0.0
    %1185 = vmatprep.subr.mxu0 0.0
    %1186 = vmatpush1.msra.mxu0 0.0
    %1187 = vmatprep.subr.mxu0 0.0
    %1188 = vmatpush1.msra.mxu0 0.0
    %1189 = vmatprep.subr.mxu0 0.0
    %1190 = vmatpush1.msra.mxu0 0.0
    %1191 = vmatprep.subr.mxu0 0.0
    %1192 = vmatpush1.msra.mxu0 0.0
    %1193 = vmatprep.subr.mxu0 0.0
    %1194 = vmatpush1.msra.mxu0 0.0
    %1195 = vmatprep.subr.mxu0 0.0
    %1196 = vmatpush1.msra.mxu0 0.0
    %1197 = vmatprep.subr.mxu0 0.0
    %1198 = vmatpush1.msra.mxu0 0.0
    %1199 = vmatprep.subr.mxu0 0.0
    %1200 = vmatpush1.msra.mxu0 0.0
    %1201 = vmatprep.subr.mxu0 0.0
    %1202 = vmatpush1.msra.mxu0 0.0
    %1203 = vmatprep.subr.mxu0 0.0
    %1204 = vmatpush1.msra.mxu0 0.0
    %1205 = vmatprep.subr.mxu0 0.0
    %1206 = vmatpush1.msra.mxu0 0.0
    %1207 = vmatprep.subr.mxu0 0.0
    %1208 = vmatpush1.msra.mxu0 0.0
    %1209 = vmatprep.subr.mxu0 0.0
    %1210 = vmatpush1.msra.mxu0 0.0
    %1211 = vmatprep.subr.mxu0 0.0
    %1212 = vmatpush1.msra.mxu0 0.0
    %1213 = vmatprep.subr.mxu0 0.0
    %1214 = vmatpush1.msra.mxu0 0.0
    %1215 = vmatprep.subr.mxu0 0.0
    %1216 = vmatpush1.msra.mxu0 0.0
    %1217 = vmatprep.subr.mxu0 0.0
    %1218 = vmatpush1.msra.mxu0 0.0
    %1219 = vmatprep.subr.mxu0 0.0
    %1220 = vmatpush1.msra.mxu0 0.0
    %1221 = vmatprep.subr.mxu0 0.0
    %1222 = vmatpush1.msra.mxu0 0.0
    %1223 = vmatprep.subr.mxu0 0.0
    %1224 = vmatpush1.msra.mxu0 0.0
    %1225 = vmatprep.subr.mxu0 0.0
    %1226 = vmatpush1.msra.mxu0 0.0
    %1227 = vmatprep.mubr.f32.mxu0 0.0
    %1228 = vmatmul.mubr.f32.gmra.mrb[0].mxu0 %v1161
    %v1229 = vpop.f32.mrb[0].mxu0
    %v1230 = vadd.f32 0.0, %v1229
    %v1231 = vpop.f32.mrb[0].mxu0
    %1232 = vdwg.mxu0
    %v1233 = vadd.f32 %v631, %v1230
    %v1234 = vtanh.pop %v1233
    %v1236 = vsel %vm107, %v1234, 0
    %1238 = vmatprep.subr.mxu0 0.0
    %1239 = vmatpush1.msra.mxu0 %v706
    %1240 = vmatprep.subr.mxu0 0.0
    %1241 = vmatpush1.msra.mxu0 %v707
    %1242 = vmatprep.subr.mxu0 0.0
    %1243 = vmatpush1.msra.mxu0 %v708
    %1244 = vmatprep.subr.mxu0 0.0
    %1245 = vmatpush1.msra.mxu0 %v709
    %1246 = vmatprep.subr.mxu0 0.0
    %1247 = vmatpush1.msra.mxu0 0.0
    %1248 = vmatprep.subr.mxu0 0.0
    %1249 = vmatpush1.msra.mxu0 0.0
    %1250 = vmatprep.subr.mxu0 0.0
    %1251 = vmatpush1.msra.mxu0 0.0
    %1252 = vmatprep.subr.mxu0 0.0
    %1253 = vmatpush1.msra.mxu0 0.0
    %1254 = vmatprep.subr.mxu0 0.0
    %1255 = vmatpush1.msra.mxu0 0.0
    %1256 = vmatprep.subr.mxu0 0.0
    %1257 = vmatpush1.msra.mxu0 0.0
    %1258 = vmatprep.subr.mxu0 0.0
    %1259 = vmatpush1.msra.mxu0 0.0
    %1260 = vmatprep.subr.mxu0 0.0
    %1261 = vmatpush1.msra.mxu0 0.0
    %1262 = vmatprep.subr.mxu0 0.0
    %1263 = vmatpush1.msra.mxu0 0.0
    %1264 = vmatprep.subr.mxu0 0.0
    %1265 = vmatpush1.msra.mxu0 0.0
    %1266 = vmatprep.subr.mxu0 0.0
    %1267 = vmatpush1.msra.mxu0 0.0
    %1268 = vmatprep.subr.mxu0 0.0
    %1269 = vmatpush1.msra.mxu0 0.0
    %1270 = vmatprep.subr.mxu0 0.0
    %1271 = vmatpush1.msra.mxu0 0.0
    %1272 = vmatprep.subr.mxu0 0.0
    %1273 = vmatpush1.msra.mxu0 0.0
    %1274 = vmatprep.subr.mxu0 0.0
    %1275 = vmatpush1.msra.mxu0 0.0
    %1276 = vmatprep.subr.mxu0 0.0
    %1277 = vmatpush1.msra.mxu0 0.0
    %1278 = vmatprep.subr.mxu0 0.0
    %1279 = vmatpush1.msra.mxu0 0.0
    %1280 = vmatprep.subr.mxu0 0.0
    %1281 = vmatpush1.msra.mxu0 0.0
    %1282 = vmatprep.subr.mxu0 0.0
    %1283 = vmatpush1.msra.mxu0 0.0
    %1284 = vmatprep.subr.mxu0 0.0
    %1285 = vmatpush1.msra.mxu0 0.0
    %1286 = vmatprep.subr.mxu0 0.0
    %1287 = vmatpush1.msra.mxu0 0.0
    %1288 = vmatprep.subr.mxu0 0.0
    %1289 = vmatpush1.msra.mxu0 0.0
    %1290 = vmatprep.subr.mxu0 0.0
    %1291 = vmatpush1.msra.mxu0 0.0
    %1292 = vmatprep.subr.mxu0 0.0
    %1293 = vmatpush1.msra.mxu0 0.0
    %1294 = vmatprep.subr.mxu0 0.0
    %1295 = vmatpush1.msra.mxu0 0.0
    %1296 = vmatprep.subr.mxu0 0.0
    %1297 = vmatpush1.msra.mxu0 0.0
    %1298 = vmatprep.subr.mxu0 0.0
    %1299 = vmatpush1.msra.mxu0 0.0
    %1300 = vmatprep.subr.mxu0 0.0
    %1301 = vmatpush1.msra.mxu0 0.0
    %1302 = vmatprep.mubr.f32.mxu0 0.0
    %1303 = vmatmul.mubr.f32.gmra.mrb[0].mxu0 %v1236
    %v1304 = vpop.f32.mrb[0].mxu0
    %v1305 = vadd.f32 0.0, %v1304
    %v1306 = vpop.f32.mrb[0].mxu0
    %1307 = vdwg.mxu0
    %v1308 = vadd.f32 %v705, %v1305
    %v1309 = vtanh.pop %v1308
    %s1310 = scalar_lea.vmem %s2, 32
    %v1311 = vld [vmem:[%s1310] sm:$0xff]
    %v1312 = vld [vmem:[%s1310 + $0x8] sm:$0xff]
    %v1313 = vld [vmem:[%s1310 + $0x10] sm:$0xff]
    %v1314 = vld [vmem:[%s1310 + $0x18] sm:$0xff]
    %1315 = vmatprep.subr.mxu0 0.0
    %1316 = vmatpush1.msra.mxu0 %v1311
    %1317 = vmatprep.subr.mxu0 0.0
    %1318 = vmatpush1.msra.mxu0 %v1312
    %1319 = vmatprep.subr.mxu0 0.0
    %1320 = vmatpush1.msra.mxu0 %v1313
    %1321 = vmatprep.subr.mxu0 0.0
    %1322 = vmatpush1.msra.mxu0 %v1314
    %1323 = vmatprep.subr.mxu0 0.0
    %1324 = vmatpush1.msra.mxu0 0.0
    %1325 = vmatprep.subr.mxu0 0.0
    %1326 = vmatpush1.msra.mxu0 0.0
    %1327 = vmatprep.subr.mxu0 0.0
    %1328 = vmatpush1.msra.mxu0 0.0
    %1329 = vmatprep.subr.mxu0 0.0
    %1330 = vmatpush1.msra.mxu0 0.0
    %1331 = vmatprep.subr.mxu0 0.0
    %1332 = vmatpush1.msra.mxu0 0.0
    %1333 = vmatprep.subr.mxu0 0.0
    %1334 = vmatpush1.msra.mxu0 0.0
    %1335 = vmatprep.subr.mxu0 0.0
    %1336 = vmatpush1.msra.mxu0 0.0
    %1337 = vmatprep.subr.mxu0 0.0
    %1338 = vmatpush1.msra.mxu0 0.0
    %1339 = vmatprep.subr.mxu0 0.0
    %1340 = vmatpush1.msra.mxu0 0.0
    %1341 = vmatprep.subr.mxu0 0.0
    %1342 = vmatpush1.msra.mxu0 0.0
    %1343 = vmatprep.subr.mxu0 0.0
    %1344 = vmatpush1.msra.mxu0 0.0
    %1345 = vmatprep.subr.mxu0 0.0
    %1346 = vmatpush1.msra.mxu0 0.0
    %1347 = vmatprep.subr.mxu0 0.0
    %1348 = vmatpush1.msra.mxu0 0.0
    %1349 = vmatprep.subr.mxu0 0.0
    %1350 = vmatpush1.msra.mxu0 0.0
    %1351 = vmatprep.subr.mxu0 0.0
    %1352 = vmatpush1.msra.mxu0 0.0
    %1353 = vmatprep.subr.mxu0 0.0
    %1354 = vmatpush1.msra.mxu0 0.0
    %1355 = vmatprep.subr.mxu0 0.0
    %1356 = vmatpush1.msra.mxu0 0.0
    %1357 = vmatprep.subr.mxu0 0.0
    %1358 = vmatpush1.msra.mxu0 0.0
    %1359 = vmatprep.subr.mxu0 0.0
    %1360 = vmatpush1.msra.mxu0 0.0
    %1361 = vmatprep.subr.mxu0 0.0
    %1362 = vmatpush1.msra.mxu0 0.0
    %1363 = vmatprep.subr.mxu0 0.0
    %1364 = vmatpush1.msra.mxu0 0.0
    %1365 = vmatprep.subr.mxu0 0.0
    %1366 = vmatpush1.msra.mxu0 0.0
    %1367 = vmatprep.subr.mxu0 0.0
    %1368 = vmatpush1.msra.mxu0 0.0
    %1369 = vmatprep.subr.mxu0 0.0
    %1370 = vmatpush1.msra.mxu0 0.0
    %1371 = vmatprep.subr.mxu0 0.0
    %1372 = vmatpush1.msra.mxu0 0.0
    %1373 = vmatprep.subr.mxu0 0.0
    %1374 = vmatpush1.msra.mxu0 0.0
    %1375 = vmatprep.subr.mxu0 0.0
    %1376 = vmatpush1.msra.mxu0 0.0
    %1377 = vmatprep.subr.mxu0 0.0
    %1378 = vmatpush1.msra.mxu0 0.0
    %1379 = vmatprep.mubr.f32.mxu0 0.0
    %1380 = vmatmul.mubr.f32.gmra.mrb[0].mxu0 %v711
    %v1381 = vpop.f32.mrb[0].mxu0
    %v1382 = vadd.f32 0.0, %v1381
    %v1383 = vpop.f32.mrb[0].mxu0
    %1384 = vdwg.mxu0
    %1386 = vrot.lane.b32.xlu0 %v1382, 32
    %v1387 = vpop.permute.xlu0 %1386
    %v1389 = vadd.f32 %v705, %v1387
    %v1390 = vtanh.pop %v1389
    %1392 = vrot.lane.b32.xlu0 %v1390, 96
    %v1393 = vpop.permute.xlu0 %1392
    %v1394 = vsel %vm107, %v1393, 0
    %1396 = vmatprep.subr.mxu0 0.0
    %1397 = vmatpush1.msra.mxu0 %v1311
    %1398 = vmatprep.subr.mxu0 0.0
    %1399 = vmatpush1.msra.mxu0 %v1312
    %1400 = vmatprep.subr.mxu0 0.0
    %1401 = vmatpush1.msra.mxu0 %v1313
    %1402 = vmatprep.subr.mxu0 0.0
    %1403 = vmatpush1.msra.mxu0 %v1314
    %1404 = vmatprep.subr.mxu0 0.0
    %1405 = vmatpush1.msra.mxu0 0.0
    %1406 = vmatprep.subr.mxu0 0.0
    %1407 = vmatpush1.msra.mxu0 0.0
    %1408 = vmatprep.subr.mxu0 0.0
    %1409 = vmatpush1.msra.mxu0 0.0
    %1410 = vmatprep.subr.mxu0 0.0
    %1411 = vmatpush1.msra.mxu0 0.0
    %1412 = vmatprep.subr.mxu0 0.0
    %1413 = vmatpush1.msra.mxu0 0.0
    %1414 = vmatprep.subr.mxu0 0.0
    %1415 = vmatpush1.msra.mxu0 0.0
    %1416 = vmatprep.subr.mxu0 0.0
    %1417 = vmatpush1.msra.mxu0 0.0
    %1418 = vmatprep.subr.mxu0 0.0
    %1419 = vmatpush1.msra.mxu0 0.0
    %1420 = vmatprep.subr.mxu0 0.0
    %1421 = vmatpush1.msra.mxu0 0.0
    %1422 = vmatprep.subr.mxu0 0.0
    %1423 = vmatpush1.msra.mxu0 0.0
    %1424 = vmatprep.subr.mxu0 0.0
    %1425 = vmatpush1.msra.mxu0 0.0
    %1426 = vmatprep.subr.mxu0 0.0
    %1427 = vmatpush1.msra.mxu0 0.0
    %1428 = vmatprep.subr.mxu0 0.0
    %1429 = vmatpush1.msra.mxu0 0.0
    %1430 = vmatprep.subr.mxu0 0.0
    %1431 = vmatpush1.msra.mxu0 0.0
    %1432 = vmatprep.subr.mxu0 0.0
    %1433 = vmatpush1.msra.mxu0 0.0
    %1434 = vmatprep.subr.mxu0 0.0
    %1435 = vmatpush1.msra.mxu0 0.0
    %1436 = vmatprep.subr.mxu0 0.0
    %1437 = vmatpush1.msra.mxu0 0.0
    %1438 = vmatprep.subr.mxu0 0.0
    %1439 = vmatpush1.msra.mxu0 0.0
    %1440 = vmatprep.subr.mxu0 0.0
    %1441 = vmatpush1.msra.mxu0 0.0
    %1442 = vmatprep.subr.mxu0 0.0
    %1443 = vmatpush1.msra.mxu0 0.0
    %1444 = vmatprep.subr.mxu0 0.0
    %1445 = vmatpush1.msra.mxu0 0.0
    %1446 = vmatprep.subr.mxu0 0.0
    %1447 = vmatpush1.msra.mxu0 0.0
    %1448 = vmatprep.subr.mxu0 0.0
    %1449 = vmatpush1.msra.mxu0 0.0
    %1450 = vmatprep.subr.mxu0 0.0
    %1451 = vmatpush1.msra.mxu0 0.0
    %1452 = vmatprep.subr.mxu0 0.0
    %1453 = vmatpush1.msra.mxu0 0.0
    %1454 = vmatprep.subr.mxu0 0.0
    %1455 = vmatpush1.msra.mxu0 0.0
    %1456 = vmatprep.subr.mxu0 0.0
    %1457 = vmatpush1.msra.mxu0 0.0
    %1458 = vmatprep.subr.mxu0 0.0
    %1459 = vmatpush1.msra.mxu0 0.0
    %1460 = vmatprep.mubr.f32.mxu0 0.0
    %1461 = vmatmul.mubr.f32.gmra.mrb[0].mxu0 %v1394
    %v1462 = vpop.f32.mrb[0].mxu0
    %v1463 = vadd.f32 0.0, %v1462
    %v1464 = vpop.f32.mrb[0].mxu0
    %1465 = vdwg.mxu0
    %1467 = vrot.lane.b32.xlu0 %v1463, 32
    %v1468 = vpop.permute.xlu0 %1467
    %v1470 = vadd.f32 %v631, %v1468
    %v1471 = vtanh.pop %v1470
    %1473 = vrot.lane.b32.xlu0 %v1471, 96
    %v1474 = vpop.permute.xlu0 %1473
    %v1475 = vsel %vm107, %v1474, 0
    %1477 = vmatprep.subr.mxu0 0.0
    %1478 = vmatpush1.msra.mxu0 %v1311
    %1479 = vmatprep.subr.mxu0 0.0
    %1480 = vmatpush1.msra.mxu0 %v1312
    %1481 = vmatprep.subr.mxu0 0.0
    %1482 = vmatpush1.msra.mxu0 %v1313
    %1483 = vmatprep.subr.mxu0 0.0
    %1484 = vmatpush1.msra.mxu0 %v1314
    %1485 = vmatprep.subr.mxu0 0.0
    %1486 = vmatpush1.msra.mxu0 0.0
    %1487 = vmatprep.subr.mxu0 0.0
    %1488 = vmatpush1.msra.mxu0 0.0
    %1489 = vmatprep.subr.mxu0 0.0
    %1490 = vmatpush1.msra.mxu0 0.0
    %1491 = vmatprep.subr.mxu0 0.0
    %1492 = vmatpush1.msra.mxu0 0.0
    %1493 = vmatprep.subr.mxu0 0.0
    %1494 = vmatpush1.msra.mxu0 0.0
    %1495 = vmatprep.subr.mxu0 0.0
    %1496 = vmatpush1.msra.mxu0 0.0
    %1497 = vmatprep.subr.mxu0 0.0
    %1498 = vmatpush1.msra.mxu0 0.0
    %1499 = vmatprep.subr.mxu0 0.0
    %1500 = vmatpush1.msra.mxu0 0.0
    %1501 = vmatprep.subr.mxu0 0.0
    %1502 = vmatpush1.msra.mxu0 0.0
    %1503 = vmatprep.subr.mxu0 0.0
    %1504 = vmatpush1.msra.mxu0 0.0
    %1505 = vmatprep.subr.mxu0 0.0
    %1506 = vmatpush1.msra.mxu0 0.0
    %1507 = vmatprep.subr.mxu0 0.0
    %1508 = vmatpush1.msra.mxu0 0.0
    %1509 = vmatprep.subr.mxu0 0.0
    %1510 = vmatpush1.msra.mxu0 0.0
    %1511 = vmatprep.subr.mxu0 0.0
    %1512 = vmatpush1.msra.mxu0 0.0
    %1513 = vmatprep.subr.mxu0 0.0
    %1514 = vmatpush1.msra.mxu0 0.0
    %1515 = vmatprep.subr.mxu0 0.0
    %1516 = vmatpush1.msra.mxu0 0.0
    %1517 = vmatprep.subr.mxu0 0.0
    %1518 = vmatpush1.msra.mxu0 0.0
    %1519 = vmatprep.subr.mxu0 0.0
    %1520 = vmatpush1.msra.mxu0 0.0
    %1521 = vmatprep.subr.mxu0 0.0
    %1522 = vmatpush1.msra.mxu0 0.0
    %1523 = vmatprep.subr.mxu0 0.0
    %1524 = vmatpush1.msra.mxu0 0.0
    %1525 = vmatprep.subr.mxu0 0.0
    %1526 = vmatpush1.msra.mxu0 0.0
    %1527 = vmatprep.subr.mxu0 0.0
    %1528 = vmatpush1.msra.mxu0 0.0
    %1529 = vmatprep.subr.mxu0 0.0
    %1530 = vmatpush1.msra.mxu0 0.0
    %1531 = vmatprep.subr.mxu0 0.0
    %1532 = vmatpush1.msra.mxu0 0.0
    %1533 = vmatprep.subr.mxu0 0.0
    %1534 = vmatpush1.msra.mxu0 0.0
    %1535 = vmatprep.subr.mxu0 0.0
    %1536 = vmatpush1.msra.mxu0 0.0
    %1537 = vmatprep.subr.mxu0 0.0
    %1538 = vmatpush1.msra.mxu0 0.0
    %1539 = vmatprep.subr.mxu0 0.0
    %1540 = vmatpush1.msra.mxu0 0.0
    %1541 = vmatprep.mubr.f32.mxu0 0.0
    %1542 = vmatmul.mubr.f32.gmra.mrb[0].mxu0 %v1475
    %v1543 = vpop.f32.mrb[0].mxu0
    %v1544 = vadd.f32 0.0, %v1543
    %v1545 = vpop.f32.mrb[0].mxu0
    %1546 = vdwg.mxu0
    %1548 = vrot.lane.b32.xlu0 %v1544, 32
    %v1549 = vpop.permute.xlu0 %1548
    %v1551 = vadd.f32 %v557, %v1549
    %v1552 = vtanh.pop %v1551
    %1554 = vrot.lane.b32.xlu0 %v1552, 96
    %v1555 = vpop.permute.xlu0 %1554
    %v1556 = vsel %vm107, %v1555, 0
    %1558 = vmatprep.subr.mxu0 0.0
    %1559 = vmatpush1.msra.mxu0 %v1311
    %1560 = vmatprep.subr.mxu0 0.0
    %1561 = vmatpush1.msra.mxu0 %v1312
    %1562 = vmatprep.subr.mxu0 0.0
    %1563 = vmatpush1.msra.mxu0 %v1313
    %1564 = vmatprep.subr.mxu0 0.0
    %1565 = vmatpush1.msra.mxu0 %v1314
    %1566 = vmatprep.subr.mxu0 0.0
    %1567 = vmatpush1.msra.mxu0 0.0
    %1568 = vmatprep.subr.mxu0 0.0
    %1569 = vmatpush1.msra.mxu0 0.0
    %1570 = vmatprep.subr.mxu0 0.0
    %1571 = vmatpush1.msra.mxu0 0.0
    %1572 = vmatprep.subr.mxu0 0.0
    %1573 = vmatpush1.msra.mxu0 0.0
    %1574 = vmatprep.subr.mxu0 0.0
    %1575 = vmatpush1.msra.mxu0 0.0
    %1576 = vmatprep.subr.mxu0 0.0
    %1577 = vmatpush1.msra.mxu0 0.0
    %1578 = vmatprep.subr.mxu0 0.0
    %1579 = vmatpush1.msra.mxu0 0.0
    %1580 = vmatprep.subr.mxu0 0.0
    %1581 = vmatpush1.msra.mxu0 0.0
    %1582 = vmatprep.subr.mxu0 0.0
    %1583 = vmatpush1.msra.mxu0 0.0
    %1584 = vmatprep.subr.mxu0 0.0
    %1585 = vmatpush1.msra.mxu0 0.0
    %1586 = vmatprep.subr.mxu0 0.0
    %1587 = vmatpush1.msra.mxu0 0.0
    %1588 = vmatprep.subr.mxu0 0.0
    %1589 = vmatpush1.msra.mxu0 0.0
    %1590 = vmatprep.subr.mxu0 0.0
    %1591 = vmatpush1.msra.mxu0 0.0
    %1592 = vmatprep.subr.mxu0 0.0
    %1593 = vmatpush1.msra.mxu0 0.0
    %1594 = vmatprep.subr.mxu0 0.0
    %1595 = vmatpush1.msra.mxu0 0.0
    %1596 = vmatprep.subr.mxu0 0.0
    %1597 = vmatpush1.msra.mxu0 0.0
    %1598 = vmatprep.subr.mxu0 0.0
    %1599 = vmatpush1.msra.mxu0 0.0
    %1600 = vmatprep.subr.mxu0 0.0
    %1601 = vmatpush1.msra.mxu0 0.0
    %1602 = vmatprep.subr.mxu0 0.0
    %1603 = vmatpush1.msra.mxu0 0.0
    %1604 = vmatprep.subr.mxu0 0.0
    %1605 = vmatpush1.msra.mxu0 0.0
    %1606 = vmatprep.subr.mxu0 0.0
    %1607 = vmatpush1.msra.mxu0 0.0
    %1608 = vmatprep.subr.mxu0 0.0
    %1609 = vmatpush1.msra.mxu0 0.0
    %1610 = vmatprep.subr.mxu0 0.0
    %1611 = vmatpush1.msra.mxu0 0.0
    %1612 = vmatprep.subr.mxu0 0.0
    %1613 = vmatpush1.msra.mxu0 0.0
    %1614 = vmatprep.subr.mxu0 0.0
    %1615 = vmatpush1.msra.mxu0 0.0
    %1616 = vmatprep.subr.mxu0 0.0
    %1617 = vmatpush1.msra.mxu0 0.0
    %1618 = vmatprep.subr.mxu0 0.0
    %1619 = vmatpush1.msra.mxu0 0.0
    %1620 = vmatprep.subr.mxu0 0.0
    %1621 = vmatpush1.msra.mxu0 0.0
    %1622 = vmatprep.mubr.f32.mxu0 0.0
    %1623 = vmatmul.mubr.f32.gmra.mrb[0].mxu0 %v1556
    %v1624 = vpop.f32.mrb[0].mxu0
    %v1625 = vadd.f32 0.0, %v1624
    %v1626 = vpop.f32.mrb[0].mxu0
    %1627 = vdwg.mxu0
    %1629 = vrot.lane.b32.xlu0 %v1625, 32
    %v1630 = vpop.permute.xlu0 %1629
    %v1632 = vadd.f32 %v483, %v1630
    %v1633 = vtanh.pop %v1632
    %1635 = vrot.lane.b32.xlu0 %v1633, 96
    %v1636 = vpop.permute.xlu0 %1635
    %v1637 = vsel %vm107, %v1636, 0
    %1639 = vmatprep.subr.mxu0 0.0
    %1640 = vmatpush1.msra.mxu0 %v1311
    %1641 = vmatprep.subr.mxu0 0.0
    %1642 = vmatpush1.msra.mxu0 %v1312
    %1643 = vmatprep.subr.mxu0 0.0
    %1644 = vmatpush1.msra.mxu0 %v1313
    %1645 = vmatprep.subr.mxu0 0.0
    %1646 = vmatpush1.msra.mxu0 %v1314
    %1647 = vmatprep.subr.mxu0 0.0
    %1648 = vmatpush1.msra.mxu0 0.0
    %1649 = vmatprep.subr.mxu0 0.0
    %1650 = vmatpush1.msra.mxu0 0.0
    %1651 = vmatprep.subr.mxu0 0.0
    %1652 = vmatpush1.msra.mxu0 0.0
    %1653 = vmatprep.subr.mxu0 0.0
    %1654 = vmatpush1.msra.mxu0 0.0
    %1655 = vmatprep.subr.mxu0 0.0
    %1656 = vmatpush1.msra.mxu0 0.0
    %1657 = vmatprep.subr.mxu0 0.0
    %1658 = vmatpush1.msra.mxu0 0.0
    %1659 = vmatprep.subr.mxu0 0.0
    %1660 = vmatpush1.msra.mxu0 0.0
    %1661 = vmatprep.subr.mxu0 0.0
    %1662 = vmatpush1.msra.mxu0 0.0
    %1663 = vmatprep.subr.mxu0 0.0
    %1664 = vmatpush1.msra.mxu0 0.0
    %1665 = vmatprep.subr.mxu0 0.0
    %1666 = vmatpush1.msra.mxu0 0.0
    %1667 = vmatprep.subr.mxu0 0.0
    %1668 = vmatpush1.msra.mxu0 0.0
    %1669 = vmatprep.subr.mxu0 0.0
    %1670 = vmatpush1.msra.mxu0 0.0
    %1671 = vmatprep.subr.mxu0 0.0
    %1672 = vmatpush1.msra.mxu0 0.0
    %1673 = vmatprep.subr.mxu0 0.0
    %1674 = vmatpush1.msra.mxu0 0.0
    %1675 = vmatprep.subr.mxu0 0.0
    %1676 = vmatpush1.msra.mxu0 0.0
    %1677 = vmatprep.subr.mxu0 0.0
    %1678 = vmatpush1.msra.mxu0 0.0
    %1679 = vmatprep.subr.mxu0 0.0
    %1680 = vmatpush1.msra.mxu0 0.0
    %1681 = vmatprep.subr.mxu0 0.0
    %1682 = vmatpush1.msra.mxu0 0.0
    %1683 = vmatprep.subr.mxu0 0.0
    %1684 = vmatpush1.msra.mxu0 0.0
    %1685 = vmatprep.subr.mxu0 0.0
    %1686 = vmatpush1.msra.mxu0 0.0
    %1687 = vmatprep.subr.mxu0 0.0
    %1688 = vmatpush1.msra.mxu0 0.0
    %1689 = vmatprep.subr.mxu0 0.0
    %1690 = vmatpush1.msra.mxu0 0.0
    %1691 = vmatprep.subr.mxu0 0.0
    %1692 = vmatpush1.msra.mxu0 0.0
    %1693 = vmatprep.subr.mxu0 0.0
    %1694 = vmatpush1.msra.mxu0 0.0
    %1695 = vmatprep.subr.mxu0 0.0
    %1696 = vmatpush1.msra.mxu0 0.0
    %1697 = vmatprep.subr.mxu0 0.0
    %1698 = vmatpush1.msra.mxu0 0.0
    %1699 = vmatprep.subr.mxu0 0.0
    %1700 = vmatpush1.msra.mxu0 0.0
    %1701 = vmatprep.subr.mxu0 0.0
    %1702 = vmatpush1.msra.mxu0 0.0
    %1703 = vmatprep.mubr.f32.mxu0 0.0
    %1704 = vmatmul.mubr.f32.gmra.mrb[0].mxu0 %v1637
    %v1705 = vpop.f32.mrb[0].mxu0
    %v1706 = vadd.f32 0.0, %v1705
    %v1707 = vpop.f32.mrb[0].mxu0
    %1708 = vdwg.mxu0
    %1710 = vrot.lane.b32.xlu0 %v1706, 32
    %v1711 = vpop.permute.xlu0 %1710
    %v1713 = vadd.f32 %v409, %v1711
    %v1714 = vtanh.pop %v1713
    %1716 = vrot.lane.b32.xlu0 %v1714, 96
    %v1717 = vpop.permute.xlu0 %1716
    %v1718 = vsel %vm107, %v1717, 0
    %1720 = vmatprep.subr.mxu0 0.0
    %1721 = vmatpush1.msra.mxu0 %v1311
    %1722 = vmatprep.subr.mxu0 0.0
    %1723 = vmatpush1.msra.mxu0 %v1312
    %1724 = vmatprep.subr.mxu0 0.0
    %1725 = vmatpush1.msra.mxu0 %v1313
    %1726 = vmatprep.subr.mxu0 0.0
    %1727 = vmatpush1.msra.mxu0 %v1314
    %1728 = vmatprep.subr.mxu0 0.0
    %1729 = vmatpush1.msra.mxu0 0.0
    %1730 = vmatprep.subr.mxu0 0.0
    %1731 = vmatpush1.msra.mxu0 0.0
    %1732 = vmatprep.subr.mxu0 0.0
    %1733 = vmatpush1.msra.mxu0 0.0
    %1734 = vmatprep.subr.mxu0 0.0
    %1735 = vmatpush1.msra.mxu0 0.0
    %1736 = vmatprep.subr.mxu0 0.0
    %1737 = vmatpush1.msra.mxu0 0.0
    %1738 = vmatprep.subr.mxu0 0.0
    %1739 = vmatpush1.msra.mxu0 0.0
    %1740 = vmatprep.subr.mxu0 0.0
    %1741 = vmatpush1.msra.mxu0 0.0
    %1742 = vmatprep.subr.mxu0 0.0
    %1743 = vmatpush1.msra.mxu0 0.0
    %1744 = vmatprep.subr.mxu0 0.0
    %1745 = vmatpush1.msra.mxu0 0.0
    %1746 = vmatprep.subr.mxu0 0.0
    %1747 = vmatpush1.msra.mxu0 0.0
    %1748 = vmatprep.subr.mxu0 0.0
    %1749 = vmatpush1.msra.mxu0 0.0
    %1750 = vmatprep.subr.mxu0 0.0
    %1751 = vmatpush1.msra.mxu0 0.0
    %1752 = vmatprep.subr.mxu0 0.0
    %1753 = vmatpush1.msra.mxu0 0.0
    %1754 = vmatprep.subr.mxu0 0.0
    %1755 = vmatpush1.msra.mxu0 0.0
    %1756 = vmatprep.subr.mxu0 0.0
    %1757 = vmatpush1.msra.mxu0 0.0
    %1758 = vmatprep.subr.mxu0 0.0
    %1759 = vmatpush1.msra.mxu0 0.0
    %1760 = vmatprep.subr.mxu0 0.0
    %1761 = vmatpush1.msra.mxu0 0.0
    %1762 = vmatprep.subr.mxu0 0.0
    %1763 = vmatpush1.msra.mxu0 0.0
    %1764 = vmatprep.subr.mxu0 0.0
    %1765 = vmatpush1.msra.mxu0 0.0
    %1766 = vmatprep.subr.mxu0 0.0
    %1767 = vmatpush1.msra.mxu0 0.0
    %1768 = vmatprep.subr.mxu0 0.0
    %1769 = vmatpush1.msra.mxu0 0.0
    %1770 = vmatprep.subr.mxu0 0.0
    %1771 = vmatpush1.msra.mxu0 0.0
    %1772 = vmatprep.subr.mxu0 0.0
    %1773 = vmatpush1.msra.mxu0 0.0
    %1774 = vmatprep.subr.mxu0 0.0
    %1775 = vmatpush1.msra.mxu0 0.0
    %1776 = vmatprep.subr.mxu0 0.0
    %1777 = vmatpush1.msra.mxu0 0.0
    %1778 = vmatprep.subr.mxu0 0.0
    %1779 = vmatpush1.msra.mxu0 0.0
    %1780 = vmatprep.subr.mxu0 0.0
    %1781 = vmatpush1.msra.mxu0 0.0
    %1782 = vmatprep.subr.mxu0 0.0
    %1783 = vmatpush1.msra.mxu0 0.0
    %1784 = vmatprep.mubr.f32.mxu0 0.0
    %1785 = vmatmul.mubr.f32.gmra.mrb[0].mxu0 %v1718
    %v1786 = vpop.f32.mrb[0].mxu0
    %v1787 = vadd.f32 0.0, %v1786
    %v1788 = vpop.f32.mrb[0].mxu0
    %1789 = vdwg.mxu0
    %1791 = vrot.lane.b32.xlu0 %v1787, 32
    %v1792 = vpop.permute.xlu0 %1791
    %v1794 = vadd.f32 %v335, %v1792
    %v1795 = vtanh.pop %v1794
    %1797 = vrot.lane.b32.xlu0 %v1795, 96
    %v1798 = vpop.permute.xlu0 %1797
    %v1799 = vsel %vm107, %v1798, 0
    %1801 = vmatprep.subr.mxu0 0.0
    %1802 = vmatpush1.msra.mxu0 %v1311
    %1803 = vmatprep.subr.mxu0 0.0
    %1804 = vmatpush1.msra.mxu0 %v1312
    %1805 = vmatprep.subr.mxu0 0.0
    %1806 = vmatpush1.msra.mxu0 %v1313
    %1807 = vmatprep.subr.mxu0 0.0
    %1808 = vmatpush1.msra.mxu0 %v1314
    %1809 = vmatprep.subr.mxu0 0.0
    %1810 = vmatpush1.msra.mxu0 0.0
    %1811 = vmatprep.subr.mxu0 0.0
    %1812 = vmatpush1.msra.mxu0 0.0
    %1813 = vmatprep.subr.mxu0 0.0
    %1814 = vmatpush1.msra.mxu0 0.0
    %1815 = vmatprep.subr.mxu0 0.0
    %1816 = vmatpush1.msra.mxu0 0.0
    %1817 = vmatprep.subr.mxu0 0.0
    %1818 = vmatpush1.msra.mxu0 0.0
    %1819 = vmatprep.subr.mxu0 0.0
    %1820 = vmatpush1.msra.mxu0 0.0
    %1821 = vmatprep.subr.mxu0 0.0
    %1822 = vmatpush1.msra.mxu0 0.0
    %1823 = vmatprep.subr.mxu0 0.0
    %1824 = vmatpush1.msra.mxu0 0.0
    %1825 = vmatprep.subr.mxu0 0.0
    %1826 = vmatpush1.msra.mxu0 0.0
    %1827 = vmatprep.subr.mxu0 0.0
    %1828 = vmatpush1.msra.mxu0 0.0
    %1829 = vmatprep.subr.mxu0 0.0
    %1830 = vmatpush1.msra.mxu0 0.0
    %1831 = vmatprep.subr.mxu0 0.0
    %1832 = vmatpush1.msra.mxu0 0.0
    %1833 = vmatprep.subr.mxu0 0.0
    %1834 = vmatpush1.msra.mxu0 0.0
    %1835 = vmatprep.subr.mxu0 0.0
    %1836 = vmatpush1.msra.mxu0 0.0
    %1837 = vmatprep.subr.mxu0 0.0
    %1838 = vmatpush1.msra.mxu0 0.0
    %1839 = vmatprep.subr.mxu0 0.0
    %1840 = vmatpush1.msra.mxu0 0.0
    %1841 = vmatprep.subr.mxu0 0.0
    %1842 = vmatpush1.msra.mxu0 0.0
    %1843 = vmatprep.subr.mxu0 0.0
    %1844 = vmatpush1.msra.mxu0 0.0
    %1845 = vmatprep.subr.mxu0 0.0
    %1846 = vmatpush1.msra.mxu0 0.0
    %1847 = vmatprep.subr.mxu0 0.0
    %1848 = vmatpush1.msra.mxu0 0.0
    %1849 = vmatprep.subr.mxu0 0.0
    %1850 = vmatpush1.msra.mxu0 0.0
    %1851 = vmatprep.subr.mxu0 0.0
    %1852 = vmatpush1.msra.mxu0 0.0
    %1853 = vmatprep.subr.mxu0 0.0
    %1854 = vmatpush1.msra.mxu0 0.0
    %1855 = vmatprep.subr.mxu0 0.0
    %1856 = vmatpush1.msra.mxu0 0.0
    %1857 = vmatprep.subr.mxu0 0.0
    %1858 = vmatpush1.msra.mxu0 0.0
    %1859 = vmatprep.subr.mxu0 0.0
    %1860 = vmatpush1.msra.mxu0 0.0
    %1861 = vmatprep.subr.mxu0 0.0
    %1862 = vmatpush1.msra.mxu0 0.0
    %1863 = vmatprep.subr.mxu0 0.0
    %1864 = vmatpush1.msra.mxu0 0.0
    %1865 = vmatprep.mubr.f32.mxu0 0.0
    %1866 = vmatmul.mubr.f32.gmra.mrb[0].mxu0 %v1799
    %v1867 = vpop.f32.mrb[0].mxu0
    %v1868 = vadd.f32 0.0, %v1867
    %v1869 = vpop.f32.mrb[0].mxu0
    %1870 = vdwg.mxu0
    %1872 = vrot.lane.b32.xlu0 %v1868, 32
    %v1873 = vpop.permute.xlu0 %1872
    %v1875 = vadd.f32 %v261, %v1873
    %v1876 = vtanh.pop %v1875
    %1878 = vrot.lane.b32.xlu0 %v1876, 96
    %v1879 = vpop.permute.xlu0 %1878
    %v1880 = vsel %vm107, %v1879, 0
    %1882 = vmatprep.subr.mxu0 0.0
    %1883 = vmatpush1.msra.mxu0 %v1311
    %1884 = vmatprep.subr.mxu0 0.0
    %1885 = vmatpush1.msra.mxu0 %v1312
    %1886 = vmatprep.subr.mxu0 0.0
    %1887 = vmatpush1.msra.mxu0 %v1313
    %1888 = vmatprep.subr.mxu0 0.0
    %1889 = vmatpush1.msra.mxu0 %v1314
    %1890 = vmatprep.subr.mxu0 0.0
    %1891 = vmatpush1.msra.mxu0 0.0
    %1892 = vmatprep.subr.mxu0 0.0
    %1893 = vmatpush1.msra.mxu0 0.0
    %1894 = vmatprep.subr.mxu0 0.0
    %1895 = vmatpush1.msra.mxu0 0.0
    %1896 = vmatprep.subr.mxu0 0.0
    %1897 = vmatpush1.msra.mxu0 0.0
    %1898 = vmatprep.subr.mxu0 0.0
    %1899 = vmatpush1.msra.mxu0 0.0
    %1900 = vmatprep.subr.mxu0 0.0
    %1901 = vmatpush1.msra.mxu0 0.0
    %1902 = vmatprep.subr.mxu0 0.0
    %1903 = vmatpush1.msra.mxu0 0.0
    %1904 = vmatprep.subr.mxu0 0.0
    %1905 = vmatpush1.msra.mxu0 0.0
    %1906 = vmatprep.subr.mxu0 0.0
    %1907 = vmatpush1.msra.mxu0 0.0
    %1908 = vmatprep.subr.mxu0 0.0
    %1909 = vmatpush1.msra.mxu0 0.0
    %1910 = vmatprep.subr.mxu0 0.0
    %1911 = vmatpush1.msra.mxu0 0.0
    %1912 = vmatprep.subr.mxu0 0.0
    %1913 = vmatpush1.msra.mxu0 0.0
    %1914 = vmatprep.subr.mxu0 0.0
    %1915 = vmatpush1.msra.mxu0 0.0
    %1916 = vmatprep.subr.mxu0 0.0
    %1917 = vmatpush1.msra.mxu0 0.0
    %1918 = vmatprep.subr.mxu0 0.0
    %1919 = vmatpush1.msra.mxu0 0.0
    %1920 = vmatprep.subr.mxu0 0.0
    %1921 = vmatpush1.msra.mxu0 0.0
    %1922 = vmatprep.subr.mxu0 0.0
    %1923 = vmatpush1.msra.mxu0 0.0
    %1924 = vmatprep.subr.mxu0 0.0
    %1925 = vmatpush1.msra.mxu0 0.0
    %1926 = vmatprep.subr.mxu0 0.0
    %1927 = vmatpush1.msra.mxu0 0.0
    %1928 = vmatprep.subr.mxu0 0.0
    %1929 = vmatpush1.msra.mxu0 0.0
    %1930 = vmatprep.subr.mxu0 0.0
    %1931 = vmatpush1.msra.mxu0 0.0
    %1932 = vmatprep.subr.mxu0 0.0
    %1933 = vmatpush1.msra.mxu0 0.0
    %1934 = vmatprep.subr.mxu0 0.0
    %1935 = vmatpush1.msra.mxu0 0.0
    %1936 = vmatprep.subr.mxu0 0.0
    %1937 = vmatpush1.msra.mxu0 0.0
    %1938 = vmatprep.subr.mxu0 0.0
    %1939 = vmatpush1.msra.mxu0 0.0
    %1940 = vmatprep.subr.mxu0 0.0
    %1941 = vmatpush1.msra.mxu0 0.0
    %1942 = vmatprep.subr.mxu0 0.0
    %1943 = vmatpush1.msra.mxu0 0.0
    %1944 = vmatprep.subr.mxu0 0.0
    %1945 = vmatpush1.msra.mxu0 0.0
    %1946 = vmatprep.mubr.f32.mxu0 0.0
    %1947 = vmatmul.mubr.f32.gmra.mrb[0].mxu0 %v1880
    %v1948 = vpop.f32.mrb[0].mxu0
    %v1949 = vadd.f32 0.0, %v1948
    %v1950 = vpop.f32.mrb[0].mxu0
    %1951 = vdwg.mxu0
    %1953 = vrot.lane.b32.xlu0 %v1949, 32
    %v1954 = vpop.permute.xlu0 %1953
    %v1956 = vadd.f32 %v187, %v1954
    %v1957 = vtanh.pop %v1956
    %v1958 = vld [vmem:[%s6] sm:$0x1]
    %v1959 = vld [vmem:[#allocation6] sm:$0xff]
    %v1960 = vld [vmem:[#allocation6 + $0x8] sm:$0xff]
    %v1961 = vld [vmem:[#allocation6 + $0x10] sm:$0xff]
    %v1962 = vld [vmem:[#allocation6 + $0x18] sm:$0xff]
    %v1963 = vld [vmem:[#allocation6 + $0x20] sm:$0xff]
    %v1964 = vld [vmem:[#allocation6 + $0x28] sm:$0xff]
    %v1965 = vld [vmem:[#allocation6 + $0x30] sm:$0xff]
    %v1966 = vld [vmem:[#allocation6 + $0x38] sm:$0xff]
    %1967 = vmatprep.subr.mxu0 0.0
    %1968 = vmatpush1.msra.mxu0 %v1959
    %1969 = vmatprep.subr.mxu0 0.0
    %1970 = vmatpush1.msra.mxu0 %v1960
    %1971 = vmatprep.subr.mxu0 0.0
    %1972 = vmatpush1.msra.mxu0 %v1961
    %1973 = vmatprep.subr.mxu0 0.0
    %1974 = vmatpush1.msra.mxu0 %v1962
    %1975 = vmatprep.subr.mxu0 0.0
    %1976 = vmatpush1.msra.mxu0 0.0
    %1977 = vmatprep.subr.mxu0 0.0
    %1978 = vmatpush1.msra.mxu0 0.0
    %1979 = vmatprep.subr.mxu0 0.0
    %1980 = vmatpush1.msra.mxu0 0.0
    %1981 = vmatprep.subr.mxu0 0.0
    %1982 = vmatpush1.msra.mxu0 0.0
    %1983 = vmatprep.subr.mxu0 0.0
    %1984 = vmatpush1.msra.mxu0 0.0
    %1985 = vmatprep.subr.mxu0 0.0
    %1986 = vmatpush1.msra.mxu0 0.0
    %1987 = vmatprep.subr.mxu0 0.0
    %1988 = vmatpush1.msra.mxu0 0.0
    %1989 = vmatprep.subr.mxu0 0.0
    %1990 = vmatpush1.msra.mxu0 0.0
    %1991 = vmatprep.subr.mxu0 0.0
    %1992 = vmatpush1.msra.mxu0 0.0
    %1993 = vmatprep.subr.mxu0 0.0
    %1994 = vmatpush1.msra.mxu0 0.0
    %1995 = vmatprep.subr.mxu0 0.0
    %1996 = vmatpush1.msra.mxu0 0.0
    %1997 = vmatprep.subr.mxu0 0.0
    %1998 = vmatpush1.msra.mxu0 0.0
    %1999 = vmatprep.subr.mxu0 0.0
    %2000 = vmatpush1.msra.mxu0 0.0
    %2001 = vmatprep.subr.mxu0 0.0
    %2002 = vmatpush1.msra.mxu0 0.0
    %2003 = vmatprep.subr.mxu0 0.0
    %2004 = vmatpush1.msra.mxu0 0.0
    %2005 = vmatprep.subr.mxu0 0.0
    %2006 = vmatpush1.msra.mxu0 0.0
    %2007 = vmatprep.subr.mxu0 0.0
    %2008 = vmatpush1.msra.mxu0 0.0
    %2009 = vmatprep.subr.mxu0 0.0
    %2010 = vmatpush1.msra.mxu0 0.0
    %2011 = vmatprep.subr.mxu0 0.0
    %2012 = vmatpush1.msra.mxu0 0.0
    %2013 = vmatprep.subr.mxu0 0.0
    %2014 = vmatpush1.msra.mxu0 0.0
    %2015 = vmatprep.subr.mxu0 0.0
    %2016 = vmatpush1.msra.mxu0 0.0
    %2017 = vmatprep.subr.mxu0 0.0
    %2018 = vmatpush1.msra.mxu0 0.0
    %2019 = vmatprep.subr.mxu0 0.0
    %2020 = vmatpush1.msra.mxu0 0.0
    %2021 = vmatprep.subr.mxu0 0.0
    %2022 = vmatpush1.msra.mxu0 0.0
    %2023 = vmatprep.subr.mxu0 0.0
    %2024 = vmatpush1.msra.mxu0 0.0
    %2025 = vmatprep.subr.mxu0 0.0
    %2026 = vmatpush1.msra.mxu0 0.0
    %2027 = vmatprep.subr.mxu0 0.0
    %2028 = vmatpush1.msra.mxu0 0.0
    %2029 = vmatprep.subr.mxu0 0.0
    %2030 = vmatpush1.msra.mxu0 0.0
    %2031 = vmatprep.mubr.f32.mxu0 0.0
    %2032 = vmatmul.mubr.f32.gmra.mrb[0].mxu0 %v786
    %v2033 = vpop.f32.mrb[0].mxu0
    %v2034 = vadd.f32 0.0, %v2033
    %v2035 = vpop.f32.mrb[0].mxu0
    %2036 = vdwg.mxu0
    %v2038 = vlaneseq
    %v2039 = vshrl.u32 %v2038, 7
    %v2040 = vsub.s32 0, %v2039
    %v2041 = vrot.slane %v1958, %v2040
    %v2043 = vadd.f32 %v2041, %v2034
    %2045 = vrot.lane.b32.xlu0 %v1957, 96
    %v2046 = vpop.permute.xlu0 %2045
    %v2047 = vsel %vm107, %v2046, 0
    %2049 = vmatprep.subr.mxu0 0.0
    %2050 = vmatpush1.msra.mxu0 %v1963
    %2051 = vmatprep.subr.mxu0 0.0
    %2052 = vmatpush1.msra.mxu0 %v1964
    %2053 = vmatprep.subr.mxu0 0.0
    %2054 = vmatpush1.msra.mxu0 %v1965
    %2055 = vmatprep.subr.mxu0 0.0
    %2056 = vmatpush1.msra.mxu0 %v1966
    %2057 = vmatprep.subr.mxu0 0.0
    %2058 = vmatpush1.msra.mxu0 0.0
    %2059 = vmatprep.subr.mxu0 0.0
    %2060 = vmatpush1.msra.mxu0 0.0
    %2061 = vmatprep.subr.mxu0 0.0
    %2062 = vmatpush1.msra.mxu0 0.0
    %2063 = vmatprep.subr.mxu0 0.0
    %2064 = vmatpush1.msra.mxu0 0.0
    %2065 = vmatprep.subr.mxu0 0.0
    %2066 = vmatpush1.msra.mxu0 0.0
    %2067 = vmatprep.subr.mxu0 0.0
    %2068 = vmatpush1.msra.mxu0 0.0
    %2069 = vmatprep.subr.mxu0 0.0
    %2070 = vmatpush1.msra.mxu0 0.0
    %2071 = vmatprep.subr.mxu0 0.0
    %2072 = vmatpush1.msra.mxu0 0.0
    %2073 = vmatprep.subr.mxu0 0.0
    %2074 = vmatpush1.msra.mxu0 0.0
    %2075 = vmatprep.subr.mxu0 0.0
    %2076 = vmatpush1.msra.mxu0 0.0
    %2077 = vmatprep.subr.mxu0 0.0
    %2078 = vmatpush1.msra.mxu0 0.0
    %2079 = vmatprep.subr.mxu0 0.0
    %2080 = vmatpush1.msra.mxu0 0.0
    %2081 = vmatprep.subr.mxu0 0.0
    %2082 = vmatpush1.msra.mxu0 0.0
    %2083 = vmatprep.subr.mxu0 0.0
    %2084 = vmatpush1.msra.mxu0 0.0
    %2085 = vmatprep.subr.mxu0 0.0
    %2086 = vmatpush1.msra.mxu0 0.0
    %2087 = vmatprep.subr.mxu0 0.0
    %2088 = vmatpush1.msra.mxu0 0.0
    %2089 = vmatprep.subr.mxu0 0.0
    %2090 = vmatpush1.msra.mxu0 0.0
    %2091 = vmatprep.subr.mxu0 0.0
    %2092 = vmatpush1.msra.mxu0 0.0
    %2093 = vmatprep.subr.mxu0 0.0
    %2094 = vmatpush1.msra.mxu0 0.0
    %2095 = vmatprep.subr.mxu0 0.0
    %2096 = vmatpush1.msra.mxu0 0.0
    %2097 = vmatprep.subr.mxu0 0.0
    %2098 = vmatpush1.msra.mxu0 0.0
    %2099 = vmatprep.subr.mxu0 0.0
    %2100 = vmatpush1.msra.mxu0 0.0
    %2101 = vmatprep.subr.mxu0 0.0
    %2102 = vmatpush1.msra.mxu0 0.0
    %2103 = vmatprep.subr.mxu0 0.0
    %2104 = vmatpush1.msra.mxu0 0.0
    %2105 = vmatprep.subr.mxu0 0.0
    %2106 = vmatpush1.msra.mxu0 0.0
    %2107 = vmatprep.subr.mxu0 0.0
    %2108 = vmatpush1.msra.mxu0 0.0
    %2109 = vmatprep.subr.mxu0 0.0
    %2110 = vmatpush1.msra.mxu0 0.0
    %2111 = vmatprep.subr.mxu0 0.0
    %2112 = vmatpush1.msra.mxu0 0.0
    %2113 = vmatprep.mubr.f32.mxu0 0.0
    %2114 = vmatmul.mubr.f32.gmra.mrb[0].mxu0 %v2047
    %v2115 = vpop.f32.mrb[0].mxu0
    %v2116 = vadd.f32 0.0, %v2115
    %v2117 = vpop.f32.mrb[0].mxu0
    %2118 = vdwg.mxu0
    %v2119 = vadd.f32 %v2043, %v2116
    %2120 = vmatprep.subr.mxu0 0.0
    %2121 = vmatpush1.msra.mxu0 %v1959
    %2122 = vmatprep.subr.mxu0 0.0
    %2123 = vmatpush1.msra.mxu0 %v1960
    %2124 = vmatprep.subr.mxu0 0.0
    %2125 = vmatpush1.msra.mxu0 %v1961
    %2126 = vmatprep.subr.mxu0 0.0
    %2127 = vmatpush1.msra.mxu0 %v1962
    %2128 = vmatprep.subr.mxu0 0.0
    %2129 = vmatpush1.msra.mxu0 0.0
    %2130 = vmatprep.subr.mxu0 0.0
    %2131 = vmatpush1.msra.mxu0 0.0
    %2132 = vmatprep.subr.mxu0 0.0
    %2133 = vmatpush1.msra.mxu0 0.0
    %2134 = vmatprep.subr.mxu0 0.0
    %2135 = vmatpush1.msra.mxu0 0.0
    %2136 = vmatprep.subr.mxu0 0.0
    %2137 = vmatpush1.msra.mxu0 0.0
    %2138 = vmatprep.subr.mxu0 0.0
    %2139 = vmatpush1.msra.mxu0 0.0
    %2140 = vmatprep.subr.mxu0 0.0
    %2141 = vmatpush1.msra.mxu0 0.0
    %2142 = vmatprep.subr.mxu0 0.0
    %2143 = vmatpush1.msra.mxu0 0.0
    %2144 = vmatprep.subr.mxu0 0.0
    %2145 = vmatpush1.msra.mxu0 0.0
    %2146 = vmatprep.subr.mxu0 0.0
    %2147 = vmatpush1.msra.mxu0 0.0
    %2148 = vmatprep.subr.mxu0 0.0
    %2149 = vmatpush1.msra.mxu0 0.0
    %2150 = vmatprep.subr.mxu0 0.0
    %2151 = vmatpush1.msra.mxu0 0.0
    %2152 = vmatprep.subr.mxu0 0.0
    %2153 = vmatpush1.msra.mxu0 0.0
    %2154 = vmatprep.subr.mxu0 0.0
    %2155 = vmatpush1.msra.mxu0 0.0
    %2156 = vmatprep.subr.mxu0 0.0
    %2157 = vmatpush1.msra.mxu0 0.0
    %2158 = vmatprep.subr.mxu0 0.0
    %2159 = vmatpush1.msra.mxu0 0.0
    %2160 = vmatprep.subr.mxu0 0.0
    %2161 = vmatpush1.msra.mxu0 0.0
    %2162 = vmatprep.subr.mxu0 0.0
    %2163 = vmatpush1.msra.mxu0 0.0
    %2164 = vmatprep.subr.mxu0 0.0
    %2165 = vmatpush1.msra.mxu0 0.0
    %2166 = vmatprep.subr.mxu0 0.0
    %2167 = vmatpush1.msra.mxu0 0.0
    %2168 = vmatprep.subr.mxu0 0.0
    %2169 = vmatpush1.msra.mxu0 0.0
    %2170 = vmatprep.subr.mxu0 0.0
    %2171 = vmatpush1.msra.mxu0 0.0
    %2172 = vmatprep.subr.mxu0 0.0
    %2173 = vmatpush1.msra.mxu0 0.0
    %2174 = vmatprep.subr.mxu0 0.0
    %2175 = vmatpush1.msra.mxu0 0.0
    %2176 = vmatprep.subr.mxu0 0.0
    %2177 = vmatpush1.msra.mxu0 0.0
    %2178 = vmatprep.subr.mxu0 0.0
    %2179 = vmatpush1.msra.mxu0 0.0
    %2180 = vmatprep.subr.mxu0 0.0
    %2181 = vmatpush1.msra.mxu0 0.0
    %2182 = vmatprep.subr.mxu0 0.0
    %2183 = vmatpush1.msra.mxu0 0.0
    %2184 = vmatprep.mubr.f32.mxu0 0.0
    %2185 = vmatmul.mubr.f32.gmra.mrb[0].mxu0 %v861
    %v2186 = vpop.f32.mrb[0].mxu0
    %v2187 = vadd.f32 0.0, %v2186
    %v2188 = vpop.f32.mrb[0].mxu0
    %2189 = vdwg.mxu0
    %v2190 = vadd.f32 %v2041, %v2187
    %2191 = vmatprep.subr.mxu0 0.0
    %2192 = vmatpush1.msra.mxu0 %v1963
    %2193 = vmatprep.subr.mxu0 0.0
    %2194 = vmatpush1.msra.mxu0 %v1964
    %2195 = vmatprep.subr.mxu0 0.0
    %2196 = vmatpush1.msra.mxu0 %v1965
    %2197 = vmatprep.subr.mxu0 0.0
    %2198 = vmatpush1.msra.mxu0 %v1966
    %2199 = vmatprep.subr.mxu0 0.0
    %2200 = vmatpush1.msra.mxu0 0.0
    %2201 = vmatprep.subr.mxu0 0.0
    %2202 = vmatpush1.msra.mxu0 0.0
    %2203 = vmatprep.subr.mxu0 0.0
    %2204 = vmatpush1.msra.mxu0 0.0
    %2205 = vmatprep.subr.mxu0 0.0
    %2206 = vmatpush1.msra.mxu0 0.0
    %2207 = vmatprep.subr.mxu0 0.0
    %2208 = vmatpush1.msra.mxu0 0.0
    %2209 = vmatprep.subr.mxu0 0.0
    %2210 = vmatpush1.msra.mxu0 0.0
    %2211 = vmatprep.subr.mxu0 0.0
    %2212 = vmatpush1.msra.mxu0 0.0
    %2213 = vmatprep.subr.mxu0 0.0
    %2214 = vmatpush1.msra.mxu0 0.0
    %2215 = vmatprep.subr.mxu0 0.0
    %2216 = vmatpush1.msra.mxu0 0.0
    %2217 = vmatprep.subr.mxu0 0.0
    %2218 = vmatpush1.msra.mxu0 0.0
    %2219 = vmatprep.subr.mxu0 0.0
    %2220 = vmatpush1.msra.mxu0 0.0
    %2221 = vmatprep.subr.mxu0 0.0
    %2222 = vmatpush1.msra.mxu0 0.0
    %2223 = vmatprep.subr.mxu0 0.0
    %2224 = vmatpush1.msra.mxu0 0.0
    %2225 = vmatprep.subr.mxu0 0.0
    %2226 = vmatpush1.msra.mxu0 0.0
    %2227 = vmatprep.subr.mxu0 0.0
    %2228 = vmatpush1.msra.mxu0 0.0
    %2229 = vmatprep.subr.mxu0 0.0
    %2230 = vmatpush1.msra.mxu0 0.0
    %2231 = vmatprep.subr.mxu0 0.0
    %2232 = vmatpush1.msra.mxu0 0.0
    %2233 = vmatprep.subr.mxu0 0.0
    %2234 = vmatpush1.msra.mxu0 0.0
    %2235 = vmatprep.subr.mxu0 0.0
    %2236 = vmatpush1.msra.mxu0 0.0
    %2237 = vmatprep.subr.mxu0 0.0
    %2238 = vmatpush1.msra.mxu0 0.0
    %2239 = vmatprep.subr.mxu0 0.0
    %2240 = vmatpush1.msra.mxu0 0.0
    %2241 = vmatprep.subr.mxu0 0.0
    %2242 = vmatpush1.msra.mxu0 0.0
    %2243 = vmatprep.subr.mxu0 0.0
    %2244 = vmatpush1.msra.mxu0 0.0
    %2245 = vmatprep.subr.mxu0 0.0
    %2246 = vmatpush1.msra.mxu0 0.0
    %2247 = vmatprep.subr.mxu0 0.0
    %2248 = vmatpush1.msra.mxu0 0.0
    %2249 = vmatprep.subr.mxu0 0.0
    %2250 = vmatpush1.msra.mxu0 0.0
    %2251 = vmatprep.subr.mxu0 0.0
    %2252 = vmatpush1.msra.mxu0 0.0
    %2253 = vmatprep.subr.mxu0 0.0
    %2254 = vmatpush1.msra.mxu0 0.0
    %2255 = vmatprep.mubr.f32.mxu0 0.0
    %2256 = vmatmul.mubr.f32.gmra.mrb[0].mxu0 %v1880
    %v2257 = vpop.f32.mrb[0].mxu0
    %v2258 = vadd.f32 0.0, %v2257
    %v2259 = vpop.f32.mrb[0].mxu0
    %2260 = vdwg.mxu0
    %v2261 = vadd.f32 %v2190, %v2258
    %2262 = vmatprep.subr.mxu0 0.0
    %2263 = vmatpush1.msra.mxu0 %v1959
    %2264 = vmatprep.subr.mxu0 0.0
    %2265 = vmatpush1.msra.mxu0 %v1960
    %2266 = vmatprep.subr.mxu0 0.0
    %2267 = vmatpush1.msra.mxu0 %v1961
    %2268 = vmatprep.subr.mxu0 0.0
    %2269 = vmatpush1.msra.mxu0 %v1962
    %2270 = vmatprep.subr.mxu0 0.0
    %2271 = vmatpush1.msra.mxu0 0.0
    %2272 = vmatprep.subr.mxu0 0.0
    %2273 = vmatpush1.msra.mxu0 0.0
    %2274 = vmatprep.subr.mxu0 0.0
    %2275 = vmatpush1.msra.mxu0 0.0
    %2276 = vmatprep.subr.mxu0 0.0
    %2277 = vmatpush1.msra.mxu0 0.0
    %2278 = vmatprep.subr.mxu0 0.0
    %2279 = vmatpush1.msra.mxu0 0.0
    %2280 = vmatprep.subr.mxu0 0.0
    %2281 = vmatpush1.msra.mxu0 0.0
    %2282 = vmatprep.subr.mxu0 0.0
    %2283 = vmatpush1.msra.mxu0 0.0
    %2284 = vmatprep.subr.mxu0 0.0
    %2285 = vmatpush1.msra.mxu0 0.0
    %2286 = vmatprep.subr.mxu0 0.0
    %2287 = vmatpush1.msra.mxu0 0.0
    %2288 = vmatprep.subr.mxu0 0.0
    %2289 = vmatpush1.msra.mxu0 0.0
    %2290 = vmatprep.subr.mxu0 0.0
    %2291 = vmatpush1.msra.mxu0 0.0
    %2292 = vmatprep.subr.mxu0 0.0
    %2293 = vmatpush1.msra.mxu0 0.0
    %2294 = vmatprep.subr.mxu0 0.0
    %2295 = vmatpush1.msra.mxu0 0.0
    %2296 = vmatprep.subr.mxu0 0.0
    %2297 = vmatpush1.msra.mxu0 0.0
    %2298 = vmatprep.subr.mxu0 0.0
    %2299 = vmatpush1.msra.mxu0 0.0
    %2300 = vmatprep.subr.mxu0 0.0
    %2301 = vmatpush1.msra.mxu0 0.0
    %2302 = vmatprep.subr.mxu0 0.0
    %2303 = vmatpush1.msra.mxu0 0.0
    %2304 = vmatprep.subr.mxu0 0.0
    %2305 = vmatpush1.msra.mxu0 0.0
    %2306 = vmatprep.subr.mxu0 0.0
    %2307 = vmatpush1.msra.mxu0 0.0
    %2308 = vmatprep.subr.mxu0 0.0
    %2309 = vmatpush1.msra.mxu0 0.0
    %2310 = vmatprep.subr.mxu0 0.0
    %2311 = vmatpush1.msra.mxu0 0.0
    %2312 = vmatprep.subr.mxu0 0.0
    %2313 = vmatpush1.msra.mxu0 0.0
    %2314 = vmatprep.subr.mxu0 0.0
    %2315 = vmatpush1.msra.mxu0 0.0
    %2316 = vmatprep.subr.mxu0 0.0
    %2317 = vmatpush1.msra.mxu0 0.0
    %2318 = vmatprep.subr.mxu0 0.0
    %2319 = vmatpush1.msra.mxu0 0.0
    %2320 = vmatprep.subr.mxu0 0.0
    %2321 = vmatpush1.msra.mxu0 0.0
    %2322 = vmatprep.subr.mxu0 0.0
    %2323 = vmatpush1.msra.mxu0 0.0
    %2324 = vmatprep.subr.mxu0 0.0
    %2325 = vmatpush1.msra.mxu0 0.0
    %2326 = vmatprep.mubr.f32.mxu0 0.0
    %2327 = vmatmul.mubr.f32.gmra.mrb[0].mxu0 %v936
    %v2328 = vpop.f32.mrb[0].mxu0
    %v2329 = vadd.f32 0.0, %v2328
    %v2330 = vpop.f32.mrb[0].mxu0
    %2331 = vdwg.mxu0
    %v2332 = vadd.f32 %v2041, %v2329
    %2333 = vmatprep.subr.mxu0 0.0
    %2334 = vmatpush1.msra.mxu0 %v1963
    %2335 = vmatprep.subr.mxu0 0.0
    %2336 = vmatpush1.msra.mxu0 %v1964
    %2337 = vmatprep.subr.mxu0 0.0
    %2338 = vmatpush1.msra.mxu0 %v1965
    %2339 = vmatprep.subr.mxu0 0.0
    %2340 = vmatpush1.msra.mxu0 %v1966
    %2341 = vmatprep.subr.mxu0 0.0
    %2342 = vmatpush1.msra.mxu0 0.0
    %2343 = vmatprep.subr.mxu0 0.0
    %2344 = vmatpush1.msra.mxu0 0.0
    %2345 = vmatprep.subr.mxu0 0.0
    %2346 = vmatpush1.msra.mxu0 0.0
    %2347 = vmatprep.subr.mxu0 0.0
    %2348 = vmatpush1.msra.mxu0 0.0
    %2349 = vmatprep.subr.mxu0 0.0
    %2350 = vmatpush1.msra.mxu0 0.0
    %2351 = vmatprep.subr.mxu0 0.0
    %2352 = vmatpush1.msra.mxu0 0.0
    %2353 = vmatprep.subr.mxu0 0.0
    %2354 = vmatpush1.msra.mxu0 0.0
    %2355 = vmatprep.subr.mxu0 0.0
    %2356 = vmatpush1.msra.mxu0 0.0
    %2357 = vmatprep.subr.mxu0 0.0
    %2358 = vmatpush1.msra.mxu0 0.0
    %2359 = vmatprep.subr.mxu0 0.0
    %2360 = vmatpush1.msra.mxu0 0.0
    %2361 = vmatprep.subr.mxu0 0.0
    %2362 = vmatpush1.msra.mxu0 0.0
    %2363 = vmatprep.subr.mxu0 0.0
    %2364 = vmatpush1.msra.mxu0 0.0
    %2365 = vmatprep.subr.mxu0 0.0
    %2366 = vmatpush1.msra.mxu0 0.0
    %2367 = vmatprep.subr.mxu0 0.0
    %2368 = vmatpush1.msra.mxu0 0.0
    %2369 = vmatprep.subr.mxu0 0.0
    %2370 = vmatpush1.msra.mxu0 0.0
    %2371 = vmatprep.subr.mxu0 0.0
    %2372 = vmatpush1.msra.mxu0 0.0
    %2373 = vmatprep.subr.mxu0 0.0
    %2374 = vmatpush1.msra.mxu0 0.0
    %2375 = vmatprep.subr.mxu0 0.0
    %2376 = vmatpush1.msra.mxu0 0.0
    %2377 = vmatprep.subr.mxu0 0.0
    %2378 = vmatpush1.msra.mxu0 0.0
    %2379 = vmatprep.subr.mxu0 0.0
    %2380 = vmatpush1.msra.mxu0 0.0
    %2381 = vmatprep.subr.mxu0 0.0
    %2382 = vmatpush1.msra.mxu0 0.0
    %2383 = vmatprep.subr.mxu0 0.0
    %2384 = vmatpush1.msra.mxu0 0.0
    %2385 = vmatprep.subr.mxu0 0.0
    %2386 = vmatpush1.msra.mxu0 0.0
    %2387 = vmatprep.subr.mxu0 0.0
    %2388 = vmatpush1.msra.mxu0 0.0
    %2389 = vmatprep.subr.mxu0 0.0
    %2390 = vmatpush1.msra.mxu0 0.0
    %2391 = vmatprep.subr.mxu0 0.0
    %2392 = vmatpush1.msra.mxu0 0.0
    %2393 = vmatprep.subr.mxu0 0.0
    %2394 = vmatpush1.msra.mxu0 0.0
    %2395 = vmatprep.subr.mxu0 0.0
    %2396 = vmatpush1.msra.mxu0 0.0
    %2397 = vmatprep.mubr.f32.mxu0 0.0
    %2398 = vmatmul.mubr.f32.gmra.mrb[0].mxu0 %v1799
    %v2399 = vpop.f32.mrb[0].mxu0
    %v2400 = vadd.f32 0.0, %v2399
    %v2401 = vpop.f32.mrb[0].mxu0
    %2402 = vdwg.mxu0
    %v2403 = vadd.f32 %v2332, %v2400
    %2404 = vmatprep.subr.mxu0 0.0
    %2405 = vmatpush1.msra.mxu0 %v1959
    %2406 = vmatprep.subr.mxu0 0.0
    %2407 = vmatpush1.msra.mxu0 %v1960
    %2408 = vmatprep.subr.mxu0 0.0
    %2409 = vmatpush1.msra.mxu0 %v1961
    %2410 = vmatprep.subr.mxu0 0.0
    %2411 = vmatpush1.msra.mxu0 %v1962
    %2412 = vmatprep.subr.mxu0 0.0
    %2413 = vmatpush1.msra.mxu0 0.0
    %2414 = vmatprep.subr.mxu0 0.0
    %2415 = vmatpush1.msra.mxu0 0.0
    %2416 = vmatprep.subr.mxu0 0.0
    %2417 = vmatpush1.msra.mxu0 0.0
    %2418 = vmatprep.subr.mxu0 0.0
    %2419 = vmatpush1.msra.mxu0 0.0
    %2420 = vmatprep.subr.mxu0 0.0
    %2421 = vmatpush1.msra.mxu0 0.0
    %2422 = vmatprep.subr.mxu0 0.0
    %2423 = vmatpush1.msra.mxu0 0.0
    %2424 = vmatprep.subr.mxu0 0.0
    %2425 = vmatpush1.msra.mxu0 0.0
    %2426 = vmatprep.subr.mxu0 0.0
    %2427 = vmatpush1.msra.mxu0 0.0
    %2428 = vmatprep.subr.mxu0 0.0
    %2429 = vmatpush1.msra.mxu0 0.0
    %2430 = vmatprep.subr.mxu0 0.0
    %2431 = vmatpush1.msra.mxu0 0.0
    %2432 = vmatprep.subr.mxu0 0.0
    %2433 = vmatpush1.msra.mxu0 0.0
    %2434 = vmatprep.subr.mxu0 0.0
    %2435 = vmatpush1.msra.mxu0 0.0
    %2436 = vmatprep.subr.mxu0 0.0
    %2437 = vmatpush1.msra.mxu0 0.0
    %2438 = vmatprep.subr.mxu0 0.0
    %2439 = vmatpush1.msra.mxu0 0.0
    %2440 = vmatprep.subr.mxu0 0.0
    %2441 = vmatpush1.msra.mxu0 0.0
    %2442 = vmatprep.subr.mxu0 0.0
    %2443 = vmatpush1.msra.mxu0 0.0
    %2444 = vmatprep.subr.mxu0 0.0
    %2445 = vmatpush1.msra.mxu0 0.0
    %2446 = vmatprep.subr.mxu0 0.0
    %2447 = vmatpush1.msra.mxu0 0.0
    %2448 = vmatprep.subr.mxu0 0.0
    %2449 = vmatpush1.msra.mxu0 0.0
    %2450 = vmatprep.subr.mxu0 0.0
    %2451 = vmatpush1.msra.mxu0 0.0
    %2452 = vmatprep.subr.mxu0 0.0
    %2453 = vmatpush1.msra.mxu0 0.0
    %2454 = vmatprep.subr.mxu0 0.0
    %2455 = vmatpush1.msra.mxu0 0.0
    %2456 = vmatprep.subr.mxu0 0.0
    %2457 = vmatpush1.msra.mxu0 0.0
    %2458 = vmatprep.subr.mxu0 0.0
    %2459 = vmatpush1.msra.mxu0 0.0
    %2460 = vmatprep.subr.mxu0 0.0
    %2461 = vmatpush1.msra.mxu0 0.0
    %2462 = vmatprep.subr.mxu0 0.0
    %2463 = vmatpush1.msra.mxu0 0.0
    %2464 = vmatprep.subr.mxu0 0.0
    %2465 = vmatpush1.msra.mxu0 0.0
    %2466 = vmatprep.subr.mxu0 0.0
    %2467 = vmatpush1.msra.mxu0 0.0
    %2468 = vmatprep.mubr.f32.mxu0 0.0
    %2469 = vmatmul.mubr.f32.gmra.mrb[0].mxu0 %v1011
    %v2470 = vpop.f32.mrb[0].mxu0
    %v2471 = vadd.f32 0.0, %v2470
    %v2472 = vpop.f32.mrb[0].mxu0
    %2473 = vdwg.mxu0
    %v2474 = vadd.f32 %v2041, %v2471
    %2475 = vmatprep.subr.mxu0 0.0
    %2476 = vmatpush1.msra.mxu0 %v1963
    %2477 = vmatprep.subr.mxu0 0.0
    %2478 = vmatpush1.msra.mxu0 %v1964
    %2479 = vmatprep.subr.mxu0 0.0
    %2480 = vmatpush1.msra.mxu0 %v1965
    %2481 = vmatprep.subr.mxu0 0.0
    %2482 = vmatpush1.msra.mxu0 %v1966
    %2483 = vmatprep.subr.mxu0 0.0
    %2484 = vmatpush1.msra.mxu0 0.0
    %2485 = vmatprep.subr.mxu0 0.0
    %2486 = vmatpush1.msra.mxu0 0.0
    %2487 = vmatprep.subr.mxu0 0.0
    %2488 = vmatpush1.msra.mxu0 0.0
    %2489 = vmatprep.subr.mxu0 0.0
    %2490 = vmatpush1.msra.mxu0 0.0
    %2491 = vmatprep.subr.mxu0 0.0
    %2492 = vmatpush1.msra.mxu0 0.0
    %2493 = vmatprep.subr.mxu0 0.0
    %2494 = vmatpush1.msra.mxu0 0.0
    %2495 = vmatprep.subr.mxu0 0.0
    %2496 = vmatpush1.msra.mxu0 0.0
    %2497 = vmatprep.subr.mxu0 0.0
    %2498 = vmatpush1.msra.mxu0 0.0
    %2499 = vmatprep.subr.mxu0 0.0
    %2500 = vmatpush1.msra.mxu0 0.0
    %2501 = vmatprep.subr.mxu0 0.0
    %2502 = vmatpush1.msra.mxu0 0.0
    %2503 = vmatprep.subr.mxu0 0.0
    %2504 = vmatpush1.msra.mxu0 0.0
    %2505 = vmatprep.subr.mxu0 0.0
    %2506 = vmatpush1.msra.mxu0 0.0
    %2507 = vmatprep.subr.mxu0 0.0
    %2508 = vmatpush1.msra.mxu0 0.0
    %2509 = vmatprep.subr.mxu0 0.0
    %2510 = vmatpush1.msra.mxu0 0.0
    %2511 = vmatprep.subr.mxu0 0.0
    %2512 = vmatpush1.msra.mxu0 0.0
    %2513 = vmatprep.subr.mxu0 0.0
    %2514 = vmatpush1.msra.mxu0 0.0
    %2515 = vmatprep.subr.mxu0 0.0
    %2516 = vmatpush1.msra.mxu0 0.0
    %2517 = vmatprep.subr.mxu0 0.0
    %2518 = vmatpush1.msra.mxu0 0.0
    %2519 = vmatprep.subr.mxu0 0.0
    %2520 = vmatpush1.msra.mxu0 0.0
    %2521 = vmatprep.subr.mxu0 0.0
    %2522 = vmatpush1.msra.mxu0 0.0
    %2523 = vmatprep.subr.mxu0 0.0
    %2524 = vmatpush1.msra.mxu0 0.0
    %2525 = vmatprep.subr.mxu0 0.0
    %2526 = vmatpush1.msra.mxu0 0.0
    %2527 = vmatprep.subr.mxu0 0.0
    %2528 = vmatpush1.msra.mxu0 0.0
    %2529 = vmatprep.subr.mxu0 0.0
    %2530 = vmatpush1.msra.mxu0 0.0
    %2531 = vmatprep.subr.mxu0 0.0
    %2532 = vmatpush1.msra.mxu0 0.0
    %2533 = vmatprep.subr.mxu0 0.0
    %2534 = vmatpush1.msra.mxu0 0.0
    %2535 = vmatprep.subr.mxu0 0.0
    %2536 = vmatpush1.msra.mxu0 0.0
    %2537 = vmatprep.subr.mxu0 0.0
    %2538 = vmatpush1.msra.mxu0 0.0
    %2539 = vmatprep.mubr.f32.mxu0 0.0
    %2540 = vmatmul.mubr.f32.gmra.mrb[0].mxu0 %v1718
    %v2541 = vpop.f32.mrb[0].mxu0
    %v2542 = vadd.f32 0.0, %v2541
    %v2543 = vpop.f32.mrb[0].mxu0
    %2544 = vdwg.mxu0
    %v2545 = vadd.f32 %v2474, %v2542
    %2546 = vmatprep.subr.mxu0 0.0
    %2547 = vmatpush1.msra.mxu0 %v1959
    %2548 = vmatprep.subr.mxu0 0.0
    %2549 = vmatpush1.msra.mxu0 %v1960
    %2550 = vmatprep.subr.mxu0 0.0
    %2551 = vmatpush1.msra.mxu0 %v1961
    %2552 = vmatprep.subr.mxu0 0.0
    %2553 = vmatpush1.msra.mxu0 %v1962
    %2554 = vmatprep.subr.mxu0 0.0
    %2555 = vmatpush1.msra.mxu0 0.0
    %2556 = vmatprep.subr.mxu0 0.0
    %2557 = vmatpush1.msra.mxu0 0.0
    %2558 = vmatprep.subr.mxu0 0.0
    %2559 = vmatpush1.msra.mxu0 0.0
    %2560 = vmatprep.subr.mxu0 0.0
    %2561 = vmatpush1.msra.mxu0 0.0
    %2562 = vmatprep.subr.mxu0 0.0
    %2563 = vmatpush1.msra.mxu0 0.0
    %2564 = vmatprep.subr.mxu0 0.0
    %2565 = vmatpush1.msra.mxu0 0.0
    %2566 = vmatprep.subr.mxu0 0.0
    %2567 = vmatpush1.msra.mxu0 0.0
    %2568 = vmatprep.subr.mxu0 0.0
    %2569 = vmatpush1.msra.mxu0 0.0
    %2570 = vmatprep.subr.mxu0 0.0
    %2571 = vmatpush1.msra.mxu0 0.0
    %2572 = vmatprep.subr.mxu0 0.0
    %2573 = vmatpush1.msra.mxu0 0.0
    %2574 = vmatprep.subr.mxu0 0.0
    %2575 = vmatpush1.msra.mxu0 0.0
    %2576 = vmatprep.subr.mxu0 0.0
    %2577 = vmatpush1.msra.mxu0 0.0
    %2578 = vmatprep.subr.mxu0 0.0
    %2579 = vmatpush1.msra.mxu0 0.0
    %2580 = vmatprep.subr.mxu0 0.0
    %2581 = vmatpush1.msra.mxu0 0.0
    %2582 = vmatprep.subr.mxu0 0.0
    %2583 = vmatpush1.msra.mxu0 0.0
    %2584 = vmatprep.subr.mxu0 0.0
    %2585 = vmatpush1.msra.mxu0 0.0
    %2586 = vmatprep.subr.mxu0 0.0
    %2587 = vmatpush1.msra.mxu0 0.0
    %2588 = vmatprep.subr.mxu0 0.0
    %2589 = vmatpush1.msra.mxu0 0.0
    %2590 = vmatprep.subr.mxu0 0.0
    %2591 = vmatpush1.msra.mxu0 0.0
    %2592 = vmatprep.subr.mxu0 0.0
    %2593 = vmatpush1.msra.mxu0 0.0
    %2594 = vmatprep.subr.mxu0 0.0
    %2595 = vmatpush1.msra.mxu0 0.0
    %2596 = vmatprep.subr.mxu0 0.0
    %2597 = vmatpush1.msra.mxu0 0.0
    %2598 = vmatprep.subr.mxu0 0.0
    %2599 = vmatpush1.msra.mxu0 0.0
    %2600 = vmatprep.subr.mxu0 0.0
    %2601 = vmatpush1.msra.mxu0 0.0
    %2602 = vmatprep.subr.mxu0 0.0
    %2603 = vmatpush1.msra.mxu0 0.0
    %2604 = vmatprep.subr.mxu0 0.0
    %2605 = vmatpush1.msra.mxu0 0.0
    %2606 = vmatprep.subr.mxu0 0.0
    %2607 = vmatpush1.msra.mxu0 0.0
    %2608 = vmatprep.subr.mxu0 0.0
    %2609 = vmatpush1.msra.mxu0 0.0
    %2610 = vmatprep.mubr.f32.mxu0 0.0
    %2611 = vmatmul.mubr.f32.gmra.mrb[0].mxu0 %v1086
    %v2612 = vpop.f32.mrb[0].mxu0
    %v2613 = vadd.f32 0.0, %v2612
    %v2614 = vpop.f32.mrb[0].mxu0
    %2615 = vdwg.mxu0
    %v2616 = vadd.f32 %v2041, %v2613
    %2617 = vmatprep.subr.mxu0 0.0
    %2618 = vmatpush1.msra.mxu0 %v1963
    %2619 = vmatprep.subr.mxu0 0.0
    %2620 = vmatpush1.msra.mxu0 %v1964
    %2621 = vmatprep.subr.mxu0 0.0
    %2622 = vmatpush1.msra.mxu0 %v1965
    %2623 = vmatprep.subr.mxu0 0.0
    %2624 = vmatpush1.msra.mxu0 %v1966
    %2625 = vmatprep.subr.mxu0 0.0
    %2626 = vmatpush1.msra.mxu0 0.0
    %2627 = vmatprep.subr.mxu0 0.0
    %2628 = vmatpush1.msra.mxu0 0.0
    %2629 = vmatprep.subr.mxu0 0.0
    %2630 = vmatpush1.msra.mxu0 0.0
    %2631 = vmatprep.subr.mxu0 0.0
    %2632 = vmatpush1.msra.mxu0 0.0
    %2633 = vmatprep.subr.mxu0 0.0
    %2634 = vmatpush1.msra.mxu0 0.0
    %2635 = vmatprep.subr.mxu0 0.0
    %2636 = vmatpush1.msra.mxu0 0.0
    %2637 = vmatprep.subr.mxu0 0.0
    %2638 = vmatpush1.msra.mxu0 0.0
    %2639 = vmatprep.subr.mxu0 0.0
    %2640 = vmatpush1.msra.mxu0 0.0
    %2641 = vmatprep.subr.mxu0 0.0
    %2642 = vmatpush1.msra.mxu0 0.0
    %2643 = vmatprep.subr.mxu0 0.0
    %2644 = vmatpush1.msra.mxu0 0.0
    %2645 = vmatprep.subr.mxu0 0.0
    %2646 = vmatpush1.msra.mxu0 0.0
    %2647 = vmatprep.subr.mxu0 0.0
    %2648 = vmatpush1.msra.mxu0 0.0
    %2649 = vmatprep.subr.mxu0 0.0
    %2650 = vmatpush1.msra.mxu0 0.0
    %2651 = vmatprep.subr.mxu0 0.0
    %2652 = vmatpush1.msra.mxu0 0.0
    %2653 = vmatprep.subr.mxu0 0.0
    %2654 = vmatpush1.msra.mxu0 0.0
    %2655 = vmatprep.subr.mxu0 0.0
    %2656 = vmatpush1.msra.mxu0 0.0
    %2657 = vmatprep.subr.mxu0 0.0
    %2658 = vmatpush1.msra.mxu0 0.0
    %2659 = vmatprep.subr.mxu0 0.0
    %2660 = vmatpush1.msra.mxu0 0.0
    %2661 = vmatprep.subr.mxu0 0.0
    %2662 = vmatpush1.msra.mxu0 0.0
    %2663 = vmatprep.subr.mxu0 0.0
    %2664 = vmatpush1.msra.mxu0 0.0
    %2665 = vmatprep.subr.mxu0 0.0
    %2666 = vmatpush1.msra.mxu0 0.0
    %2667 = vmatprep.subr.mxu0 0.0
    %2668 = vmatpush1.msra.mxu0 0.0
    %2669 = vmatprep.subr.mxu0 0.0
    %2670 = vmatpush1.msra.mxu0 0.0
    %2671 = vmatprep.subr.mxu0 0.0
    %2672 = vmatpush1.msra.mxu0 0.0
    %2673 = vmatprep.subr.mxu0 0.0
    %2674 = vmatpush1.msra.mxu0 0.0
    %2675 = vmatprep.subr.mxu0 0.0
    %2676 = vmatpush1.msra.mxu0 0.0
    %2677 = vmatprep.subr.mxu0 0.0
    %2678 = vmatpush1.msra.mxu0 0.0
    %2679 = vmatprep.subr.mxu0 0.0
    %2680 = vmatpush1.msra.mxu0 0.0
    %2681 = vmatprep.mubr.f32.mxu0 0.0
    %2682 = vmatmul.mubr.f32.gmra.mrb[0].mxu0 %v1637
    %v2683 = vpop.f32.mrb[0].mxu0
    %v2684 = vadd.f32 0.0, %v2683
    %v2685 = vpop.f32.mrb[0].mxu0
    %2686 = vdwg.mxu0
    %v2687 = vadd.f32 %v2616, %v2684
    %2688 = vmatprep.subr.mxu0 0.0
    %2689 = vmatpush1.msra.mxu0 %v1959
    %2690 = vmatprep.subr.mxu0 0.0
    %2691 = vmatpush1.msra.mxu0 %v1960
    %2692 = vmatprep.subr.mxu0 0.0
    %2693 = vmatpush1.msra.mxu0 %v1961
    %2694 = vmatprep.subr.mxu0 0.0
    %2695 = vmatpush1.msra.mxu0 %v1962
    %2696 = vmatprep.subr.mxu0 0.0
    %2697 = vmatpush1.msra.mxu0 0.0
    %2698 = vmatprep.subr.mxu0 0.0
    %2699 = vmatpush1.msra.mxu0 0.0
    %2700 = vmatprep.subr.mxu0 0.0
    %2701 = vmatpush1.msra.mxu0 0.0
    %2702 = vmatprep.subr.mxu0 0.0
    %2703 = vmatpush1.msra.mxu0 0.0
    %2704 = vmatprep.subr.mxu0 0.0
    %2705 = vmatpush1.msra.mxu0 0.0
    %2706 = vmatprep.subr.mxu0 0.0
    %2707 = vmatpush1.msra.mxu0 0.0
    %2708 = vmatprep.subr.mxu0 0.0
    %2709 = vmatpush1.msra.mxu0 0.0
    %2710 = vmatprep.subr.mxu0 0.0
    %2711 = vmatpush1.msra.mxu0 0.0
    %2712 = vmatprep.subr.mxu0 0.0
    %2713 = vmatpush1.msra.mxu0 0.0
    %2714 = vmatprep.subr.mxu0 0.0
    %2715 = vmatpush1.msra.mxu0 0.0
    %2716 = vmatprep.subr.mxu0 0.0
    %2717 = vmatpush1.msra.mxu0 0.0
    %2718 = vmatprep.subr.mxu0 0.0
    %2719 = vmatpush1.msra.mxu0 0.0
    %2720 = vmatprep.subr.mxu0 0.0
    %2721 = vmatpush1.msra.mxu0 0.0
    %2722 = vmatprep.subr.mxu0 0.0
    %2723 = vmatpush1.msra.mxu0 0.0
    %2724 = vmatprep.subr.mxu0 0.0
    %2725 = vmatpush1.msra.mxu0 0.0
    %2726 = vmatprep.subr.mxu0 0.0
    %2727 = vmatpush1.msra.mxu0 0.0
    %2728 = vmatprep.subr.mxu0 0.0
    %2729 = vmatpush1.msra.mxu0 0.0
    %2730 = vmatprep.subr.mxu0 0.0
    %2731 = vmatpush1.msra.mxu0 0.0
    %2732 = vmatprep.subr.mxu0 0.0
    %2733 = vmatpush1.msra.mxu0 0.0
    %2734 = vmatprep.subr.mxu0 0.0
    %2735 = vmatpush1.msra.mxu0 0.0
    %2736 = vmatprep.subr.mxu0 0.0
    %2737 = vmatpush1.msra.mxu0 0.0
    %2738 = vmatprep.subr.mxu0 0.0
    %2739 = vmatpush1.msra.mxu0 0.0
    %2740 = vmatprep.subr.mxu0 0.0
    %2741 = vmatpush1.msra.mxu0 0.0
    %2742 = vmatprep.subr.mxu0 0.0
    %2743 = vmatpush1.msra.mxu0 0.0
    %2744 = vmatprep.subr.mxu0 0.0
    %2745 = vmatpush1.msra.mxu0 0.0
    %2746 = vmatprep.subr.mxu0 0.0
    %2747 = vmatpush1.msra.mxu0 0.0
    %2748 = vmatprep.subr.mxu0 0.0
    %2749 = vmatpush1.msra.mxu0 0.0
    %2750 = vmatprep.subr.mxu0 0.0
    %2751 = vmatpush1.msra.mxu0 0.0
    %2752 = vmatprep.mubr.f32.mxu0 0.0
    %2753 = vmatmul.mubr.f32.gmra.mrb[0].mxu0 %v1161
    %v2754 = vpop.f32.mrb[0].mxu0
    %v2755 = vadd.f32 0.0, %v2754
    %v2756 = vpop.f32.mrb[0].mxu0
    %2757 = vdwg.mxu0
    %v2758 = vadd.f32 %v2041, %v2755
    %2759 = vmatprep.subr.mxu0 0.0
    %2760 = vmatpush1.msra.mxu0 %v1963
    %2761 = vmatprep.subr.mxu0 0.0
    %2762 = vmatpush1.msra.mxu0 %v1964
    %2763 = vmatprep.subr.mxu0 0.0
    %2764 = vmatpush1.msra.mxu0 %v1965
    %2765 = vmatprep.subr.mxu0 0.0
    %2766 = vmatpush1.msra.mxu0 %v1966
    %2767 = vmatprep.subr.mxu0 0.0
    %2768 = vmatpush1.msra.mxu0 0.0
    %2769 = vmatprep.subr.mxu0 0.0
    %2770 = vmatpush1.msra.mxu0 0.0
    %2771 = vmatprep.subr.mxu0 0.0
    %2772 = vmatpush1.msra.mxu0 0.0
    %2773 = vmatprep.subr.mxu0 0.0
    %2774 = vmatpush1.msra.mxu0 0.0
    %2775 = vmatprep.subr.mxu0 0.0
    %2776 = vmatpush1.msra.mxu0 0.0
    %2777 = vmatprep.subr.mxu0 0.0
    %2778 = vmatpush1.msra.mxu0 0.0
    %2779 = vmatprep.subr.mxu0 0.0
    %2780 = vmatpush1.msra.mxu0 0.0
    %2781 = vmatprep.subr.mxu0 0.0
    %2782 = vmatpush1.msra.mxu0 0.0
    %2783 = vmatprep.subr.mxu0 0.0
    %2784 = vmatpush1.msra.mxu0 0.0
    %2785 = vmatprep.subr.mxu0 0.0
    %2786 = vmatpush1.msra.mxu0 0.0
    %2787 = vmatprep.subr.mxu0 0.0
    %2788 = vmatpush1.msra.mxu0 0.0
    %2789 = vmatprep.subr.mxu0 0.0
    %2790 = vmatpush1.msra.mxu0 0.0
    %2791 = vmatprep.subr.mxu0 0.0
    %2792 = vmatpush1.msra.mxu0 0.0
    %2793 = vmatprep.subr.mxu0 0.0
    %2794 = vmatpush1.msra.mxu0 0.0
    %2795 = vmatprep.subr.mxu0 0.0
    %2796 = vmatpush1.msra.mxu0 0.0
    %2797 = vmatprep.subr.mxu0 0.0
    %2798 = vmatpush1.msra.mxu0 0.0
    %2799 = vmatprep.subr.mxu0 0.0
    %2800 = vmatpush1.msra.mxu0 0.0
    %2801 = vmatprep.subr.mxu0 0.0
    %2802 = vmatpush1.msra.mxu0 0.0
    %2803 = vmatprep.subr.mxu0 0.0
    %2804 = vmatpush1.msra.mxu0 0.0
    %2805 = vmatprep.subr.mxu0 0.0
    %2806 = vmatpush1.msra.mxu0 0.0
    %2807 = vmatprep.subr.mxu0 0.0
    %2808 = vmatpush1.msra.mxu0 0.0
    %2809 = vmatprep.subr.mxu0 0.0
    %2810 = vmatpush1.msra.mxu0 0.0
    %2811 = vmatprep.subr.mxu0 0.0
    %2812 = vmatpush1.msra.mxu0 0.0
    %2813 = vmatprep.subr.mxu0 0.0
    %2814 = vmatpush1.msra.mxu0 0.0
    %2815 = vmatprep.subr.mxu0 0.0
    %2816 = vmatpush1.msra.mxu0 0.0
    %2817 = vmatprep.subr.mxu0 0.0
    %2818 = vmatpush1.msra.mxu0 0.0
    %2819 = vmatprep.subr.mxu0 0.0
    %2820 = vmatpush1.msra.mxu0 0.0
    %2821 = vmatprep.subr.mxu0 0.0
    %2822 = vmatpush1.msra.mxu0 0.0
    %2823 = vmatprep.mubr.f32.mxu0 0.0
    %2824 = vmatmul.mubr.f32.gmra.mrb[0].mxu0 %v1556
    %v2825 = vpop.f32.mrb[0].mxu0
    %v2826 = vadd.f32 0.0, %v2825
    %v2827 = vpop.f32.mrb[0].mxu0
    %2828 = vdwg.mxu0
    %v2829 = vadd.f32 %v2758, %v2826
    %2830 = vmatprep.subr.mxu0 0.0
    %2831 = vmatpush1.msra.mxu0 %v1959
    %2832 = vmatprep.subr.mxu0 0.0
    %2833 = vmatpush1.msra.mxu0 %v1960
    %2834 = vmatprep.subr.mxu0 0.0
    %2835 = vmatpush1.msra.mxu0 %v1961
    %2836 = vmatprep.subr.mxu0 0.0
    %2837 = vmatpush1.msra.mxu0 %v1962
    %2838 = vmatprep.subr.mxu0 0.0
    %2839 = vmatpush1.msra.mxu0 0.0
    %2840 = vmatprep.subr.mxu0 0.0
    %2841 = vmatpush1.msra.mxu0 0.0
    %2842 = vmatprep.subr.mxu0 0.0
    %2843 = vmatpush1.msra.mxu0 0.0
    %2844 = vmatprep.subr.mxu0 0.0
    %2845 = vmatpush1.msra.mxu0 0.0
    %2846 = vmatprep.subr.mxu0 0.0
    %2847 = vmatpush1.msra.mxu0 0.0
    %2848 = vmatprep.subr.mxu0 0.0
    %2849 = vmatpush1.msra.mxu0 0.0
    %2850 = vmatprep.subr.mxu0 0.0
    %2851 = vmatpush1.msra.mxu0 0.0
    %2852 = vmatprep.subr.mxu0 0.0
    %2853 = vmatpush1.msra.mxu0 0.0
    %2854 = vmatprep.subr.mxu0 0.0
    %2855 = vmatpush1.msra.mxu0 0.0
    %2856 = vmatprep.subr.mxu0 0.0
    %2857 = vmatpush1.msra.mxu0 0.0
    %2858 = vmatprep.subr.mxu0 0.0
    %2859 = vmatpush1.msra.mxu0 0.0
    %2860 = vmatprep.subr.mxu0 0.0
    %2861 = vmatpush1.msra.mxu0 0.0
    %2862 = vmatprep.subr.mxu0 0.0
    %2863 = vmatpush1.msra.mxu0 0.0
    %2864 = vmatprep.subr.mxu0 0.0
    %2865 = vmatpush1.msra.mxu0 0.0
    %2866 = vmatprep.subr.mxu0 0.0
    %2867 = vmatpush1.msra.mxu0 0.0
    %2868 = vmatprep.subr.mxu0 0.0
    %2869 = vmatpush1.msra.mxu0 0.0
    %2870 = vmatprep.subr.mxu0 0.0
    %2871 = vmatpush1.msra.mxu0 0.0
    %2872 = vmatprep.subr.mxu0 0.0
    %2873 = vmatpush1.msra.mxu0 0.0
    %2874 = vmatprep.subr.mxu0 0.0
    %2875 = vmatpush1.msra.mxu0 0.0
    %2876 = vmatprep.subr.mxu0 0.0
    %2877 = vmatpush1.msra.mxu0 0.0
    %2878 = vmatprep.subr.mxu0 0.0
    %2879 = vmatpush1.msra.mxu0 0.0
    %2880 = vmatprep.subr.mxu0 0.0
    %2881 = vmatpush1.msra.mxu0 0.0
    %2882 = vmatprep.subr.mxu0 0.0
    %2883 = vmatpush1.msra.mxu0 0.0
    %2884 = vmatprep.subr.mxu0 0.0
    %2885 = vmatpush1.msra.mxu0 0.0
    %2886 = vmatprep.subr.mxu0 0.0
    %2887 = vmatpush1.msra.mxu0 0.0
    %2888 = vmatprep.subr.mxu0 0.0
    %2889 = vmatpush1.msra.mxu0 0.0
    %2890 = vmatprep.subr.mxu0 0.0
    %2891 = vmatpush1.msra.mxu0 0.0
    %2892 = vmatprep.subr.mxu0 0.0
    %2893 = vmatpush1.msra.mxu0 0.0
    %2894 = vmatprep.mubr.f32.mxu0 0.0
    %2895 = vmatmul.mubr.f32.gmra.mrb[0].mxu0 %v1236
    %v2896 = vpop.f32.mrb[0].mxu0
    %v2897 = vadd.f32 0.0, %v2896
    %v2898 = vpop.f32.mrb[0].mxu0
    %2899 = vdwg.mxu0
    %v2900 = vadd.f32 %v2041, %v2897
    %2901 = vmatprep.subr.mxu0 0.0
    %2902 = vmatpush1.msra.mxu0 %v1963
    %2903 = vmatprep.subr.mxu0 0.0
    %2904 = vmatpush1.msra.mxu0 %v1964
    %2905 = vmatprep.subr.mxu0 0.0
    %2906 = vmatpush1.msra.mxu0 %v1965
    %2907 = vmatprep.subr.mxu0 0.0
    %2908 = vmatpush1.msra.mxu0 %v1966
    %2909 = vmatprep.subr.mxu0 0.0
    %2910 = vmatpush1.msra.mxu0 0.0
    %2911 = vmatprep.subr.mxu0 0.0
    %2912 = vmatpush1.msra.mxu0 0.0
    %2913 = vmatprep.subr.mxu0 0.0
    %2914 = vmatpush1.msra.mxu0 0.0
    %2915 = vmatprep.subr.mxu0 0.0
    %2916 = vmatpush1.msra.mxu0 0.0
    %2917 = vmatprep.subr.mxu0 0.0
    %2918 = vmatpush1.msra.mxu0 0.0
    %2919 = vmatprep.subr.mxu0 0.0
    %2920 = vmatpush1.msra.mxu0 0.0
    %2921 = vmatprep.subr.mxu0 0.0
    %2922 = vmatpush1.msra.mxu0 0.0
    %2923 = vmatprep.subr.mxu0 0.0
    %2924 = vmatpush1.msra.mxu0 0.0
    %2925 = vmatprep.subr.mxu0 0.0
    %2926 = vmatpush1.msra.mxu0 0.0
    %2927 = vmatprep.subr.mxu0 0.0
    %2928 = vmatpush1.msra.mxu0 0.0
    %2929 = vmatprep.subr.mxu0 0.0
    %2930 = vmatpush1.msra.mxu0 0.0
    %2931 = vmatprep.subr.mxu0 0.0
    %2932 = vmatpush1.msra.mxu0 0.0
    %2933 = vmatprep.subr.mxu0 0.0
    %2934 = vmatpush1.msra.mxu0 0.0
    %2935 = vmatprep.subr.mxu0 0.0
    %2936 = vmatpush1.msra.mxu0 0.0
    %2937 = vmatprep.subr.mxu0 0.0
    %2938 = vmatpush1.msra.mxu0 0.0
    %2939 = vmatprep.subr.mxu0 0.0
    %2940 = vmatpush1.msra.mxu0 0.0
    %2941 = vmatprep.subr.mxu0 0.0
    %2942 = vmatpush1.msra.mxu0 0.0
    %2943 = vmatprep.subr.mxu0 0.0
    %2944 = vmatpush1.msra.mxu0 0.0
    %2945 = vmatprep.subr.mxu0 0.0
    %2946 = vmatpush1.msra.mxu0 0.0
    %2947 = vmatprep.subr.mxu0 0.0
    %2948 = vmatpush1.msra.mxu0 0.0
    %2949 = vmatprep.subr.mxu0 0.0
    %2950 = vmatpush1.msra.mxu0 0.0
    %2951 = vmatprep.subr.mxu0 0.0
    %2952 = vmatpush1.msra.mxu0 0.0
    %2953 = vmatprep.subr.mxu0 0.0
    %2954 = vmatpush1.msra.mxu0 0.0
    %2955 = vmatprep.subr.mxu0 0.0
    %2956 = vmatpush1.msra.mxu0 0.0
    %2957 = vmatprep.subr.mxu0 0.0
    %2958 = vmatpush1.msra.mxu0 0.0
    %2959 = vmatprep.subr.mxu0 0.0
    %2960 = vmatpush1.msra.mxu0 0.0
    %2961 = vmatprep.subr.mxu0 0.0
    %2962 = vmatpush1.msra.mxu0 0.0
    %2963 = vmatprep.subr.mxu0 0.0
    %2964 = vmatpush1.msra.mxu0 0.0
    %2965 = vmatprep.mubr.f32.mxu0 0.0
    %2966 = vmatmul.mubr.f32.gmra.mrb[0].mxu0 %v1475
    %v2967 = vpop.f32.mrb[0].mxu0
    %v2968 = vadd.f32 0.0, %v2967
    %v2969 = vpop.f32.mrb[0].mxu0
    %2970 = vdwg.mxu0
    %v2971 = vadd.f32 %v2900, %v2968
    %v2973 = vsel %vm107, %v1309, 0
    %2975 = vmatprep.subr.mxu0 0.0
    %2976 = vmatpush1.msra.mxu0 %v1959
    %2977 = vmatprep.subr.mxu0 0.0
    %2978 = vmatpush1.msra.mxu0 %v1960
    %2979 = vmatprep.subr.mxu0 0.0
    %2980 = vmatpush1.msra.mxu0 %v1961
    %2981 = vmatprep.subr.mxu0 0.0
    %2982 = vmatpush1.msra.mxu0 %v1962
    %2983 = vmatprep.subr.mxu0 0.0
    %2984 = vmatpush1.msra.mxu0 0.0
    %2985 = vmatprep.subr.mxu0 0.0
    %2986 = vmatpush1.msra.mxu0 0.0
    %2987 = vmatprep.subr.mxu0 0.0
    %2988 = vmatpush1.msra.mxu0 0.0
    %2989 = vmatprep.subr.mxu0 0.0
    %2990 = vmatpush1.msra.mxu0 0.0
    %2991 = vmatprep.subr.mxu0 0.0
    %2992 = vmatpush1.msra.mxu0 0.0
    %2993 = vmatprep.subr.mxu0 0.0
    %2994 = vmatpush1.msra.mxu0 0.0
    %2995 = vmatprep.subr.mxu0 0.0
    %2996 = vmatpush1.msra.mxu0 0.0
    %2997 = vmatprep.subr.mxu0 0.0
    %2998 = vmatpush1.msra.mxu0 0.0
    %2999 = vmatprep.subr.mxu0 0.0
    %3000 = vmatpush1.msra.mxu0 0.0
    %3001 = vmatprep.subr.mxu0 0.0
    %3002 = vmatpush1.msra.mxu0 0.0
    %3003 = vmatprep.subr.mxu0 0.0
    %3004 = vmatpush1.msra.mxu0 0.0
    %3005 = vmatprep.subr.mxu0 0.0
    %3006 = vmatpush1.msra.mxu0 0.0
    %3007 = vmatprep.subr.mxu0 0.0
    %3008 = vmatpush1.msra.mxu0 0.0
    %3009 = vmatprep.subr.mxu0 0.0
    %3010 = vmatpush1.msra.mxu0 0.0
    %3011 = vmatprep.subr.mxu0 0.0
    %3012 = vmatpush1.msra.mxu0 0.0
    %3013 = vmatprep.subr.mxu0 0.0
    %3014 = vmatpush1.msra.mxu0 0.0
    %3015 = vmatprep.subr.mxu0 0.0
    %3016 = vmatpush1.msra.mxu0 0.0
    %3017 = vmatprep.subr.mxu0 0.0
    %3018 = vmatpush1.msra.mxu0 0.0
    %3019 = vmatprep.subr.mxu0 0.0
    %3020 = vmatpush1.msra.mxu0 0.0
    %3021 = vmatprep.subr.mxu0 0.0
    %3022 = vmatpush1.msra.mxu0 0.0
    %3023 = vmatprep.subr.mxu0 0.0
    %3024 = vmatpush1.msra.mxu0 0.0
    %3025 = vmatprep.subr.mxu0 0.0
    %3026 = vmatpush1.msra.mxu0 0.0
    %3027 = vmatprep.subr.mxu0 0.0
    %3028 = vmatpush1.msra.mxu0 0.0
    %3029 = vmatprep.subr.mxu0 0.0
    %3030 = vmatpush1.msra.mxu0 0.0
    %3031 = vmatprep.subr.mxu0 0.0
    %3032 = vmatpush1.msra.mxu0 0.0
    %3033 = vmatprep.subr.mxu0 0.0
    %3034 = vmatpush1.msra.mxu0 0.0
    %3035 = vmatprep.subr.mxu0 0.0
    %3036 = vmatpush1.msra.mxu0 0.0
    %3037 = vmatprep.subr.mxu0 0.0
    %3038 = vmatpush1.msra.mxu0 0.0
    %3039 = vmatprep.mubr.f32.mxu0 0.0
    %3040 = vmatmul.mubr.f32.gmra.mrb[0].mxu0 %v2973
    %v3041 = vpop.f32.mrb[0].mxu0
    %v3042 = vadd.f32 0.0, %v3041
    %v3043 = vpop.f32.mrb[0].mxu0
    %3044 = vdwg.mxu0
    %v3045 = vadd.f32 %v2041, %v3042
    %3046 = vmatprep.subr.mxu0 0.0
    %3047 = vmatpush1.msra.mxu0 %v1963
    %3048 = vmatprep.subr.mxu0 0.0
    %3049 = vmatpush1.msra.mxu0 %v1964
    %3050 = vmatprep.subr.mxu0 0.0
    %3051 = vmatpush1.msra.mxu0 %v1965
    %3052 = vmatprep.subr.mxu0 0.0
    %3053 = vmatpush1.msra.mxu0 %v1966
    %3054 = vmatprep.subr.mxu0 0.0
    %3055 = vmatpush1.msra.mxu0 0.0
    %3056 = vmatprep.subr.mxu0 0.0
    %3057 = vmatpush1.msra.mxu0 0.0
    %3058 = vmatprep.subr.mxu0 0.0
    %3059 = vmatpush1.msra.mxu0 0.0
    %3060 = vmatprep.subr.mxu0 0.0
    %3061 = vmatpush1.msra.mxu0 0.0
    %3062 = vmatprep.subr.mxu0 0.0
    %3063 = vmatpush1.msra.mxu0 0.0
    %3064 = vmatprep.subr.mxu0 0.0
    %3065 = vmatpush1.msra.mxu0 0.0
    %3066 = vmatprep.subr.mxu0 0.0
    %3067 = vmatpush1.msra.mxu0 0.0
    %3068 = vmatprep.subr.mxu0 0.0
    %3069 = vmatpush1.msra.mxu0 0.0
    %3070 = vmatprep.subr.mxu0 0.0
    %3071 = vmatpush1.msra.mxu0 0.0
    %3072 = vmatprep.subr.mxu0 0.0
    %3073 = vmatpush1.msra.mxu0 0.0
    %3074 = vmatprep.subr.mxu0 0.0
    %3075 = vmatpush1.msra.mxu0 0.0
    %3076 = vmatprep.subr.mxu0 0.0
    %3077 = vmatpush1.msra.mxu0 0.0
    %3078 = vmatprep.subr.mxu0 0.0
    %3079 = vmatpush1.msra.mxu0 0.0
    %3080 = vmatprep.subr.mxu0 0.0
    %3081 = vmatpush1.msra.mxu0 0.0
    %3082 = vmatprep.subr.mxu0 0.0
    %3083 = vmatpush1.msra.mxu0 0.0
    %3084 = vmatprep.subr.mxu0 0.0
    %3085 = vmatpush1.msra.mxu0 0.0
    %3086 = vmatprep.subr.mxu0 0.0
    %3087 = vmatpush1.msra.mxu0 0.0
    %3088 = vmatprep.subr.mxu0 0.0
    %3089 = vmatpush1.msra.mxu0 0.0
    %3090 = vmatprep.subr.mxu0 0.0
    %3091 = vmatpush1.msra.mxu0 0.0
    %3092 = vmatprep.subr.mxu0 0.0
    %3093 = vmatpush1.msra.mxu0 0.0
    %3094 = vmatprep.subr.mxu0 0.0
    %3095 = vmatpush1.msra.mxu0 0.0
    %3096 = vmatprep.subr.mxu0 0.0
    %3097 = vmatpush1.msra.mxu0 0.0
    %3098 = vmatprep.subr.mxu0 0.0
    %3099 = vmatpush1.msra.mxu0 0.0
    %3100 = vmatprep.subr.mxu0 0.0
    %3101 = vmatpush1.msra.mxu0 0.0
    %3102 = vmatprep.subr.mxu0 0.0
    %3103 = vmatpush1.msra.mxu0 0.0
    %3104 = vmatprep.subr.mxu0 0.0
    %3105 = vmatpush1.msra.mxu0 0.0
    %3106 = vmatprep.subr.mxu0 0.0
    %3107 = vmatpush1.msra.mxu0 0.0
    %3108 = vmatprep.subr.mxu0 0.0
    %3109 = vmatpush1.msra.mxu0 0.0
    %3110 = vmatprep.mubr.f32.mxu0 0.0
    %3111 = vmatmul.mubr.f32.gmra.mrb[0].mxu0 %v1394
    %v3112 = vpop.f32.mrb[0].mxu0
    %v3113 = vadd.f32 0.0, %v3112
    %v3114 = vpop.f32.mrb[0].mxu0
    %3115 = vdwg.mxu0
    %v3116 = vadd.f32 %v3045, %v3113
    %v3117 = vld [vmem:[#allocation7] sm:$0xff]
    %v3118 = vld [vmem:[#allocation7 + $0x8] sm:$0xff]
    %v3119 = vld [vmem:[#allocation7 + $0x10] sm:$0xff]
    %v3120 = vld [vmem:[#allocation7 + $0x18] sm:$0xff]
    %3121 = vmatprep.subr.mxu0 0.0
    %3122 = vmatpush1.msra.mxu0 %v3117
    %3123 = vmatprep.subr.mxu0 0.0
    %3124 = vmatpush1.msra.mxu0 %v3118
    %3125 = vmatprep.subr.mxu0 0.0
    %3126 = vmatpush1.msra.mxu0 %v3119
    %3127 = vmatprep.subr.mxu0 0.0
    %3128 = vmatpush1.msra.mxu0 %v3120
    %3129 = vmatprep.subr.mxu0 0.0
    %3130 = vmatpush1.msra.mxu0 0.0
    %3131 = vmatprep.subr.mxu0 0.0
    %3132 = vmatpush1.msra.mxu0 0.0
    %3133 = vmatprep.subr.mxu0 0.0
    %3134 = vmatpush1.msra.mxu0 0.0
    %3135 = vmatprep.subr.mxu0 0.0
    %3136 = vmatpush1.msra.mxu0 0.0
    %3137 = vmatprep.subr.mxu0 0.0
    %3138 = vmatpush1.msra.mxu0 0.0
    %3139 = vmatprep.subr.mxu0 0.0
    %3140 = vmatpush1.msra.mxu0 0.0
    %3141 = vmatprep.subr.mxu0 0.0
    %3142 = vmatpush1.msra.mxu0 0.0
    %3143 = vmatprep.subr.mxu0 0.0
    %3144 = vmatpush1.msra.mxu0 0.0
    %3145 = vmatprep.subr.mxu0 0.0
    %3146 = vmatpush1.msra.mxu0 0.0
    %3147 = vmatprep.subr.mxu0 0.0
    %3148 = vmatpush1.msra.mxu0 0.0
    %3149 = vmatprep.subr.mxu0 0.0
    %3150 = vmatpush1.msra.mxu0 0.0
    %3151 = vmatprep.subr.mxu0 0.0
    %3152 = vmatpush1.msra.mxu0 0.0
    %3153 = vmatprep.subr.mxu0 0.0
    %3154 = vmatpush1.msra.mxu0 0.0
    %3155 = vmatprep.subr.mxu0 0.0
    %3156 = vmatpush1.msra.mxu0 0.0
    %3157 = vmatprep.subr.mxu0 0.0
    %3158 = vmatpush1.msra.mxu0 0.0
    %3159 = vmatprep.subr.mxu0 0.0
    %3160 = vmatpush1.msra.mxu0 0.0
    %3161 = vmatprep.subr.mxu0 0.0
    %3162 = vmatpush1.msra.mxu0 0.0
    %3163 = vmatprep.subr.mxu0 0.0
    %3164 = vmatpush1.msra.mxu0 0.0
    %3165 = vmatprep.subr.mxu0 0.0
    %3166 = vmatpush1.msra.mxu0 0.0
    %3167 = vmatprep.subr.mxu0 0.0
    %3168 = vmatpush1.msra.mxu0 0.0
    %3169 = vmatprep.subr.mxu0 0.0
    %3170 = vmatpush1.msra.mxu0 0.0
    %3171 = vmatprep.subr.mxu0 0.0
    %3172 = vmatpush1.msra.mxu0 0.0
    %3173 = vmatprep.subr.mxu0 0.0
    %3174 = vmatpush1.msra.mxu0 0.0
    %3175 = vmatprep.subr.mxu0 0.0
    %3176 = vmatpush1.msra.mxu0 0.0
    %3177 = vmatprep.subr.mxu0 0.0
    %3178 = vmatpush1.msra.mxu0 0.0
    %3179 = vmatprep.subr.mxu0 0.0
    %3180 = vmatpush1.msra.mxu0 0.0
    %3181 = vmatprep.subr.mxu0 0.0
    %3182 = vmatpush1.msra.mxu0 0.0
    %3183 = vmatprep.subr.mxu0 0.0
    %3184 = vmatpush1.msra.mxu0 0.0
    %3185 = vmatprep.mubr.f32.mxu0 0.0
    %3186 = vmatmul.mubr.f32.gmra.mrb[0].mxu0 %v711
    %v3187 = vpop.f32.mrb[0].mxu0
    %v3188 = vadd.f32 0.0, %v3187
    %v3189 = vpop.f32.mrb[0].mxu0
    %3190 = vdwg.mxu0
    %v3191 = vadd.f32 %v2119, %v3188
    %v3192 = vtanh.pop %v3191
    %v3194 = vsel %vm107, %v3192, 0
    %3196 = vmatprep.subr.mxu0 0.0
    %3197 = vmatpush1.msra.mxu0 %v3117
    %3198 = vmatprep.subr.mxu0 0.0
    %3199 = vmatpush1.msra.mxu0 %v3118
    %3200 = vmatprep.subr.mxu0 0.0
    %3201 = vmatpush1.msra.mxu0 %v3119
    %3202 = vmatprep.subr.mxu0 0.0
    %3203 = vmatpush1.msra.mxu0 %v3120
    %3204 = vmatprep.subr.mxu0 0.0
    %3205 = vmatpush1.msra.mxu0 0.0
    %3206 = vmatprep.subr.mxu0 0.0
    %3207 = vmatpush1.msra.mxu0 0.0
    %3208 = vmatprep.subr.mxu0 0.0
    %3209 = vmatpush1.msra.mxu0 0.0
    %3210 = vmatprep.subr.mxu0 0.0
    %3211 = vmatpush1.msra.mxu0 0.0
    %3212 = vmatprep.subr.mxu0 0.0
    %3213 = vmatpush1.msra.mxu0 0.0
    %3214 = vmatprep.subr.mxu0 0.0
    %3215 = vmatpush1.msra.mxu0 0.0
    %3216 = vmatprep.subr.mxu0 0.0
    %3217 = vmatpush1.msra.mxu0 0.0
    %3218 = vmatprep.subr.mxu0 0.0
    %3219 = vmatpush1.msra.mxu0 0.0
    %3220 = vmatprep.subr.mxu0 0.0
    %3221 = vmatpush1.msra.mxu0 0.0
    %3222 = vmatprep.subr.mxu0 0.0
    %3223 = vmatpush1.msra.mxu0 0.0
    %3224 = vmatprep.subr.mxu0 0.0
    %3225 = vmatpush1.msra.mxu0 0.0
    %3226 = vmatprep.subr.mxu0 0.0
    %3227 = vmatpush1.msra.mxu0 0.0
    %3228 = vmatprep.subr.mxu0 0.0
    %3229 = vmatpush1.msra.mxu0 0.0
    %3230 = vmatprep.subr.mxu0 0.0
    %3231 = vmatpush1.msra.mxu0 0.0
    %3232 = vmatprep.subr.mxu0 0.0
    %3233 = vmatpush1.msra.mxu0 0.0
    %3234 = vmatprep.subr.mxu0 0.0
    %3235 = vmatpush1.msra.mxu0 0.0
    %3236 = vmatprep.subr.mxu0 0.0
    %3237 = vmatpush1.msra.mxu0 0.0
    %3238 = vmatprep.subr.mxu0 0.0
    %3239 = vmatpush1.msra.mxu0 0.0
    %3240 = vmatprep.subr.mxu0 0.0
    %3241 = vmatpush1.msra.mxu0 0.0
    %3242 = vmatprep.subr.mxu0 0.0
    %3243 = vmatpush1.msra.mxu0 0.0
    %3244 = vmatprep.subr.mxu0 0.0
    %3245 = vmatpush1.msra.mxu0 0.0
    %3246 = vmatprep.subr.mxu0 0.0
    %3247 = vmatpush1.msra.mxu0 0.0
    %3248 = vmatprep.subr.mxu0 0.0
    %3249 = vmatpush1.msra.mxu0 0.0
    %3250 = vmatprep.subr.mxu0 0.0
    %3251 = vmatpush1.msra.mxu0 0.0
    %3252 = vmatprep.subr.mxu0 0.0
    %3253 = vmatpush1.msra.mxu0 0.0
    %3254 = vmatprep.subr.mxu0 0.0
    %3255 = vmatpush1.msra.mxu0 0.0
    %3256 = vmatprep.subr.mxu0 0.0
    %3257 = vmatpush1.msra.mxu0 0.0
    %3258 = vmatprep.subr.mxu0 0.0
    %3259 = vmatpush1.msra.mxu0 0.0
    %3260 = vmatprep.mubr.f32.mxu0 0.0
    %3261 = vmatmul.mubr.f32.gmra.mrb[0].mxu0 %v3194
    %v3262 = vpop.f32.mrb[0].mxu0
    %v3263 = vadd.f32 0.0, %v3262
    %v3264 = vpop.f32.mrb[0].mxu0
    %3265 = vdwg.mxu0
    %v3266 = vadd.f32 %v2261, %v3263
    %v3267 = vtanh.pop %v3266
    %v3269 = vsel %vm107, %v3267, 0
    %3271 = vmatprep.subr.mxu0 0.0
    %3272 = vmatpush1.msra.mxu0 %v3117
    %3273 = vmatprep.subr.mxu0 0.0
    %3274 = vmatpush1.msra.mxu0 %v3118
    %3275 = vmatprep.subr.mxu0 0.0
    %3276 = vmatpush1.msra.mxu0 %v3119
    %3277 = vmatprep.subr.mxu0 0.0
    %3278 = vmatpush1.msra.mxu0 %v3120
    %3279 = vmatprep.subr.mxu0 0.0
    %3280 = vmatpush1.msra.mxu0 0.0
    %3281 = vmatprep.subr.mxu0 0.0
    %3282 = vmatpush1.msra.mxu0 0.0
    %3283 = vmatprep.subr.mxu0 0.0
    %3284 = vmatpush1.msra.mxu0 0.0
    %3285 = vmatprep.subr.mxu0 0.0
    %3286 = vmatpush1.msra.mxu0 0.0
    %3287 = vmatprep.subr.mxu0 0.0
    %3288 = vmatpush1.msra.mxu0 0.0
    %3289 = vmatprep.subr.mxu0 0.0
    %3290 = vmatpush1.msra.mxu0 0.0
    %3291 = vmatprep.subr.mxu0 0.0
    %3292 = vmatpush1.msra.mxu0 0.0
    %3293 = vmatprep.subr.mxu0 0.0
    %3294 = vmatpush1.msra.mxu0 0.0
    %3295 = vmatprep.subr.mxu0 0.0
    %3296 = vmatpush1.msra.mxu0 0.0
    %3297 = vmatprep.subr.mxu0 0.0
    %3298 = vmatpush1.msra.mxu0 0.0
    %3299 = vmatprep.subr.mxu0 0.0
    %3300 = vmatpush1.msra.mxu0 0.0
    %3301 = vmatprep.subr.mxu0 0.0
    %3302 = vmatpush1.msra.mxu0 0.0
    %3303 = vmatprep.subr.mxu0 0.0
    %3304 = vmatpush1.msra.mxu0 0.0
    %3305 = vmatprep.subr.mxu0 0.0
    %3306 = vmatpush1.msra.mxu0 0.0
    %3307 = vmatprep.subr.mxu0 0.0
    %3308 = vmatpush1.msra.mxu0 0.0
    %3309 = vmatprep.subr.mxu0 0.0
    %3310 = vmatpush1.msra.mxu0 0.0
    %3311 = vmatprep.subr.mxu0 0.0
    %3312 = vmatpush1.msra.mxu0 0.0
    %3313 = vmatprep.subr.mxu0 0.0
    %3314 = vmatpush1.msra.mxu0 0.0
    %3315 = vmatprep.subr.mxu0 0.0
    %3316 = vmatpush1.msra.mxu0 0.0
    %3317 = vmatprep.subr.mxu0 0.0
    %3318 = vmatpush1.msra.mxu0 0.0
    %3319 = vmatprep.subr.mxu0 0.0
    %3320 = vmatpush1.msra.mxu0 0.0
    %3321 = vmatprep.subr.mxu0 0.0
    %3322 = vmatpush1.msra.mxu0 0.0
    %3323 = vmatprep.subr.mxu0 0.0
    %3324 = vmatpush1.msra.mxu0 0.0
    %3325 = vmatprep.subr.mxu0 0.0
    %3326 = vmatpush1.msra.mxu0 0.0
    %3327 = vmatprep.subr.mxu0 0.0
    %3328 = vmatpush1.msra.mxu0 0.0
    %3329 = vmatprep.subr.mxu0 0.0
    %3330 = vmatpush1.msra.mxu0 0.0
    %3331 = vmatprep.subr.mxu0 0.0
    %3332 = vmatpush1.msra.mxu0 0.0
    %3333 = vmatprep.subr.mxu0 0.0
    %3334 = vmatpush1.msra.mxu0 0.0
    %3335 = vmatprep.mubr.f32.mxu0 0.0
    %3336 = vmatmul.mubr.f32.gmra.mrb[0].mxu0 %v3269
    %v3337 = vpop.f32.mrb[0].mxu0
    %v3338 = vadd.f32 0.0, %v3337
    %v3339 = vpop.f32.mrb[0].mxu0
    %3340 = vdwg.mxu0
    %v3341 = vadd.f32 %v2403, %v3338
    %v3342 = vtanh.pop %v3341
    %v3344 = vsel %vm107, %v3342, 0
    %3346 = vmatprep.subr.mxu0 0.0
    %3347 = vmatpush1.msra.mxu0 %v3117
    %3348 = vmatprep.subr.mxu0 0.0
    %3349 = vmatpush1.msra.mxu0 %v3118
    %3350 = vmatprep.subr.mxu0 0.0
    %3351 = vmatpush1.msra.mxu0 %v3119
    %3352 = vmatprep.subr.mxu0 0.0
    %3353 = vmatpush1.msra.mxu0 %v3120
    %3354 = vmatprep.subr.mxu0 0.0
    %3355 = vmatpush1.msra.mxu0 0.0
    %3356 = vmatprep.subr.mxu0 0.0
    %3357 = vmatpush1.msra.mxu0 0.0
    %3358 = vmatprep.subr.mxu0 0.0
    %3359 = vmatpush1.msra.mxu0 0.0
    %3360 = vmatprep.subr.mxu0 0.0
    %3361 = vmatpush1.msra.mxu0 0.0
    %3362 = vmatprep.subr.mxu0 0.0
    %3363 = vmatpush1.msra.mxu0 0.0
    %3364 = vmatprep.subr.mxu0 0.0
    %3365 = vmatpush1.msra.mxu0 0.0
    %3366 = vmatprep.subr.mxu0 0.0
    %3367 = vmatpush1.msra.mxu0 0.0
    %3368 = vmatprep.subr.mxu0 0.0
    %3369 = vmatpush1.msra.mxu0 0.0
    %3370 = vmatprep.subr.mxu0 0.0
    %3371 = vmatpush1.msra.mxu0 0.0
    %3372 = vmatprep.subr.mxu0 0.0
    %3373 = vmatpush1.msra.mxu0 0.0
    %3374 = vmatprep.subr.mxu0 0.0
    %3375 = vmatpush1.msra.mxu0 0.0
    %3376 = vmatprep.subr.mxu0 0.0
    %3377 = vmatpush1.msra.mxu0 0.0
    %3378 = vmatprep.subr.mxu0 0.0
    %3379 = vmatpush1.msra.mxu0 0.0
    %3380 = vmatprep.subr.mxu0 0.0
    %3381 = vmatpush1.msra.mxu0 0.0
    %3382 = vmatprep.subr.mxu0 0.0
    %3383 = vmatpush1.msra.mxu0 0.0
    %3384 = vmatprep.subr.mxu0 0.0
    %3385 = vmatpush1.msra.mxu0 0.0
    %3386 = vmatprep.subr.mxu0 0.0
    %3387 = vmatpush1.msra.mxu0 0.0
    %3388 = vmatprep.subr.mxu0 0.0
    %3389 = vmatpush1.msra.mxu0 0.0
    %3390 = vmatprep.subr.mxu0 0.0
    %3391 = vmatpush1.msra.mxu0 0.0
    %3392 = vmatprep.subr.mxu0 0.0
    %3393 = vmatpush1.msra.mxu0 0.0
    %3394 = vmatprep.subr.mxu0 0.0
    %3395 = vmatpush1.msra.mxu0 0.0
    %3396 = vmatprep.subr.mxu0 0.0
    %3397 = vmatpush1.msra.mxu0 0.0
    %3398 = vmatprep.subr.mxu0 0.0
    %3399 = vmatpush1.msra.mxu0 0.0
    %3400 = vmatprep.subr.mxu0 0.0
    %3401 = vmatpush1.msra.mxu0 0.0
    %3402 = vmatprep.subr.mxu0 0.0
    %3403 = vmatpush1.msra.mxu0 0.0
    %3404 = vmatprep.subr.mxu0 0.0
    %3405 = vmatpush1.msra.mxu0 0.0
    %3406 = vmatprep.subr.mxu0 0.0
    %3407 = vmatpush1.msra.mxu0 0.0
    %3408 = vmatprep.subr.mxu0 0.0
    %3409 = vmatpush1.msra.mxu0 0.0
    %3410 = vmatprep.mubr.f32.mxu0 0.0
    %3411 = vmatmul.mubr.f32.gmra.mrb[0].mxu0 %v3344
    %v3412 = vpop.f32.mrb[0].mxu0
    %v3413 = vadd.f32 0.0, %v3412
    %v3414 = vpop.f32.mrb[0].mxu0
    %3415 = vdwg.mxu0
    %v3416 = vadd.f32 %v2545, %v3413
    %v3417 = vtanh.pop %v3416
    %v3419 = vsel %vm107, %v3417, 0
    %3421 = vmatprep.subr.mxu0 0.0
    %3422 = vmatpush1.msra.mxu0 %v3117
    %3423 = vmatprep.subr.mxu0 0.0
    %3424 = vmatpush1.msra.mxu0 %v3118
    %3425 = vmatprep.subr.mxu0 0.0
    %3426 = vmatpush1.msra.mxu0 %v3119
    %3427 = vmatprep.subr.mxu0 0.0
    %3428 = vmatpush1.msra.mxu0 %v3120
    %3429 = vmatprep.subr.mxu0 0.0
    %3430 = vmatpush1.msra.mxu0 0.0
    %3431 = vmatprep.subr.mxu0 0.0
    %3432 = vmatpush1.msra.mxu0 0.0
    %3433 = vmatprep.subr.mxu0 0.0
    %3434 = vmatpush1.msra.mxu0 0.0
    %3435 = vmatprep.subr.mxu0 0.0
    %3436 = vmatpush1.msra.mxu0 0.0
    %3437 = vmatprep.subr.mxu0 0.0
    %3438 = vmatpush1.msra.mxu0 0.0
    %3439 = vmatprep.subr.mxu0 0.0
    %3440 = vmatpush1.msra.mxu0 0.0
    %3441 = vmatprep.subr.mxu0 0.0
    %3442 = vmatpush1.msra.mxu0 0.0
    %3443 = vmatprep.subr.mxu0 0.0
    %3444 = vmatpush1.msra.mxu0 0.0
    %3445 = vmatprep.subr.mxu0 0.0
    %3446 = vmatpush1.msra.mxu0 0.0
    %3447 = vmatprep.subr.mxu0 0.0
    %3448 = vmatpush1.msra.mxu0 0.0
    %3449 = vmatprep.subr.mxu0 0.0
    %3450 = vmatpush1.msra.mxu0 0.0
    %3451 = vmatprep.subr.mxu0 0.0
    %3452 = vmatpush1.msra.mxu0 0.0
    %3453 = vmatprep.subr.mxu0 0.0
    %3454 = vmatpush1.msra.mxu0 0.0
    %3455 = vmatprep.subr.mxu0 0.0
    %3456 = vmatpush1.msra.mxu0 0.0
    %3457 = vmatprep.subr.mxu0 0.0
    %3458 = vmatpush1.msra.mxu0 0.0
    %3459 = vmatprep.subr.mxu0 0.0
    %3460 = vmatpush1.msra.mxu0 0.0
    %3461 = vmatprep.subr.mxu0 0.0
    %3462 = vmatpush1.msra.mxu0 0.0
    %3463 = vmatprep.subr.mxu0 0.0
    %3464 = vmatpush1.msra.mxu0 0.0
    %3465 = vmatprep.subr.mxu0 0.0
    %3466 = vmatpush1.msra.mxu0 0.0
    %3467 = vmatprep.subr.mxu0 0.0
    %3468 = vmatpush1.msra.mxu0 0.0
    %3469 = vmatprep.subr.mxu0 0.0
    %3470 = vmatpush1.msra.mxu0 0.0
    %3471 = vmatprep.subr.mxu0 0.0
    %3472 = vmatpush1.msra.mxu0 0.0
    %3473 = vmatprep.subr.mxu0 0.0
    %3474 = vmatpush1.msra.mxu0 0.0
    %3475 = vmatprep.subr.mxu0 0.0
    %3476 = vmatpush1.msra.mxu0 0.0
    %3477 = vmatprep.subr.mxu0 0.0
    %3478 = vmatpush1.msra.mxu0 0.0
    %3479 = vmatprep.subr.mxu0 0.0
    %3480 = vmatpush1.msra.mxu0 0.0
    %3481 = vmatprep.subr.mxu0 0.0
    %3482 = vmatpush1.msra.mxu0 0.0
    %3483 = vmatprep.subr.mxu0 0.0
    %3484 = vmatpush1.msra.mxu0 0.0
    %3485 = vmatprep.mubr.f32.mxu0 0.0
    %3486 = vmatmul.mubr.f32.gmra.mrb[0].mxu0 %v3419
    %v3487 = vpop.f32.mrb[0].mxu0
    %v3488 = vadd.f32 0.0, %v3487
    %v3489 = vpop.f32.mrb[0].mxu0
    %3490 = vdwg.mxu0
    %v3491 = vadd.f32 %v2687, %v3488
    %v3492 = vtanh.pop %v3491
    %v3494 = vsel %vm107, %v3492, 0
    %3496 = vmatprep.subr.mxu0 0.0
    %3497 = vmatpush1.msra.mxu0 %v3117
    %3498 = vmatprep.subr.mxu0 0.0
    %3499 = vmatpush1.msra.mxu0 %v3118
    %3500 = vmatprep.subr.mxu0 0.0
    %3501 = vmatpush1.msra.mxu0 %v3119
    %3502 = vmatprep.subr.mxu0 0.0
    %3503 = vmatpush1.msra.mxu0 %v3120
    %3504 = vmatprep.subr.mxu0 0.0
    %3505 = vmatpush1.msra.mxu0 0.0
    %3506 = vmatprep.subr.mxu0 0.0
    %3507 = vmatpush1.msra.mxu0 0.0
    %3508 = vmatprep.subr.mxu0 0.0
    %3509 = vmatpush1.msra.mxu0 0.0
    %3510 = vmatprep.subr.mxu0 0.0
    %3511 = vmatpush1.msra.mxu0 0.0
    %3512 = vmatprep.subr.mxu0 0.0
    %3513 = vmatpush1.msra.mxu0 0.0
    %3514 = vmatprep.subr.mxu0 0.0
    %3515 = vmatpush1.msra.mxu0 0.0
    %3516 = vmatprep.subr.mxu0 0.0
    %3517 = vmatpush1.msra.mxu0 0.0
    %3518 = vmatprep.subr.mxu0 0.0
    %3519 = vmatpush1.msra.mxu0 0.0
    %3520 = vmatprep.subr.mxu0 0.0
    %3521 = vmatpush1.msra.mxu0 0.0
    %3522 = vmatprep.subr.mxu0 0.0
    %3523 = vmatpush1.msra.mxu0 0.0
    %3524 = vmatprep.subr.mxu0 0.0
    %3525 = vmatpush1.msra.mxu0 0.0
    %3526 = vmatprep.subr.mxu0 0.0
    %3527 = vmatpush1.msra.mxu0 0.0
    %3528 = vmatprep.subr.mxu0 0.0
    %3529 = vmatpush1.msra.mxu0 0.0
    %3530 = vmatprep.subr.mxu0 0.0
    %3531 = vmatpush1.msra.mxu0 0.0
    %3532 = vmatprep.subr.mxu0 0.0
    %3533 = vmatpush1.msra.mxu0 0.0
    %3534 = vmatprep.subr.mxu0 0.0
    %3535 = vmatpush1.msra.mxu0 0.0
    %3536 = vmatprep.subr.mxu0 0.0
    %3537 = vmatpush1.msra.mxu0 0.0
    %3538 = vmatprep.subr.mxu0 0.0
    %3539 = vmatpush1.msra.mxu0 0.0
    %3540 = vmatprep.subr.mxu0 0.0
    %3541 = vmatpush1.msra.mxu0 0.0
    %3542 = vmatprep.subr.mxu0 0.0
    %3543 = vmatpush1.msra.mxu0 0.0
    %3544 = vmatprep.subr.mxu0 0.0
    %3545 = vmatpush1.msra.mxu0 0.0
    %3546 = vmatprep.subr.mxu0 0.0
    %3547 = vmatpush1.msra.mxu0 0.0
    %3548 = vmatprep.subr.mxu0 0.0
    %3549 = vmatpush1.msra.mxu0 0.0
    %3550 = vmatprep.subr.mxu0 0.0
    %3551 = vmatpush1.msra.mxu0 0.0
    %3552 = vmatprep.subr.mxu0 0.0
    %3553 = vmatpush1.msra.mxu0 0.0
    %3554 = vmatprep.subr.mxu0 0.0
    %3555 = vmatpush1.msra.mxu0 0.0
    %3556 = vmatprep.subr.mxu0 0.0
    %3557 = vmatpush1.msra.mxu0 0.0
    %3558 = vmatprep.subr.mxu0 0.0
    %3559 = vmatpush1.msra.mxu0 0.0
    %3560 = vmatprep.mubr.f32.mxu0 0.0
    %3561 = vmatmul.mubr.f32.gmra.mrb[0].mxu0 %v3494
    %v3562 = vpop.f32.mrb[0].mxu0
    %v3563 = vadd.f32 0.0, %v3562
    %v3564 = vpop.f32.mrb[0].mxu0
    %3565 = vdwg.mxu0
    %v3566 = vadd.f32 %v2829, %v3563
    %v3567 = vtanh.pop %v3566
    %v3569 = vsel %vm107, %v3567, 0
    %3571 = vmatprep.subr.mxu0 0.0
    %3572 = vmatpush1.msra.mxu0 %v3117
    %3573 = vmatprep.subr.mxu0 0.0
    %3574 = vmatpush1.msra.mxu0 %v3118
    %3575 = vmatprep.subr.mxu0 0.0
    %3576 = vmatpush1.msra.mxu0 %v3119
    %3577 = vmatprep.subr.mxu0 0.0
    %3578 = vmatpush1.msra.mxu0 %v3120
    %3579 = vmatprep.subr.mxu0 0.0
    %3580 = vmatpush1.msra.mxu0 0.0
    %3581 = vmatprep.subr.mxu0 0.0
    %3582 = vmatpush1.msra.mxu0 0.0
    %3583 = vmatprep.subr.mxu0 0.0
    %3584 = vmatpush1.msra.mxu0 0.0
    %3585 = vmatprep.subr.mxu0 0.0
    %3586 = vmatpush1.msra.mxu0 0.0
    %3587 = vmatprep.subr.mxu0 0.0
    %3588 = vmatpush1.msra.mxu0 0.0
    %3589 = vmatprep.subr.mxu0 0.0
    %3590 = vmatpush1.msra.mxu0 0.0
    %3591 = vmatprep.subr.mxu0 0.0
    %3592 = vmatpush1.msra.mxu0 0.0
    %3593 = vmatprep.subr.mxu0 0.0
    %3594 = vmatpush1.msra.mxu0 0.0
    %3595 = vmatprep.subr.mxu0 0.0
    %3596 = vmatpush1.msra.mxu0 0.0
    %3597 = vmatprep.subr.mxu0 0.0
    %3598 = vmatpush1.msra.mxu0 0.0
    %3599 = vmatprep.subr.mxu0 0.0
    %3600 = vmatpush1.msra.mxu0 0.0
    %3601 = vmatprep.subr.mxu0 0.0
    %3602 = vmatpush1.msra.mxu0 0.0
    %3603 = vmatprep.subr.mxu0 0.0
    %3604 = vmatpush1.msra.mxu0 0.0
    %3605 = vmatprep.subr.mxu0 0.0
    %3606 = vmatpush1.msra.mxu0 0.0
    %3607 = vmatprep.subr.mxu0 0.0
    %3608 = vmatpush1.msra.mxu0 0.0
    %3609 = vmatprep.subr.mxu0 0.0
    %3610 = vmatpush1.msra.mxu0 0.0
    %3611 = vmatprep.subr.mxu0 0.0
    %3612 = vmatpush1.msra.mxu0 0.0
    %3613 = vmatprep.subr.mxu0 0.0
    %3614 = vmatpush1.msra.mxu0 0.0
    %3615 = vmatprep.subr.mxu0 0.0
    %3616 = vmatpush1.msra.mxu0 0.0
    %3617 = vmatprep.subr.mxu0 0.0
    %3618 = vmatpush1.msra.mxu0 0.0
    %3619 = vmatprep.subr.mxu0 0.0
    %3620 = vmatpush1.msra.mxu0 0.0
    %3621 = vmatprep.subr.mxu0 0.0
    %3622 = vmatpush1.msra.mxu0 0.0
    %3623 = vmatprep.subr.mxu0 0.0
    %3624 = vmatpush1.msra.mxu0 0.0
    %3625 = vmatprep.subr.mxu0 0.0
    %3626 = vmatpush1.msra.mxu0 0.0
    %3627 = vmatprep.subr.mxu0 0.0
    %3628 = vmatpush1.msra.mxu0 0.0
    %3629 = vmatprep.subr.mxu0 0.0
    %3630 = vmatpush1.msra.mxu0 0.0
    %3631 = vmatprep.subr.mxu0 0.0
    %3632 = vmatpush1.msra.mxu0 0.0
    %3633 = vmatprep.subr.mxu0 0.0
    %3634 = vmatpush1.msra.mxu0 0.0
    %3635 = vmatprep.mubr.f32.mxu0 0.0
    %3636 = vmatmul.mubr.f32.gmra.mrb[0].mxu0 %v3569
    %v3637 = vpop.f32.mrb[0].mxu0
    %v3638 = vadd.f32 0.0, %v3637
    %v3639 = vpop.f32.mrb[0].mxu0
    %3640 = vdwg.mxu0
    %v3641 = vadd.f32 %v2971, %v3638
    %v3642 = vtanh.pop %v3641
    %v3644 = vsel %vm107, %v3642, 0
    %3646 = vmatprep.subr.mxu0 0.0
    %3647 = vmatpush1.msra.mxu0 %v3117
    %3648 = vmatprep.subr.mxu0 0.0
    %3649 = vmatpush1.msra.mxu0 %v3118
    %3650 = vmatprep.subr.mxu0 0.0
    %3651 = vmatpush1.msra.mxu0 %v3119
    %3652 = vmatprep.subr.mxu0 0.0
    %3653 = vmatpush1.msra.mxu0 %v3120
    %3654 = vmatprep.subr.mxu0 0.0
    %3655 = vmatpush1.msra.mxu0 0.0
    %3656 = vmatprep.subr.mxu0 0.0
    %3657 = vmatpush1.msra.mxu0 0.0
    %3658 = vmatprep.subr.mxu0 0.0
    %3659 = vmatpush1.msra.mxu0 0.0
    %3660 = vmatprep.subr.mxu0 0.0
    %3661 = vmatpush1.msra.mxu0 0.0
    %3662 = vmatprep.subr.mxu0 0.0
    %3663 = vmatpush1.msra.mxu0 0.0
    %3664 = vmatprep.subr.mxu0 0.0
    %3665 = vmatpush1.msra.mxu0 0.0
    %3666 = vmatprep.subr.mxu0 0.0
    %3667 = vmatpush1.msra.mxu0 0.0
    %3668 = vmatprep.subr.mxu0 0.0
    %3669 = vmatpush1.msra.mxu0 0.0
    %3670 = vmatprep.subr.mxu0 0.0
    %3671 = vmatpush1.msra.mxu0 0.0
    %3672 = vmatprep.subr.mxu0 0.0
    %3673 = vmatpush1.msra.mxu0 0.0
    %3674 = vmatprep.subr.mxu0 0.0
    %3675 = vmatpush1.msra.mxu0 0.0
    %3676 = vmatprep.subr.mxu0 0.0
    %3677 = vmatpush1.msra.mxu0 0.0
    %3678 = vmatprep.subr.mxu0 0.0
    %3679 = vmatpush1.msra.mxu0 0.0
    %3680 = vmatprep.subr.mxu0 0.0
    %3681 = vmatpush1.msra.mxu0 0.0
    %3682 = vmatprep.subr.mxu0 0.0
    %3683 = vmatpush1.msra.mxu0 0.0
    %3684 = vmatprep.subr.mxu0 0.0
    %3685 = vmatpush1.msra.mxu0 0.0
    %3686 = vmatprep.subr.mxu0 0.0
    %3687 = vmatpush1.msra.mxu0 0.0
    %3688 = vmatprep.subr.mxu0 0.0
    %3689 = vmatpush1.msra.mxu0 0.0
    %3690 = vmatprep.subr.mxu0 0.0
    %3691 = vmatpush1.msra.mxu0 0.0
    %3692 = vmatprep.subr.mxu0 0.0
    %3693 = vmatpush1.msra.mxu0 0.0
    %3694 = vmatprep.subr.mxu0 0.0
    %3695 = vmatpush1.msra.mxu0 0.0
    %3696 = vmatprep.subr.mxu0 0.0
    %3697 = vmatpush1.msra.mxu0 0.0
    %3698 = vmatprep.subr.mxu0 0.0
    %3699 = vmatpush1.msra.mxu0 0.0
    %3700 = vmatprep.subr.mxu0 0.0
    %3701 = vmatpush1.msra.mxu0 0.0
    %3702 = vmatprep.subr.mxu0 0.0
    %3703 = vmatpush1.msra.mxu0 0.0
    %3704 = vmatprep.subr.mxu0 0.0
    %3705 = vmatpush1.msra.mxu0 0.0
    %3706 = vmatprep.subr.mxu0 0.0
    %3707 = vmatpush1.msra.mxu0 0.0
    %3708 = vmatprep.subr.mxu0 0.0
    %3709 = vmatpush1.msra.mxu0 0.0
    %3710 = vmatprep.mubr.f32.mxu0 0.0
    %3711 = vmatmul.mubr.f32.gmra.mrb[0].mxu0 %v3644
    %v3712 = vpop.f32.mrb[0].mxu0
    %v3713 = vadd.f32 0.0, %v3712
    %v3714 = vpop.f32.mrb[0].mxu0
    %3715 = vdwg.mxu0
    %v3716 = vadd.f32 %v3116, %v3713
    %v3717 = vtanh.pop %v3716
    %s3718 = scalar_lea.vmem [#allocation7], 32
    %v3719 = vld [vmem:[%s3718] sm:$0xff]
    %v3720 = vld [vmem:[%s3718 + $0x8] sm:$0xff]
    %v3721 = vld [vmem:[%s3718 + $0x10] sm:$0xff]
    %v3722 = vld [vmem:[%s3718 + $0x18] sm:$0xff]
    %3723 = vmatprep.subr.mxu0 0.0
    %3724 = vmatpush1.msra.mxu0 %v3719
    %3725 = vmatprep.subr.mxu0 0.0
    %3726 = vmatpush1.msra.mxu0 %v3720
    %3727 = vmatprep.subr.mxu0 0.0
    %3728 = vmatpush1.msra.mxu0 %v3721
    %3729 = vmatprep.subr.mxu0 0.0
    %3730 = vmatpush1.msra.mxu0 %v3722
    %3731 = vmatprep.subr.mxu0 0.0
    %3732 = vmatpush1.msra.mxu0 0.0
    %3733 = vmatprep.subr.mxu0 0.0
    %3734 = vmatpush1.msra.mxu0 0.0
    %3735 = vmatprep.subr.mxu0 0.0
    %3736 = vmatpush1.msra.mxu0 0.0
    %3737 = vmatprep.subr.mxu0 0.0
    %3738 = vmatpush1.msra.mxu0 0.0
    %3739 = vmatprep.subr.mxu0 0.0
    %3740 = vmatpush1.msra.mxu0 0.0
    %3741 = vmatprep.subr.mxu0 0.0
    %3742 = vmatpush1.msra.mxu0 0.0
    %3743 = vmatprep.subr.mxu0 0.0
    %3744 = vmatpush1.msra.mxu0 0.0
    %3745 = vmatprep.subr.mxu0 0.0
    %3746 = vmatpush1.msra.mxu0 0.0
    %3747 = vmatprep.subr.mxu0 0.0
    %3748 = vmatpush1.msra.mxu0 0.0
    %3749 = vmatprep.subr.mxu0 0.0
    %3750 = vmatpush1.msra.mxu0 0.0
    %3751 = vmatprep.subr.mxu0 0.0
    %3752 = vmatpush1.msra.mxu0 0.0
    %3753 = vmatprep.subr.mxu0 0.0
    %3754 = vmatpush1.msra.mxu0 0.0
    %3755 = vmatprep.subr.mxu0 0.0
    %3756 = vmatpush1.msra.mxu0 0.0
    %3757 = vmatprep.subr.mxu0 0.0
    %3758 = vmatpush1.msra.mxu0 0.0
    %3759 = vmatprep.subr.mxu0 0.0
    %3760 = vmatpush1.msra.mxu0 0.0
    %3761 = vmatprep.subr.mxu0 0.0
    %3762 = vmatpush1.msra.mxu0 0.0
    %3763 = vmatprep.subr.mxu0 0.0
    %3764 = vmatpush1.msra.mxu0 0.0
    %3765 = vmatprep.subr.mxu0 0.0
    %3766 = vmatpush1.msra.mxu0 0.0
    %3767 = vmatprep.subr.mxu0 0.0
    %3768 = vmatpush1.msra.mxu0 0.0
    %3769 = vmatprep.subr.mxu0 0.0
    %3770 = vmatpush1.msra.mxu0 0.0
    %3771 = vmatprep.subr.mxu0 0.0
    %3772 = vmatpush1.msra.mxu0 0.0
    %3773 = vmatprep.subr.mxu0 0.0
    %3774 = vmatpush1.msra.mxu0 0.0
    %3775 = vmatprep.subr.mxu0 0.0
    %3776 = vmatpush1.msra.mxu0 0.0
    %3777 = vmatprep.subr.mxu0 0.0
    %3778 = vmatpush1.msra.mxu0 0.0
    %3779 = vmatprep.subr.mxu0 0.0
    %3780 = vmatpush1.msra.mxu0 0.0
    %3781 = vmatprep.subr.mxu0 0.0
    %3782 = vmatpush1.msra.mxu0 0.0
    %3783 = vmatprep.subr.mxu0 0.0
    %3784 = vmatpush1.msra.mxu0 0.0
    %3785 = vmatprep.subr.mxu0 0.0
    %3786 = vmatpush1.msra.mxu0 0.0
    %3787 = vmatprep.mubr.f32.mxu0 0.0
    %3788 = vmatmul.mubr.f32.gmra.mrb[0].mxu0 %v711
    %v3789 = vpop.f32.mrb[0].mxu0
    %v3790 = vadd.f32 0.0, %v3789
    %v3791 = vpop.f32.mrb[0].mxu0
    %3792 = vdwg.mxu0
    %3794 = vrot.lane.b32.xlu0 %v3790, 32
    %v3795 = vpop.permute.xlu0 %3794
    %v3797 = vadd.f32 %v3116, %v3795
    %v3798 = vtanh.pop %v3797
    %3800 = vrot.lane.b32.xlu0 %v3798, 96
    %v3801 = vpop.permute.xlu0 %3800
    %v3802 = vsel %vm107, %v3801, 0
    %3804 = vmatprep.subr.mxu0 0.0
    %3805 = vmatpush1.msra.mxu0 %v3719
    %3806 = vmatprep.subr.mxu0 0.0
    %3807 = vmatpush1.msra.mxu0 %v3720
    %3808 = vmatprep.subr.mxu0 0.0
    %3809 = vmatpush1.msra.mxu0 %v3721
    %3810 = vmatprep.subr.mxu0 0.0
    %3811 = vmatpush1.msra.mxu0 %v3722
    %3812 = vmatprep.subr.mxu0 0.0
    %3813 = vmatpush1.msra.mxu0 0.0
    %3814 = vmatprep.subr.mxu0 0.0
    %3815 = vmatpush1.msra.mxu0 0.0
    %3816 = vmatprep.subr.mxu0 0.0
    %3817 = vmatpush1.msra.mxu0 0.0
    %3818 = vmatprep.subr.mxu0 0.0
    %3819 = vmatpush1.msra.mxu0 0.0
    %3820 = vmatprep.subr.mxu0 0.0
    %3821 = vmatpush1.msra.mxu0 0.0
    %3822 = vmatprep.subr.mxu0 0.0
    %3823 = vmatpush1.msra.mxu0 0.0
    %3824 = vmatprep.subr.mxu0 0.0
    %3825 = vmatpush1.msra.mxu0 0.0
    %3826 = vmatprep.subr.mxu0 0.0
    %3827 = vmatpush1.msra.mxu0 0.0
    %3828 = vmatprep.subr.mxu0 0.0
    %3829 = vmatpush1.msra.mxu0 0.0
    %3830 = vmatprep.subr.mxu0 0.0
    %3831 = vmatpush1.msra.mxu0 0.0
    %3832 = vmatprep.subr.mxu0 0.0
    %3833 = vmatpush1.msra.mxu0 0.0
    %3834 = vmatprep.subr.mxu0 0.0
    %3835 = vmatpush1.msra.mxu0 0.0
    %3836 = vmatprep.subr.mxu0 0.0
    %3837 = vmatpush1.msra.mxu0 0.0
    %3838 = vmatprep.subr.mxu0 0.0
    %3839 = vmatpush1.msra.mxu0 0.0
    %3840 = vmatprep.subr.mxu0 0.0
    %3841 = vmatpush1.msra.mxu0 0.0
    %3842 = vmatprep.subr.mxu0 0.0
    %3843 = vmatpush1.msra.mxu0 0.0
    %3844 = vmatprep.subr.mxu0 0.0
    %3845 = vmatpush1.msra.mxu0 0.0
    %3846 = vmatprep.subr.mxu0 0.0
    %3847 = vmatpush1.msra.mxu0 0.0
    %3848 = vmatprep.subr.mxu0 0.0
    %3849 = vmatpush1.msra.mxu0 0.0
    %3850 = vmatprep.subr.mxu0 0.0
    %3851 = vmatpush1.msra.mxu0 0.0
    %3852 = vmatprep.subr.mxu0 0.0
    %3853 = vmatpush1.msra.mxu0 0.0
    %3854 = vmatprep.subr.mxu0 0.0
    %3855 = vmatpush1.msra.mxu0 0.0
    %3856 = vmatprep.subr.mxu0 0.0
    %3857 = vmatpush1.msra.mxu0 0.0
    %3858 = vmatprep.subr.mxu0 0.0
    %3859 = vmatpush1.msra.mxu0 0.0
    %3860 = vmatprep.subr.mxu0 0.0
    %3861 = vmatpush1.msra.mxu0 0.0
    %3862 = vmatprep.subr.mxu0 0.0
    %3863 = vmatpush1.msra.mxu0 0.0
    %3864 = vmatprep.subr.mxu0 0.0
    %3865 = vmatpush1.msra.mxu0 0.0
    %3866 = vmatprep.subr.mxu0 0.0
    %3867 = vmatpush1.msra.mxu0 0.0
    %3868 = vmatprep.mubr.f32.mxu0 0.0
    %3869 = vmatmul.mubr.f32.gmra.mrb[0].mxu0 %v3802
    %v3870 = vpop.f32.mrb[0].mxu0
    %v3871 = vadd.f32 0.0, %v3870
    %v3872 = vpop.f32.mrb[0].mxu0
    %3873 = vdwg.mxu0
    %3875 = vrot.lane.b32.xlu0 %v3871, 32
    %v3876 = vpop.permute.xlu0 %3875
    %v3878 = vadd.f32 %v2971, %v3876
    %v3879 = vtanh.pop %v3878
    %3881 = vrot.lane.b32.xlu0 %v3879, 96
    %v3882 = vpop.permute.xlu0 %3881
    %v3883 = vsel %vm107, %v3882, 0
    %3885 = vmatprep.subr.mxu0 0.0
    %3886 = vmatpush1.msra.mxu0 %v3719
    %3887 = vmatprep.subr.mxu0 0.0
    %3888 = vmatpush1.msra.mxu0 %v3720
    %3889 = vmatprep.subr.mxu0 0.0
    %3890 = vmatpush1.msra.mxu0 %v3721
    %3891 = vmatprep.subr.mxu0 0.0
    %3892 = vmatpush1.msra.mxu0 %v3722
    %3893 = vmatprep.subr.mxu0 0.0
    %3894 = vmatpush1.msra.mxu0 0.0
    %3895 = vmatprep.subr.mxu0 0.0
    %3896 = vmatpush1.msra.mxu0 0.0
    %3897 = vmatprep.subr.mxu0 0.0
    %3898 = vmatpush1.msra.mxu0 0.0
    %3899 = vmatprep.subr.mxu0 0.0
    %3900 = vmatpush1.msra.mxu0 0.0
    %3901 = vmatprep.subr.mxu0 0.0
    %3902 = vmatpush1.msra.mxu0 0.0
    %3903 = vmatprep.subr.mxu0 0.0
    %3904 = vmatpush1.msra.mxu0 0.0
    %3905 = vmatprep.subr.mxu0 0.0
    %3906 = vmatpush1.msra.mxu0 0.0
    %3907 = vmatprep.subr.mxu0 0.0
    %3908 = vmatpush1.msra.mxu0 0.0
    %3909 = vmatprep.subr.mxu0 0.0
    %3910 = vmatpush1.msra.mxu0 0.0
    %3911 = vmatprep.subr.mxu0 0.0
    %3912 = vmatpush1.msra.mxu0 0.0
    %3913 = vmatprep.subr.mxu0 0.0
    %3914 = vmatpush1.msra.mxu0 0.0
    %3915 = vmatprep.subr.mxu0 0.0
    %3916 = vmatpush1.msra.mxu0 0.0
    %3917 = vmatprep.subr.mxu0 0.0
    %3918 = vmatpush1.msra.mxu0 0.0
    %3919 = vmatprep.subr.mxu0 0.0
    %3920 = vmatpush1.msra.mxu0 0.0
    %3921 = vmatprep.subr.mxu0 0.0
    %3922 = vmatpush1.msra.mxu0 0.0
    %3923 = vmatprep.subr.mxu0 0.0
    %3924 = vmatpush1.msra.mxu0 0.0
    %3925 = vmatprep.subr.mxu0 0.0
    %3926 = vmatpush1.msra.mxu0 0.0
    %3927 = vmatprep.subr.mxu0 0.0
    %3928 = vmatpush1.msra.mxu0 0.0
    %3929 = vmatprep.subr.mxu0 0.0
    %3930 = vmatpush1.msra.mxu0 0.0
    %3931 = vmatprep.subr.mxu0 0.0
    %3932 = vmatpush1.msra.mxu0 0.0
    %3933 = vmatprep.subr.mxu0 0.0
    %3934 = vmatpush1.msra.mxu0 0.0
    %3935 = vmatprep.subr.mxu0 0.0
    %3936 = vmatpush1.msra.mxu0 0.0
    %3937 = vmatprep.subr.mxu0 0.0
    %3938 = vmatpush1.msra.mxu0 0.0
    %3939 = vmatprep.subr.mxu0 0.0
    %3940 = vmatpush1.msra.mxu0 0.0
    %3941 = vmatprep.subr.mxu0 0.0
    %3942 = vmatpush1.msra.mxu0 0.0
    %3943 = vmatprep.subr.mxu0 0.0
    %3944 = vmatpush1.msra.mxu0 0.0
    %3945 = vmatprep.subr.mxu0 0.0
    %3946 = vmatpush1.msra.mxu0 0.0
    %3947 = vmatprep.subr.mxu0 0.0
    %3948 = vmatpush1.msra.mxu0 0.0
    %3949 = vmatprep.mubr.f32.mxu0 0.0
    %3950 = vmatmul.mubr.f32.gmra.mrb[0].mxu0 %v3883
    %v3951 = vpop.f32.mrb[0].mxu0
    %v3952 = vadd.f32 0.0, %v3951
    %v3953 = vpop.f32.mrb[0].mxu0
    %3954 = vdwg.mxu0
    %3956 = vrot.lane.b32.xlu0 %v3952, 32
    %v3957 = vpop.permute.xlu0 %3956
    %v3959 = vadd.f32 %v2829, %v3957
    %v3960 = vtanh.pop %v3959
    %3962 = vrot.lane.b32.xlu0 %v3960, 96
    %v3963 = vpop.permute.xlu0 %3962
    %v3964 = vsel %vm107, %v3963, 0
    %3966 = vmatprep.subr.mxu0 0.0
    %3967 = vmatpush1.msra.mxu0 %v3719
    %3968 = vmatprep.subr.mxu0 0.0
    %3969 = vmatpush1.msra.mxu0 %v3720
    %3970 = vmatprep.subr.mxu0 0.0
    %3971 = vmatpush1.msra.mxu0 %v3721
    %3972 = vmatprep.subr.mxu0 0.0
    %3973 = vmatpush1.msra.mxu0 %v3722
    %3974 = vmatprep.subr.mxu0 0.0
    %3975 = vmatpush1.msra.mxu0 0.0
    %3976 = vmatprep.subr.mxu0 0.0
    %3977 = vmatpush1.msra.mxu0 0.0
    %3978 = vmatprep.subr.mxu0 0.0
    %3979 = vmatpush1.msra.mxu0 0.0
    %3980 = vmatprep.subr.mxu0 0.0
    %3981 = vmatpush1.msra.mxu0 0.0
    %3982 = vmatprep.subr.mxu0 0.0
    %3983 = vmatpush1.msra.mxu0 0.0
    %3984 = vmatprep.subr.mxu0 0.0
    %3985 = vmatpush1.msra.mxu0 0.0
    %3986 = vmatprep.subr.mxu0 0.0
    %3987 = vmatpush1.msra.mxu0 0.0
    %3988 = vmatprep.subr.mxu0 0.0
    %3989 = vmatpush1.msra.mxu0 0.0
    %3990 = vmatprep.subr.mxu0 0.0
    %3991 = vmatpush1.msra.mxu0 0.0
    %3992 = vmatprep.subr.mxu0 0.0
    %3993 = vmatpush1.msra.mxu0 0.0
    %3994 = vmatprep.subr.mxu0 0.0
    %3995 = vmatpush1.msra.mxu0 0.0
    %3996 = vmatprep.subr.mxu0 0.0
    %3997 = vmatpush1.msra.mxu0 0.0
    %3998 = vmatprep.subr.mxu0 0.0
    %3999 = vmatpush1.msra.mxu0 0.0
    %4000 = vmatprep.subr.mxu0 0.0
    %4001 = vmatpush1.msra.mxu0 0.0
    %4002 = vmatprep.subr.mxu0 0.0
    %4003 = vmatpush1.msra.mxu0 0.0
    %4004 = vmatprep.subr.mxu0 0.0
    %4005 = vmatpush1.msra.mxu0 0.0
    %4006 = vmatprep.subr.mxu0 0.0
    %4007 = vmatpush1.msra.mxu0 0.0
    %4008 = vmatprep.subr.mxu0 0.0
    %4009 = vmatpush1.msra.mxu0 0.0
    %4010 = vmatprep.subr.mxu0 0.0
    %4011 = vmatpush1.msra.mxu0 0.0
    %4012 = vmatprep.subr.mxu0 0.0
    %4013 = vmatpush1.msra.mxu0 0.0
    %4014 = vmatprep.subr.mxu0 0.0
    %4015 = vmatpush1.msra.mxu0 0.0
    %4016 = vmatprep.subr.mxu0 0.0
    %4017 = vmatpush1.msra.mxu0 0.0
    %4018 = vmatprep.subr.mxu0 0.0
    %4019 = vmatpush1.msra.mxu0 0.0
    %4020 = vmatprep.subr.mxu0 0.0
    %4021 = vmatpush1.msra.mxu0 0.0
    %4022 = vmatprep.subr.mxu0 0.0
    %4023 = vmatpush1.msra.mxu0 0.0
    %4024 = vmatprep.subr.mxu0 0.0
    %4025 = vmatpush1.msra.mxu0 0.0
    %4026 = vmatprep.subr.mxu0 0.0
    %4027 = vmatpush1.msra.mxu0 0.0
    %4028 = vmatprep.subr.mxu0 0.0
    %4029 = vmatpush1.msra.mxu0 0.0
    %4030 = vmatprep.mubr.f32.mxu0 0.0
    %4031 = vmatmul.mubr.f32.gmra.mrb[0].mxu0 %v3964
    %v4032 = vpop.f32.mrb[0].mxu0
    %v4033 = vadd.f32 0.0, %v4032
    %v4034 = vpop.f32.mrb[0].mxu0
    %4035 = vdwg.mxu0
    %4037 = vrot.lane.b32.xlu0 %v4033, 32
    %v4038 = vpop.permute.xlu0 %4037
    %v4040 = vadd.f32 %v2687, %v4038
    %v4041 = vtanh.pop %v4040
    %4043 = vrot.lane.b32.xlu0 %v4041, 96
    %v4044 = vpop.permute.xlu0 %4043
    %v4045 = vsel %vm107, %v4044, 0
    %4047 = vmatprep.subr.mxu0 0.0
    %4048 = vmatpush1.msra.mxu0 %v3719
    %4049 = vmatprep.subr.mxu0 0.0
    %4050 = vmatpush1.msra.mxu0 %v3720
    %4051 = vmatprep.subr.mxu0 0.0
    %4052 = vmatpush1.msra.mxu0 %v3721
    %4053 = vmatprep.subr.mxu0 0.0
    %4054 = vmatpush1.msra.mxu0 %v3722
    %4055 = vmatprep.subr.mxu0 0.0
    %4056 = vmatpush1.msra.mxu0 0.0
    %4057 = vmatprep.subr.mxu0 0.0
    %4058 = vmatpush1.msra.mxu0 0.0
    %4059 = vmatprep.subr.mxu0 0.0
    %4060 = vmatpush1.msra.mxu0 0.0
    %4061 = vmatprep.subr.mxu0 0.0
    %4062 = vmatpush1.msra.mxu0 0.0
    %4063 = vmatprep.subr.mxu0 0.0
    %4064 = vmatpush1.msra.mxu0 0.0
    %4065 = vmatprep.subr.mxu0 0.0
    %4066 = vmatpush1.msra.mxu0 0.0
    %4067 = vmatprep.subr.mxu0 0.0
    %4068 = vmatpush1.msra.mxu0 0.0
    %4069 = vmatprep.subr.mxu0 0.0
    %4070 = vmatpush1.msra.mxu0 0.0
    %4071 = vmatprep.subr.mxu0 0.0
    %4072 = vmatpush1.msra.mxu0 0.0
    %4073 = vmatprep.subr.mxu0 0.0
    %4074 = vmatpush1.msra.mxu0 0.0
    %4075 = vmatprep.subr.mxu0 0.0
    %4076 = vmatpush1.msra.mxu0 0.0
    %4077 = vmatprep.subr.mxu0 0.0
    %4078 = vmatpush1.msra.mxu0 0.0
    %4079 = vmatprep.subr.mxu0 0.0
    %4080 = vmatpush1.msra.mxu0 0.0
    %4081 = vmatprep.subr.mxu0 0.0
    %4082 = vmatpush1.msra.mxu0 0.0
    %4083 = vmatprep.subr.mxu0 0.0
    %4084 = vmatpush1.msra.mxu0 0.0
    %4085 = vmatprep.subr.mxu0 0.0
    %4086 = vmatpush1.msra.mxu0 0.0
    %4087 = vmatprep.subr.mxu0 0.0
    %4088 = vmatpush1.msra.mxu0 0.0
    %4089 = vmatprep.subr.mxu0 0.0
    %4090 = vmatpush1.msra.mxu0 0.0
    %4091 = vmatprep.subr.mxu0 0.0
    %4092 = vmatpush1.msra.mxu0 0.0
    %4093 = vmatprep.subr.mxu0 0.0
    %4094 = vmatpush1.msra.mxu0 0.0
    %4095 = vmatprep.subr.mxu0 0.0
    %4096 = vmatpush1.msra.mxu0 0.0
    %4097 = vmatprep.subr.mxu0 0.0
    %4098 = vmatpush1.msra.mxu0 0.0
    %4099 = vmatprep.subr.mxu0 0.0
    %4100 = vmatpush1.msra.mxu0 0.0
    %4101 = vmatprep.subr.mxu0 0.0
    %4102 = vmatpush1.msra.mxu0 0.0
    %4103 = vmatprep.subr.mxu0 0.0
    %4104 = vmatpush1.msra.mxu0 0.0
    %4105 = vmatprep.subr.mxu0 0.0
    %4106 = vmatpush1.msra.mxu0 0.0
    %4107 = vmatprep.subr.mxu0 0.0
    %4108 = vmatpush1.msra.mxu0 0.0
    %4109 = vmatprep.subr.mxu0 0.0
    %4110 = vmatpush1.msra.mxu0 0.0
    %4111 = vmatprep.mubr.f32.mxu0 0.0
    %4112 = vmatmul.mubr.f32.gmra.mrb[0].mxu0 %v4045
    %v4113 = vpop.f32.mrb[0].mxu0
    %v4114 = vadd.f32 0.0, %v4113
    %v4115 = vpop.f32.mrb[0].mxu0
    %4116 = vdwg.mxu0
    %4118 = vrot.lane.b32.xlu0 %v4114, 32
    %v4119 = vpop.permute.xlu0 %4118
    %v4121 = vadd.f32 %v2545, %v4119
    %v4122 = vtanh.pop %v4121
    %4124 = vrot.lane.b32.xlu0 %v4122, 96
    %v4125 = vpop.permute.xlu0 %4124
    %v4126 = vsel %vm107, %v4125, 0
    %4128 = vmatprep.subr.mxu0 0.0
    %4129 = vmatpush1.msra.mxu0 %v3719
    %4130 = vmatprep.subr.mxu0 0.0
    %4131 = vmatpush1.msra.mxu0 %v3720
    %4132 = vmatprep.subr.mxu0 0.0
    %4133 = vmatpush1.msra.mxu0 %v3721
    %4134 = vmatprep.subr.mxu0 0.0
    %4135 = vmatpush1.msra.mxu0 %v3722
    %4136 = vmatprep.subr.mxu0 0.0
    %4137 = vmatpush1.msra.mxu0 0.0
    %4138 = vmatprep.subr.mxu0 0.0
    %4139 = vmatpush1.msra.mxu0 0.0
    %4140 = vmatprep.subr.mxu0 0.0
    %4141 = vmatpush1.msra.mxu0 0.0
    %4142 = vmatprep.subr.mxu0 0.0
    %4143 = vmatpush1.msra.mxu0 0.0
    %4144 = vmatprep.subr.mxu0 0.0
    %4145 = vmatpush1.msra.mxu0 0.0
    %4146 = vmatprep.subr.mxu0 0.0
    %4147 = vmatpush1.msra.mxu0 0.0
    %4148 = vmatprep.subr.mxu0 0.0
    %4149 = vmatpush1.msra.mxu0 0.0
    %4150 = vmatprep.subr.mxu0 0.0
    %4151 = vmatpush1.msra.mxu0 0.0
    %4152 = vmatprep.subr.mxu0 0.0
    %4153 = vmatpush1.msra.mxu0 0.0
    %4154 = vmatprep.subr.mxu0 0.0
    %4155 = vmatpush1.msra.mxu0 0.0
    %4156 = vmatprep.subr.mxu0 0.0
    %4157 = vmatpush1.msra.mxu0 0.0
    %4158 = vmatprep.subr.mxu0 0.0
    %4159 = vmatpush1.msra.mxu0 0.0
    %4160 = vmatprep.subr.mxu0 0.0
    %4161 = vmatpush1.msra.mxu0 0.0
    %4162 = vmatprep.subr.mxu0 0.0
    %4163 = vmatpush1.msra.mxu0 0.0
    %4164 = vmatprep.subr.mxu0 0.0
    %4165 = vmatpush1.msra.mxu0 0.0
    %4166 = vmatprep.subr.mxu0 0.0
    %4167 = vmatpush1.msra.mxu0 0.0
    %4168 = vmatprep.subr.mxu0 0.0
    %4169 = vmatpush1.msra.mxu0 0.0
    %4170 = vmatprep.subr.mxu0 0.0
    %4171 = vmatpush1.msra.mxu0 0.0
    %4172 = vmatprep.subr.mxu0 0.0
    %4173 = vmatpush1.msra.mxu0 0.0
    %4174 = vmatprep.subr.mxu0 0.0
    %4175 = vmatpush1.msra.mxu0 0.0
    %4176 = vmatprep.subr.mxu0 0.0
    %4177 = vmatpush1.msra.mxu0 0.0
    %4178 = vmatprep.subr.mxu0 0.0
    %4179 = vmatpush1.msra.mxu0 0.0
    %4180 = vmatprep.subr.mxu0 0.0
    %4181 = vmatpush1.msra.mxu0 0.0
    %4182 = vmatprep.subr.mxu0 0.0
    %4183 = vmatpush1.msra.mxu0 0.0
    %4184 = vmatprep.subr.mxu0 0.0
    %4185 = vmatpush1.msra.mxu0 0.0
    %4186 = vmatprep.subr.mxu0 0.0
    %4187 = vmatpush1.msra.mxu0 0.0
    %4188 = vmatprep.subr.mxu0 0.0
    %4189 = vmatpush1.msra.mxu0 0.0
    %4190 = vmatprep.subr.mxu0 0.0
    %4191 = vmatpush1.msra.mxu0 0.0
    %4192 = vmatprep.mubr.f32.mxu0 0.0
    %4193 = vmatmul.mubr.f32.gmra.mrb[0].mxu0 %v4126
    %v4194 = vpop.f32.mrb[0].mxu0
    %v4195 = vadd.f32 0.0, %v4194
    %v4196 = vpop.f32.mrb[0].mxu0
    %4197 = vdwg.mxu0
    %4199 = vrot.lane.b32.xlu0 %v4195, 32
    %v4200 = vpop.permute.xlu0 %4199
    %v4202 = vadd.f32 %v2403, %v4200
    %v4203 = vtanh.pop %v4202
    %4205 = vrot.lane.b32.xlu0 %v4203, 96
    %v4206 = vpop.permute.xlu0 %4205
    %v4207 = vsel %vm107, %v4206, 0
    %4209 = vmatprep.subr.mxu0 0.0
    %4210 = vmatpush1.msra.mxu0 %v3719
    %4211 = vmatprep.subr.mxu0 0.0
    %4212 = vmatpush1.msra.mxu0 %v3720
    %4213 = vmatprep.subr.mxu0 0.0
    %4214 = vmatpush1.msra.mxu0 %v3721
    %4215 = vmatprep.subr.mxu0 0.0
    %4216 = vmatpush1.msra.mxu0 %v3722
    %4217 = vmatprep.subr.mxu0 0.0
    %4218 = vmatpush1.msra.mxu0 0.0
    %4219 = vmatprep.subr.mxu0 0.0
    %4220 = vmatpush1.msra.mxu0 0.0
    %4221 = vmatprep.subr.mxu0 0.0
    %4222 = vmatpush1.msra.mxu0 0.0
    %4223 = vmatprep.subr.mxu0 0.0
    %4224 = vmatpush1.msra.mxu0 0.0
    %4225 = vmatprep.subr.mxu0 0.0
    %4226 = vmatpush1.msra.mxu0 0.0
    %4227 = vmatprep.subr.mxu0 0.0
    %4228 = vmatpush1.msra.mxu0 0.0
    %4229 = vmatprep.subr.mxu0 0.0
    %4230 = vmatpush1.msra.mxu0 0.0
    %4231 = vmatprep.subr.mxu0 0.0
    %4232 = vmatpush1.msra.mxu0 0.0
    %4233 = vmatprep.subr.mxu0 0.0
    %4234 = vmatpush1.msra.mxu0 0.0
    %4235 = vmatprep.subr.mxu0 0.0
    %4236 = vmatpush1.msra.mxu0 0.0
    %4237 = vmatprep.subr.mxu0 0.0
    %4238 = vmatpush1.msra.mxu0 0.0
    %4239 = vmatprep.subr.mxu0 0.0
    %4240 = vmatpush1.msra.mxu0 0.0
    %4241 = vmatprep.subr.mxu0 0.0
    %4242 = vmatpush1.msra.mxu0 0.0
    %4243 = vmatprep.subr.mxu0 0.0
    %4244 = vmatpush1.msra.mxu0 0.0
    %4245 = vmatprep.subr.mxu0 0.0
    %4246 = vmatpush1.msra.mxu0 0.0
    %4247 = vmatprep.subr.mxu0 0.0
    %4248 = vmatpush1.msra.mxu0 0.0
    %4249 = vmatprep.subr.mxu0 0.0
    %4250 = vmatpush1.msra.mxu0 0.0
    %4251 = vmatprep.subr.mxu0 0.0
    %4252 = vmatpush1.msra.mxu0 0.0
    %4253 = vmatprep.subr.mxu0 0.0
    %4254 = vmatpush1.msra.mxu0 0.0
    %4255 = vmatprep.subr.mxu0 0.0
    %4256 = vmatpush1.msra.mxu0 0.0
    %4257 = vmatprep.subr.mxu0 0.0
    %4258 = vmatpush1.msra.mxu0 0.0
    %4259 = vmatprep.subr.mxu0 0.0
    %4260 = vmatpush1.msra.mxu0 0.0
    %4261 = vmatprep.subr.mxu0 0.0
    %4262 = vmatpush1.msra.mxu0 0.0
    %4263 = vmatprep.subr.mxu0 0.0
    %4264 = vmatpush1.msra.mxu0 0.0
    %4265 = vmatprep.subr.mxu0 0.0
    %4266 = vmatpush1.msra.mxu0 0.0
    %4267 = vmatprep.subr.mxu0 0.0
    %4268 = vmatpush1.msra.mxu0 0.0
    %4269 = vmatprep.subr.mxu0 0.0
    %4270 = vmatpush1.msra.mxu0 0.0
    %4271 = vmatprep.subr.mxu0 0.0
    %4272 = vmatpush1.msra.mxu0 0.0
    %4273 = vmatprep.mubr.f32.mxu0 0.0
    %4274 = vmatmul.mubr.f32.gmra.mrb[0].mxu0 %v4207
    %v4275 = vpop.f32.mrb[0].mxu0
    %v4276 = vadd.f32 0.0, %v4275
    %v4277 = vpop.f32.mrb[0].mxu0
    %4278 = vdwg.mxu0
    %4280 = vrot.lane.b32.xlu0 %v4276, 32
    %v4281 = vpop.permute.xlu0 %4280
    %v4283 = vadd.f32 %v2261, %v4281
    %v4284 = vtanh.pop %v4283
    %4286 = vrot.lane.b32.xlu0 %v4284, 96
    %v4287 = vpop.permute.xlu0 %4286
    %v4288 = vsel %vm107, %v4287, 0
    %4290 = vmatprep.subr.mxu0 0.0
    %4291 = vmatpush1.msra.mxu0 %v3719
    %4292 = vmatprep.subr.mxu0 0.0
    %4293 = vmatpush1.msra.mxu0 %v3720
    %4294 = vmatprep.subr.mxu0 0.0
    %4295 = vmatpush1.msra.mxu0 %v3721
    %4296 = vmatprep.subr.mxu0 0.0
    %4297 = vmatpush1.msra.mxu0 %v3722
    %4298 = vmatprep.subr.mxu0 0.0
    %4299 = vmatpush1.msra.mxu0 0.0
    %4300 = vmatprep.subr.mxu0 0.0
    %4301 = vmatpush1.msra.mxu0 0.0
    %4302 = vmatprep.subr.mxu0 0.0
    %4303 = vmatpush1.msra.mxu0 0.0
    %4304 = vmatprep.subr.mxu0 0.0
    %4305 = vmatpush1.msra.mxu0 0.0
    %4306 = vmatprep.subr.mxu0 0.0
    %4307 = vmatpush1.msra.mxu0 0.0
    %4308 = vmatprep.subr.mxu0 0.0
    %4309 = vmatpush1.msra.mxu0 0.0
    %4310 = vmatprep.subr.mxu0 0.0
    %4311 = vmatpush1.msra.mxu0 0.0
    %4312 = vmatprep.subr.mxu0 0.0
    %4313 = vmatpush1.msra.mxu0 0.0
    %4314 = vmatprep.subr.mxu0 0.0
    %4315 = vmatpush1.msra.mxu0 0.0
    %4316 = vmatprep.subr.mxu0 0.0
    %4317 = vmatpush1.msra.mxu0 0.0
    %4318 = vmatprep.subr.mxu0 0.0
    %4319 = vmatpush1.msra.mxu0 0.0
    %4320 = vmatprep.subr.mxu0 0.0
    %4321 = vmatpush1.msra.mxu0 0.0
    %4322 = vmatprep.subr.mxu0 0.0
    %4323 = vmatpush1.msra.mxu0 0.0
    %4324 = vmatprep.subr.mxu0 0.0
    %4325 = vmatpush1.msra.mxu0 0.0
    %4326 = vmatprep.subr.mxu0 0.0
    %4327 = vmatpush1.msra.mxu0 0.0
    %4328 = vmatprep.subr.mxu0 0.0
    %4329 = vmatpush1.msra.mxu0 0.0
    %4330 = vmatprep.subr.mxu0 0.0
    %4331 = vmatpush1.msra.mxu0 0.0
    %4332 = vmatprep.subr.mxu0 0.0
    %4333 = vmatpush1.msra.mxu0 0.0
    %4334 = vmatprep.subr.mxu0 0.0
    %4335 = vmatpush1.msra.mxu0 0.0
    %4336 = vmatprep.subr.mxu0 0.0
    %4337 = vmatpush1.msra.mxu0 0.0
    %4338 = vmatprep.subr.mxu0 0.0
    %4339 = vmatpush1.msra.mxu0 0.0
    %4340 = vmatprep.subr.mxu0 0.0
    %4341 = vmatpush1.msra.mxu0 0.0
    %4342 = vmatprep.subr.mxu0 0.0
    %4343 = vmatpush1.msra.mxu0 0.0
    %4344 = vmatprep.subr.mxu0 0.0
    %4345 = vmatpush1.msra.mxu0 0.0
    %4346 = vmatprep.subr.mxu0 0.0
    %4347 = vmatpush1.msra.mxu0 0.0
    %4348 = vmatprep.subr.mxu0 0.0
    %4349 = vmatpush1.msra.mxu0 0.0
    %4350 = vmatprep.subr.mxu0 0.0
    %4351 = vmatpush1.msra.mxu0 0.0
    %4352 = vmatprep.subr.mxu0 0.0
    %4353 = vmatpush1.msra.mxu0 0.0
    %4354 = vmatprep.mubr.f32.mxu0 0.0
    %4355 = vmatmul.mubr.f32.gmra.mrb[0].mxu0 %v4288
    %v4356 = vpop.f32.mrb[0].mxu0
    %v4357 = vadd.f32 0.0, %v4356
    %v4358 = vpop.f32.mrb[0].mxu0
    %4359 = vdwg.mxu0
    %4361 = vrot.lane.b32.xlu0 %v4357, 32
    %v4362 = vpop.permute.xlu0 %4361
    %v4364 = vadd.f32 %v2119, %v4362
    %v4365 = vtanh.pop %v4364
    %v4366 = vld [vmem:[%s8] sm:$0x1]
    %v4367 = vld [vmem:[%s7] sm:$0xff]
    %v4368 = vld [vmem:[%s7 + $0x8] sm:$0xff]
    %v4369 = vld [vmem:[%s7 + $0x10] sm:$0xff]
    %v4370 = vld [vmem:[%s7 + $0x18] sm:$0xff]
    %v4371 = vld [vmem:[%s7 + $0x20] sm:$0xff]
    %v4372 = vld [vmem:[%s7 + $0x28] sm:$0xff]
    %v4373 = vld [vmem:[%s7 + $0x30] sm:$0xff]
    %v4374 = vld [vmem:[%s7 + $0x38] sm:$0xff]
    %4375 = vmatprep.subr.mxu0 0.0
    %4376 = vmatpush1.msra.mxu0 %v4367
    %4377 = vmatprep.subr.mxu0 0.0
    %4378 = vmatpush1.msra.mxu0 %v4368
    %4379 = vmatprep.subr.mxu0 0.0
    %4380 = vmatpush1.msra.mxu0 %v4369
    %4381 = vmatprep.subr.mxu0 0.0
    %4382 = vmatpush1.msra.mxu0 %v4370
    %4383 = vmatprep.subr.mxu0 0.0
    %4384 = vmatpush1.msra.mxu0 0.0
    %4385 = vmatprep.subr.mxu0 0.0
    %4386 = vmatpush1.msra.mxu0 0.0
    %4387 = vmatprep.subr.mxu0 0.0
    %4388 = vmatpush1.msra.mxu0 0.0
    %4389 = vmatprep.subr.mxu0 0.0
    %4390 = vmatpush1.msra.mxu0 0.0
    %4391 = vmatprep.subr.mxu0 0.0
    %4392 = vmatpush1.msra.mxu0 0.0
    %4393 = vmatprep.subr.mxu0 0.0
    %4394 = vmatpush1.msra.mxu0 0.0
    %4395 = vmatprep.subr.mxu0 0.0
    %4396 = vmatpush1.msra.mxu0 0.0
    %4397 = vmatprep.subr.mxu0 0.0
    %4398 = vmatpush1.msra.mxu0 0.0
    %4399 = vmatprep.subr.mxu0 0.0
    %4400 = vmatpush1.msra.mxu0 0.0
    %4401 = vmatprep.subr.mxu0 0.0
    %4402 = vmatpush1.msra.mxu0 0.0
    %4403 = vmatprep.subr.mxu0 0.0
    %4404 = vmatpush1.msra.mxu0 0.0
    %4405 = vmatprep.subr.mxu0 0.0
    %4406 = vmatpush1.msra.mxu0 0.0
    %4407 = vmatprep.subr.mxu0 0.0
    %4408 = vmatpush1.msra.mxu0 0.0
    %4409 = vmatprep.subr.mxu0 0.0
    %4410 = vmatpush1.msra.mxu0 0.0
    %4411 = vmatprep.subr.mxu0 0.0
    %4412 = vmatpush1.msra.mxu0 0.0
    %4413 = vmatprep.subr.mxu0 0.0
    %4414 = vmatpush1.msra.mxu0 0.0
    %4415 = vmatprep.subr.mxu0 0.0
    %4416 = vmatpush1.msra.mxu0 0.0
    %4417 = vmatprep.subr.mxu0 0.0
    %4418 = vmatpush1.msra.mxu0 0.0
    %4419 = vmatprep.subr.mxu0 0.0
    %4420 = vmatpush1.msra.mxu0 0.0
    %4421 = vmatprep.subr.mxu0 0.0
    %4422 = vmatpush1.msra.mxu0 0.0
    %4423 = vmatprep.subr.mxu0 0.0
    %4424 = vmatpush1.msra.mxu0 0.0
    %4425 = vmatprep.subr.mxu0 0.0
    %4426 = vmatpush1.msra.mxu0 0.0
    %4427 = vmatprep.subr.mxu0 0.0
    %4428 = vmatpush1.msra.mxu0 0.0
    %4429 = vmatprep.subr.mxu0 0.0
    %4430 = vmatpush1.msra.mxu0 0.0
    %4431 = vmatprep.subr.mxu0 0.0
    %4432 = vmatpush1.msra.mxu0 0.0
    %4433 = vmatprep.subr.mxu0 0.0
    %4434 = vmatpush1.msra.mxu0 0.0
    %4435 = vmatprep.subr.mxu0 0.0
    %4436 = vmatpush1.msra.mxu0 0.0
    %4437 = vmatprep.subr.mxu0 0.0
    %4438 = vmatpush1.msra.mxu0 0.0
    %4439 = vmatprep.mubr.f32.mxu0 0.0
    %4440 = vmatmul.mubr.f32.gmra.mrb[0].mxu0 %v3194
    %v4441 = vpop.f32.mrb[0].mxu0
    %v4442 = vadd.f32 0.0, %v4441
    %v4443 = vpop.f32.mrb[0].mxu0
    %4444 = vdwg.mxu0
    %v4446 = vlaneseq
    %v4447 = vshrl.u32 %v4446, 7
    %v4448 = vsub.s32 0, %v4447
    %v4449 = vrot.slane %v4366, %v4448
    %v4451 = vadd.f32 %v4449, %v4442
    %4453 = vrot.lane.b32.xlu0 %v4365, 96
    %v4454 = vpop.permute.xlu0 %4453
    %v4455 = vsel %vm107, %v4454, 0
    %4457 = vmatprep.subr.mxu0 0.0
    %4458 = vmatpush1.msra.mxu0 %v4371
    %4459 = vmatprep.subr.mxu0 0.0
    %4460 = vmatpush1.msra.mxu0 %v4372
    %4461 = vmatprep.subr.mxu0 0.0
    %4462 = vmatpush1.msra.mxu0 %v4373
    %4463 = vmatprep.subr.mxu0 0.0
    %4464 = vmatpush1.msra.mxu0 %v4374
    %4465 = vmatprep.subr.mxu0 0.0
    %4466 = vmatpush1.msra.mxu0 0.0
    %4467 = vmatprep.subr.mxu0 0.0
    %4468 = vmatpush1.msra.mxu0 0.0
    %4469 = vmatprep.subr.mxu0 0.0
    %4470 = vmatpush1.msra.mxu0 0.0
    %4471 = vmatprep.subr.mxu0 0.0
    %4472 = vmatpush1.msra.mxu0 0.0
    %4473 = vmatprep.subr.mxu0 0.0
    %4474 = vmatpush1.msra.mxu0 0.0
    %4475 = vmatprep.subr.mxu0 0.0
    %4476 = vmatpush1.msra.mxu0 0.0
    %4477 = vmatprep.subr.mxu0 0.0
    %4478 = vmatpush1.msra.mxu0 0.0
    %4479 = vmatprep.subr.mxu0 0.0
    %4480 = vmatpush1.msra.mxu0 0.0
    %4481 = vmatprep.subr.mxu0 0.0
    %4482 = vmatpush1.msra.mxu0 0.0
    %4483 = vmatprep.subr.mxu0 0.0
    %4484 = vmatpush1.msra.mxu0 0.0
    %4485 = vmatprep.subr.mxu0 0.0
    %4486 = vmatpush1.msra.mxu0 0.0
    %4487 = vmatprep.subr.mxu0 0.0
    %4488 = vmatpush1.msra.mxu0 0.0
    %4489 = vmatprep.subr.mxu0 0.0
    %4490 = vmatpush1.msra.mxu0 0.0
    %4491 = vmatprep.subr.mxu0 0.0
    %4492 = vmatpush1.msra.mxu0 0.0
    %4493 = vmatprep.subr.mxu0 0.0
    %4494 = vmatpush1.msra.mxu0 0.0
    %4495 = vmatprep.subr.mxu0 0.0
    %4496 = vmatpush1.msra.mxu0 0.0
    %4497 = vmatprep.subr.mxu0 0.0
    %4498 = vmatpush1.msra.mxu0 0.0
    %4499 = vmatprep.subr.mxu0 0.0
    %4500 = vmatpush1.msra.mxu0 0.0
    %4501 = vmatprep.subr.mxu0 0.0
    %4502 = vmatpush1.msra.mxu0 0.0
    %4503 = vmatprep.subr.mxu0 0.0
    %4504 = vmatpush1.msra.mxu0 0.0
    %4505 = vmatprep.subr.mxu0 0.0
    %4506 = vmatpush1.msra.mxu0 0.0
    %4507 = vmatprep.subr.mxu0 0.0
    %4508 = vmatpush1.msra.mxu0 0.0
    %4509 = vmatprep.subr.mxu0 0.0
    %4510 = vmatpush1.msra.mxu0 0.0
    %4511 = vmatprep.subr.mxu0 0.0
    %4512 = vmatpush1.msra.mxu0 0.0
    %4513 = vmatprep.subr.mxu0 0.0
    %4514 = vmatpush1.msra.mxu0 0.0
    %4515 = vmatprep.subr.mxu0 0.0
    %4516 = vmatpush1.msra.mxu0 0.0
    %4517 = vmatprep.subr.mxu0 0.0
    %4518 = vmatpush1.msra.mxu0 0.0
    %4519 = vmatprep.subr.mxu0 0.0
    %4520 = vmatpush1.msra.mxu0 0.0
    %4521 = vmatprep.mubr.f32.mxu0 0.0
    %4522 = vmatmul.mubr.f32.gmra.mrb[0].mxu0 %v4455
    %v4523 = vpop.f32.mrb[0].mxu0
    %v4524 = vadd.f32 0.0, %v4523
    %v4525 = vpop.f32.mrb[0].mxu0
    %4526 = vdwg.mxu0
    %v4527 = vadd.f32 %v4451, %v4524
    %v4528 = vxor.u32 %v4527, 2147483648
    %v4529 = vmul.f32 %v4528, 1.442695
    %v4530 = vpow.pop %v4529
    %v4531 = vadd.f32 %v4530, 1.0
    %v4532 = vrcp.pop %v4531
    %v4533 = vmul.f32 1.0, %v4532
    %vm4534 = vcmask 27648
    %4535 = vst.msk [vmem:[%s9] sm:$0xf] %vm4534, %v4533
    %4536 = vmatprep.subr.mxu0 0.0
    %4537 = vmatpush1.msra.mxu0 %v4367
    %4538 = vmatprep.subr.mxu0 0.0
    %4539 = vmatpush1.msra.mxu0 %v4368
    %4540 = vmatprep.subr.mxu0 0.0
    %4541 = vmatpush1.msra.mxu0 %v4369
    %4542 = vmatprep.subr.mxu0 0.0
    %4543 = vmatpush1.msra.mxu0 %v4370
    %4544 = vmatprep.subr.mxu0 0.0
    %4545 = vmatpush1.msra.mxu0 0.0
    %4546 = vmatprep.subr.mxu0 0.0
    %4547 = vmatpush1.msra.mxu0 0.0
    %4548 = vmatprep.subr.mxu0 0.0
    %4549 = vmatpush1.msra.mxu0 0.0
    %4550 = vmatprep.subr.mxu0 0.0
    %4551 = vmatpush1.msra.mxu0 0.0
    %4552 = vmatprep.subr.mxu0 0.0
    %4553 = vmatpush1.msra.mxu0 0.0
    %4554 = vmatprep.subr.mxu0 0.0
    %4555 = vmatpush1.msra.mxu0 0.0
    %4556 = vmatprep.subr.mxu0 0.0
    %4557 = vmatpush1.msra.mxu0 0.0
    %4558 = vmatprep.subr.mxu0 0.0
    %4559 = vmatpush1.msra.mxu0 0.0
    %4560 = vmatprep.subr.mxu0 0.0
    %4561 = vmatpush1.msra.mxu0 0.0
    %4562 = vmatprep.subr.mxu0 0.0
    %4563 = vmatpush1.msra.mxu0 0.0
    %4564 = vmatprep.subr.mxu0 0.0
    %4565 = vmatpush1.msra.mxu0 0.0
    %4566 = vmatprep.subr.mxu0 0.0
    %4567 = vmatpush1.msra.mxu0 0.0
    %4568 = vmatprep.subr.mxu0 0.0
    %4569 = vmatpush1.msra.mxu0 0.0
    %4570 = vmatprep.subr.mxu0 0.0
    %4571 = vmatpush1.msra.mxu0 0.0
    %4572 = vmatprep.subr.mxu0 0.0
    %4573 = vmatpush1.msra.mxu0 0.0
    %4574 = vmatprep.subr.mxu0 0.0
    %4575 = vmatpush1.msra.mxu0 0.0
    %4576 = vmatprep.subr.mxu0 0.0
    %4577 = vmatpush1.msra.mxu0 0.0
    %4578 = vmatprep.subr.mxu0 0.0
    %4579 = vmatpush1.msra.mxu0 0.0
    %4580 = vmatprep.subr.mxu0 0.0
    %4581 = vmatpush1.msra.mxu0 0.0
    %4582 = vmatprep.subr.mxu0 0.0
    %4583 = vmatpush1.msra.mxu0 0.0
    %4584 = vmatprep.subr.mxu0 0.0
    %4585 = vmatpush1.msra.mxu0 0.0
    %4586 = vmatprep.subr.mxu0 0.0
    %4587 = vmatpush1.msra.mxu0 0.0
    %4588 = vmatprep.subr.mxu0 0.0
    %4589 = vmatpush1.msra.mxu0 0.0
    %4590 = vmatprep.subr.mxu0 0.0
    %4591 = vmatpush1.msra.mxu0 0.0
    %4592 = vmatprep.subr.mxu0 0.0
    %4593 = vmatpush1.msra.mxu0 0.0
    %4594 = vmatprep.subr.mxu0 0.0
    %4595 = vmatpush1.msra.mxu0 0.0
    %4596 = vmatprep.subr.mxu0 0.0
    %4597 = vmatpush1.msra.mxu0 0.0
    %4598 = vmatprep.subr.mxu0 0.0
    %4599 = vmatpush1.msra.mxu0 0.0
    %4600 = vmatprep.mubr.f32.mxu0 0.0
    %4601 = vmatmul.mubr.f32.gmra.mrb[0].mxu0 %v3269
    %v4602 = vpop.f32.mrb[0].mxu0
    %v4603 = vadd.f32 0.0, %v4602
    %v4604 = vpop.f32.mrb[0].mxu0
    %4605 = vdwg.mxu0
    %v4606 = vadd.f32 %v4449, %v4603
    %4607 = vmatprep.subr.mxu0 0.0
    %4608 = vmatpush1.msra.mxu0 %v4371
    %4609 = vmatprep.subr.mxu0 0.0
    %4610 = vmatpush1.msra.mxu0 %v4372
    %4611 = vmatprep.subr.mxu0 0.0
    %4612 = vmatpush1.msra.mxu0 %v4373
    %4613 = vmatprep.subr.mxu0 0.0
    %4614 = vmatpush1.msra.mxu0 %v4374
    %4615 = vmatprep.subr.mxu0 0.0
    %4616 = vmatpush1.msra.mxu0 0.0
    %4617 = vmatprep.subr.mxu0 0.0
    %4618 = vmatpush1.msra.mxu0 0.0
    %4619 = vmatprep.subr.mxu0 0.0
    %4620 = vmatpush1.msra.mxu0 0.0
    %4621 = vmatprep.subr.mxu0 0.0
    %4622 = vmatpush1.msra.mxu0 0.0
    %4623 = vmatprep.subr.mxu0 0.0
    %4624 = vmatpush1.msra.mxu0 0.0
    %4625 = vmatprep.subr.mxu0 0.0
    %4626 = vmatpush1.msra.mxu0 0.0
    %4627 = vmatprep.subr.mxu0 0.0
    %4628 = vmatpush1.msra.mxu0 0.0
    %4629 = vmatprep.subr.mxu0 0.0
    %4630 = vmatpush1.msra.mxu0 0.0
    %4631 = vmatprep.subr.mxu0 0.0
    %4632 = vmatpush1.msra.mxu0 0.0
    %4633 = vmatprep.subr.mxu0 0.0
    %4634 = vmatpush1.msra.mxu0 0.0
    %4635 = vmatprep.subr.mxu0 0.0
    %4636 = vmatpush1.msra.mxu0 0.0
    %4637 = vmatprep.subr.mxu0 0.0
    %4638 = vmatpush1.msra.mxu0 0.0
    %4639 = vmatprep.subr.mxu0 0.0
    %4640 = vmatpush1.msra.mxu0 0.0
    %4641 = vmatprep.subr.mxu0 0.0
    %4642 = vmatpush1.msra.mxu0 0.0
    %4643 = vmatprep.subr.mxu0 0.0
    %4644 = vmatpush1.msra.mxu0 0.0
    %4645 = vmatprep.subr.mxu0 0.0
    %4646 = vmatpush1.msra.mxu0 0.0
    %4647 = vmatprep.subr.mxu0 0.0
    %4648 = vmatpush1.msra.mxu0 0.0
    %4649 = vmatprep.subr.mxu0 0.0
    %4650 = vmatpush1.msra.mxu0 0.0
    %4651 = vmatprep.subr.mxu0 0.0
    %4652 = vmatpush1.msra.mxu0 0.0
    %4653 = vmatprep.subr.mxu0 0.0
    %4654 = vmatpush1.msra.mxu0 0.0
    %4655 = vmatprep.subr.mxu0 0.0
    %4656 = vmatpush1.msra.mxu0 0.0
    %4657 = vmatprep.subr.mxu0 0.0
    %4658 = vmatpush1.msra.mxu0 0.0
    %4659 = vmatprep.subr.mxu0 0.0
    %4660 = vmatpush1.msra.mxu0 0.0
    %4661 = vmatprep.subr.mxu0 0.0
    %4662 = vmatpush1.msra.mxu0 0.0
    %4663 = vmatprep.subr.mxu0 0.0
    %4664 = vmatpush1.msra.mxu0 0.0
    %4665 = vmatprep.subr.mxu0 0.0
    %4666 = vmatpush1.msra.mxu0 0.0
    %4667 = vmatprep.subr.mxu0 0.0
    %4668 = vmatpush1.msra.mxu0 0.0
    %4669 = vmatprep.subr.mxu0 0.0
    %4670 = vmatpush1.msra.mxu0 0.0
    %4671 = vmatprep.mubr.f32.mxu0 0.0
    %4672 = vmatmul.mubr.f32.gmra.mrb[0].mxu0 %v4288
    %v4673 = vpop.f32.mrb[0].mxu0
    %v4674 = vadd.f32 0.0, %v4673
    %v4675 = vpop.f32.mrb[0].mxu0
    %4676 = vdwg.mxu0
    %v4677 = vadd.f32 %v4606, %v4674
    %v4678 = vxor.u32 %v4677, 2147483648
    %v4679 = vmul.f32 %v4678, 1.442695
    %v4680 = vpow.pop %v4679
    %v4681 = vadd.f32 %v4680, 1.0
    %v4682 = vrcp.pop %v4681
    %v4683 = vmul.f32 1.0, %v4682
    %s4684 = scalar_lea.vmem %s9, 4
    %4685 = vst.msk [vmem:[%s4684] sm:$0xf] %vm4534, %v4683
    %4686 = vmatprep.subr.mxu0 0.0
    %4687 = vmatpush1.msra.mxu0 %v4367
    %4688 = vmatprep.subr.mxu0 0.0
    %4689 = vmatpush1.msra.mxu0 %v4368
    %4690 = vmatprep.subr.mxu0 0.0
    %4691 = vmatpush1.msra.mxu0 %v4369
    %4692 = vmatprep.subr.mxu0 0.0
    %4693 = vmatpush1.msra.mxu0 %v4370
    %4694 = vmatprep.subr.mxu0 0.0
    %4695 = vmatpush1.msra.mxu0 0.0
    %4696 = vmatprep.subr.mxu0 0.0
    %4697 = vmatpush1.msra.mxu0 0.0
    %4698 = vmatprep.subr.mxu0 0.0
    %4699 = vmatpush1.msra.mxu0 0.0
    %4700 = vmatprep.subr.mxu0 0.0
    %4701 = vmatpush1.msra.mxu0 0.0
    %4702 = vmatprep.subr.mxu0 0.0
    %4703 = vmatpush1.msra.mxu0 0.0
    %4704 = vmatprep.subr.mxu0 0.0
    %4705 = vmatpush1.msra.mxu0 0.0
    %4706 = vmatprep.subr.mxu0 0.0
    %4707 = vmatpush1.msra.mxu0 0.0
    %4708 = vmatprep.subr.mxu0 0.0
    %4709 = vmatpush1.msra.mxu0 0.0
    %4710 = vmatprep.subr.mxu0 0.0
    %4711 = vmatpush1.msra.mxu0 0.0
    %4712 = vmatprep.subr.mxu0 0.0
    %4713 = vmatpush1.msra.mxu0 0.0
    %4714 = vmatprep.subr.mxu0 0.0
    %4715 = vmatpush1.msra.mxu0 0.0
    %4716 = vmatprep.subr.mxu0 0.0
    %4717 = vmatpush1.msra.mxu0 0.0
    %4718 = vmatprep.subr.mxu0 0.0
    %4719 = vmatpush1.msra.mxu0 0.0
    %4720 = vmatprep.subr.mxu0 0.0
    %4721 = vmatpush1.msra.mxu0 0.0
    %4722 = vmatprep.subr.mxu0 0.0
    %4723 = vmatpush1.msra.mxu0 0.0
    %4724 = vmatprep.subr.mxu0 0.0
    %4725 = vmatpush1.msra.mxu0 0.0
    %4726 = vmatprep.subr.mxu0 0.0
    %4727 = vmatpush1.msra.mxu0 0.0
    %4728 = vmatprep.subr.mxu0 0.0
    %4729 = vmatpush1.msra.mxu0 0.0
    %4730 = vmatprep.subr.mxu0 0.0
    %4731 = vmatpush1.msra.mxu0 0.0
    %4732 = vmatprep.subr.mxu0 0.0
    %4733 = vmatpush1.msra.mxu0 0.0
    %4734 = vmatprep.subr.mxu0 0.0
    %4735 = vmatpush1.msra.mxu0 0.0
    %4736 = vmatprep.subr.mxu0 0.0
    %4737 = vmatpush1.msra.mxu0 0.0
    %4738 = vmatprep.subr.mxu0 0.0
    %4739 = vmatpush1.msra.mxu0 0.0
    %4740 = vmatprep.subr.mxu0 0.0
    %4741 = vmatpush1.msra.mxu0 0.0
    %4742 = vmatprep.subr.mxu0 0.0
    %4743 = vmatpush1.msra.mxu0 0.0
    %4744 = vmatprep.subr.mxu0 0.0
    %4745 = vmatpush1.msra.mxu0 0.0
    %4746 = vmatprep.subr.mxu0 0.0
    %4747 = vmatpush1.msra.mxu0 0.0
    %4748 = vmatprep.subr.mxu0 0.0
    %4749 = vmatpush1.msra.mxu0 0.0
    %4750 = vmatprep.mubr.f32.mxu0 0.0
    %4751 = vmatmul.mubr.f32.gmra.mrb[0].mxu0 %v3344
    %v4752 = vpop.f32.mrb[0].mxu0
    %v4753 = vadd.f32 0.0, %v4752
    %v4754 = vpop.f32.mrb[0].mxu0
    %4755 = vdwg.mxu0
    %v4756 = vadd.f32 %v4449, %v4753
    %4757 = vmatprep.subr.mxu0 0.0
    %4758 = vmatpush1.msra.mxu0 %v4371
    %4759 = vmatprep.subr.mxu0 0.0
    %4760 = vmatpush1.msra.mxu0 %v4372
    %4761 = vmatprep.subr.mxu0 0.0
    %4762 = vmatpush1.msra.mxu0 %v4373
    %4763 = vmatprep.subr.mxu0 0.0
    %4764 = vmatpush1.msra.mxu0 %v4374
    %4765 = vmatprep.subr.mxu0 0.0
    %4766 = vmatpush1.msra.mxu0 0.0
    %4767 = vmatprep.subr.mxu0 0.0
    %4768 = vmatpush1.msra.mxu0 0.0
    %4769 = vmatprep.subr.mxu0 0.0
    %4770 = vmatpush1.msra.mxu0 0.0
    %4771 = vmatprep.subr.mxu0 0.0
    %4772 = vmatpush1.msra.mxu0 0.0
    %4773 = vmatprep.subr.mxu0 0.0
    %4774 = vmatpush1.msra.mxu0 0.0
    %4775 = vmatprep.subr.mxu0 0.0
    %4776 = vmatpush1.msra.mxu0 0.0
    %4777 = vmatprep.subr.mxu0 0.0
    %4778 = vmatpush1.msra.mxu0 0.0
    %4779 = vmatprep.subr.mxu0 0.0
    %4780 = vmatpush1.msra.mxu0 0.0
    %4781 = vmatprep.subr.mxu0 0.0
    %4782 = vmatpush1.msra.mxu0 0.0
    %4783 = vmatprep.subr.mxu0 0.0
    %4784 = vmatpush1.msra.mxu0 0.0
    %4785 = vmatprep.subr.mxu0 0.0
    %4786 = vmatpush1.msra.mxu0 0.0
    %4787 = vmatprep.subr.mxu0 0.0
    %4788 = vmatpush1.msra.mxu0 0.0
    %4789 = vmatprep.subr.mxu0 0.0
    %4790 = vmatpush1.msra.mxu0 0.0
    %4791 = vmatprep.subr.mxu0 0.0
    %4792 = vmatpush1.msra.mxu0 0.0
    %4793 = vmatprep.subr.mxu0 0.0
    %4794 = vmatpush1.msra.mxu0 0.0
    %4795 = vmatprep.subr.mxu0 0.0
    %4796 = vmatpush1.msra.mxu0 0.0
    %4797 = vmatprep.subr.mxu0 0.0
    %4798 = vmatpush1.msra.mxu0 0.0
    %4799 = vmatprep.subr.mxu0 0.0
    %4800 = vmatpush1.msra.mxu0 0.0
    %4801 = vmatprep.subr.mxu0 0.0
    %4802 = vmatpush1.msra.mxu0 0.0
    %4803 = vmatprep.subr.mxu0 0.0
    %4804 = vmatpush1.msra.mxu0 0.0
    %4805 = vmatprep.subr.mxu0 0.0
    %4806 = vmatpush1.msra.mxu0 0.0
    %4807 = vmatprep.subr.mxu0 0.0
    %4808 = vmatpush1.msra.mxu0 0.0
    %4809 = vmatprep.subr.mxu0 0.0
    %4810 = vmatpush1.msra.mxu0 0.0
    %4811 = vmatprep.subr.mxu0 0.0
    %4812 = vmatpush1.msra.mxu0 0.0
    %4813 = vmatprep.subr.mxu0 0.0
    %4814 = vmatpush1.msra.mxu0 0.0
    %4815 = vmatprep.subr.mxu0 0.0
    %4816 = vmatpush1.msra.mxu0 0.0
    %4817 = vmatprep.subr.mxu0 0.0
    %4818 = vmatpush1.msra.mxu0 0.0
    %4819 = vmatprep.subr.mxu0 0.0
    %4820 = vmatpush1.msra.mxu0 0.0
    %4821 = vmatprep.mubr.f32.mxu0 0.0
    %4822 = vmatmul.mubr.f32.gmra.mrb[0].mxu0 %v4207
    %v4823 = vpop.f32.mrb[0].mxu0
    %v4824 = vadd.f32 0.0, %v4823
    %v4825 = vpop.f32.mrb[0].mxu0
    %4826 = vdwg.mxu0
    %v4827 = vadd.f32 %v4756, %v4824
    %v4828 = vxor.u32 %v4827, 2147483648
    %v4829 = vmul.f32 %v4828, 1.442695
    %v4830 = vpow.pop %v4829
    %v4831 = vadd.f32 %v4830, 1.0
    %v4832 = vrcp.pop %v4831
    %v4833 = vmul.f32 1.0, %v4832
    %s4834 = scalar_lea.vmem %s9, 8
    %4835 = vst.msk [vmem:[%s4834] sm:$0xf] %vm4534, %v4833
    %4836 = vmatprep.subr.mxu0 0.0
    %4837 = vmatpush1.msra.mxu0 %v4367
    %4838 = vmatprep.subr.mxu0 0.0
    %4839 = vmatpush1.msra.mxu0 %v4368
    %4840 = vmatprep.subr.mxu0 0.0
    %4841 = vmatpush1.msra.mxu0 %v4369
    %4842 = vmatprep.subr.mxu0 0.0
    %4843 = vmatpush1.msra.mxu0 %v4370
    %4844 = vmatprep.subr.mxu0 0.0
    %4845 = vmatpush1.msra.mxu0 0.0
    %4846 = vmatprep.subr.mxu0 0.0
    %4847 = vmatpush1.msra.mxu0 0.0
    %4848 = vmatprep.subr.mxu0 0.0
    %4849 = vmatpush1.msra.mxu0 0.0
    %4850 = vmatprep.subr.mxu0 0.0
    %4851 = vmatpush1.msra.mxu0 0.0
    %4852 = vmatprep.subr.mxu0 0.0
    %4853 = vmatpush1.msra.mxu0 0.0
    %4854 = vmatprep.subr.mxu0 0.0
    %4855 = vmatpush1.msra.mxu0 0.0
    %4856 = vmatprep.subr.mxu0 0.0
    %4857 = vmatpush1.msra.mxu0 0.0
    %4858 = vmatprep.subr.mxu0 0.0
    %4859 = vmatpush1.msra.mxu0 0.0
    %4860 = vmatprep.subr.mxu0 0.0
    %4861 = vmatpush1.msra.mxu0 0.0
    %4862 = vmatprep.subr.mxu0 0.0
    %4863 = vmatpush1.msra.mxu0 0.0
    %4864 = vmatprep.subr.mxu0 0.0
    %4865 = vmatpush1.msra.mxu0 0.0
    %4866 = vmatprep.subr.mxu0 0.0
    %4867 = vmatpush1.msra.mxu0 0.0
    %4868 = vmatprep.subr.mxu0 0.0
    %4869 = vmatpush1.msra.mxu0 0.0
    %4870 = vmatprep.subr.mxu0 0.0
    %4871 = vmatpush1.msra.mxu0 0.0
    %4872 = vmatprep.subr.mxu0 0.0
    %4873 = vmatpush1.msra.mxu0 0.0
    %4874 = vmatprep.subr.mxu0 0.0
    %4875 = vmatpush1.msra.mxu0 0.0
    %4876 = vmatprep.subr.mxu0 0.0
    %4877 = vmatpush1.msra.mxu0 0.0
    %4878 = vmatprep.subr.mxu0 0.0
    %4879 = vmatpush1.msra.mxu0 0.0
    %4880 = vmatprep.subr.mxu0 0.0
    %4881 = vmatpush1.msra.mxu0 0.0
    %4882 = vmatprep.subr.mxu0 0.0
    %4883 = vmatpush1.msra.mxu0 0.0
    %4884 = vmatprep.subr.mxu0 0.0
    %4885 = vmatpush1.msra.mxu0 0.0
    %4886 = vmatprep.subr.mxu0 0.0
    %4887 = vmatpush1.msra.mxu0 0.0
    %4888 = vmatprep.subr.mxu0 0.0
    %4889 = vmatpush1.msra.mxu0 0.0
    %4890 = vmatprep.subr.mxu0 0.0
    %4891 = vmatpush1.msra.mxu0 0.0
    %4892 = vmatprep.subr.mxu0 0.0
    %4893 = vmatpush1.msra.mxu0 0.0
    %4894 = vmatprep.subr.mxu0 0.0
    %4895 = vmatpush1.msra.mxu0 0.0
    %4896 = vmatprep.subr.mxu0 0.0
    %4897 = vmatpush1.msra.mxu0 0.0
    %4898 = vmatprep.subr.mxu0 0.0
    %4899 = vmatpush1.msra.mxu0 0.0
    %4900 = vmatprep.mubr.f32.mxu0 0.0
    %4901 = vmatmul.mubr.f32.gmra.mrb[0].mxu0 %v3419
    %v4902 = vpop.f32.mrb[0].mxu0
    %v4903 = vadd.f32 0.0, %v4902
    %v4904 = vpop.f32.mrb[0].mxu0
    %4905 = vdwg.mxu0
    %v4906 = vadd.f32 %v4449, %v4903
    %4907 = vmatprep.subr.mxu0 0.0
    %4908 = vmatpush1.msra.mxu0 %v4371
    %4909 = vmatprep.subr.mxu0 0.0
    %4910 = vmatpush1.msra.mxu0 %v4372
    %4911 = vmatprep.subr.mxu0 0.0
    %4912 = vmatpush1.msra.mxu0 %v4373
    %4913 = vmatprep.subr.mxu0 0.0
    %4914 = vmatpush1.msra.mxu0 %v4374
    %4915 = vmatprep.subr.mxu0 0.0
    %4916 = vmatpush1.msra.mxu0 0.0
    %4917 = vmatprep.subr.mxu0 0.0
    %4918 = vmatpush1.msra.mxu0 0.0
    %4919 = vmatprep.subr.mxu0 0.0
    %4920 = vmatpush1.msra.mxu0 0.0
    %4921 = vmatprep.subr.mxu0 0.0
    %4922 = vmatpush1.msra.mxu0 0.0
    %4923 = vmatprep.subr.mxu0 0.0
    %4924 = vmatpush1.msra.mxu0 0.0
    %4925 = vmatprep.subr.mxu0 0.0
    %4926 = vmatpush1.msra.mxu0 0.0
    %4927 = vmatprep.subr.mxu0 0.0
    %4928 = vmatpush1.msra.mxu0 0.0
    %4929 = vmatprep.subr.mxu0 0.0
    %4930 = vmatpush1.msra.mxu0 0.0
    %4931 = vmatprep.subr.mxu0 0.0
    %4932 = vmatpush1.msra.mxu0 0.0
    %4933 = vmatprep.subr.mxu0 0.0
    %4934 = vmatpush1.msra.mxu0 0.0
    %4935 = vmatprep.subr.mxu0 0.0
    %4936 = vmatpush1.msra.mxu0 0.0
    %4937 = vmatprep.subr.mxu0 0.0
    %4938 = vmatpush1.msra.mxu0 0.0
    %4939 = vmatprep.subr.mxu0 0.0
    %4940 = vmatpush1.msra.mxu0 0.0
    %4941 = vmatprep.subr.mxu0 0.0
    %4942 = vmatpush1.msra.mxu0 0.0
    %4943 = vmatprep.subr.mxu0 0.0
    %4944 = vmatpush1.msra.mxu0 0.0
    %4945 = vmatprep.subr.mxu0 0.0
    %4946 = vmatpush1.msra.mxu0 0.0
    %4947 = vmatprep.subr.mxu0 0.0
    %4948 = vmatpush1.msra.mxu0 0.0
    %4949 = vmatprep.subr.mxu0 0.0
    %4950 = vmatpush1.msra.mxu0 0.0
    %4951 = vmatprep.subr.mxu0 0.0
    %4952 = vmatpush1.msra.mxu0 0.0
    %4953 = vmatprep.subr.mxu0 0.0
    %4954 = vmatpush1.msra.mxu0 0.0
    %4955 = vmatprep.subr.mxu0 0.0
    %4956 = vmatpush1.msra.mxu0 0.0
    %4957 = vmatprep.subr.mxu0 0.0
    %4958 = vmatpush1.msra.mxu0 0.0
    %4959 = vmatprep.subr.mxu0 0.0
    %4960 = vmatpush1.msra.mxu0 0.0
    %4961 = vmatprep.subr.mxu0 0.0
    %4962 = vmatpush1.msra.mxu0 0.0
    %4963 = vmatprep.subr.mxu0 0.0
    %4964 = vmatpush1.msra.mxu0 0.0
    %4965 = vmatprep.subr.mxu0 0.0
    %4966 = vmatpush1.msra.mxu0 0.0
    %4967 = vmatprep.subr.mxu0 0.0
    %4968 = vmatpush1.msra.mxu0 0.0
    %4969 = vmatprep.subr.mxu0 0.0
    %4970 = vmatpush1.msra.mxu0 0.0
    %4971 = vmatprep.mubr.f32.mxu0 0.0
    %4972 = vmatmul.mubr.f32.gmra.mrb[0].mxu0 %v4126
    %v4973 = vpop.f32.mrb[0].mxu0
    %v4974 = vadd.f32 0.0, %v4973
    %v4975 = vpop.f32.mrb[0].mxu0
    %4976 = vdwg.mxu0
    %v4977 = vadd.f32 %v4906, %v4974
    %v4978 = vxor.u32 %v4977, 2147483648
    %v4979 = vmul.f32 %v4978, 1.442695
    %v4980 = vpow.pop %v4979
    %v4981 = vadd.f32 %v4980, 1.0
    %v4982 = vrcp.pop %v4981
    %v4983 = vmul.f32 1.0, %v4982
    %s4984 = scalar_lea.vmem %s9, 12
    %4985 = vst.msk [vmem:[%s4984] sm:$0xf] %vm4534, %v4983
    %4986 = vmatprep.subr.mxu0 0.0
    %4987 = vmatpush1.msra.mxu0 %v4367
    %4988 = vmatprep.subr.mxu0 0.0
    %4989 = vmatpush1.msra.mxu0 %v4368
    %4990 = vmatprep.subr.mxu0 0.0
    %4991 = vmatpush1.msra.mxu0 %v4369
    %4992 = vmatprep.subr.mxu0 0.0
    %4993 = vmatpush1.msra.mxu0 %v4370
    %4994 = vmatprep.subr.mxu0 0.0
    %4995 = vmatpush1.msra.mxu0 0.0
    %4996 = vmatprep.subr.mxu0 0.0
    %4997 = vmatpush1.msra.mxu0 0.0
    %4998 = vmatprep.subr.mxu0 0.0
    %4999 = vmatpush1.msra.mxu0 0.0
    %5000 = vmatprep.subr.mxu0 0.0
    %5001 = vmatpush1.msra.mxu0 0.0
    %5002 = vmatprep.subr.mxu0 0.0
    %5003 = vmatpush1.msra.mxu0 0.0
    %5004 = vmatprep.subr.mxu0 0.0
    %5005 = vmatpush1.msra.mxu0 0.0
    %5006 = vmatprep.subr.mxu0 0.0
    %5007 = vmatpush1.msra.mxu0 0.0
    %5008 = vmatprep.subr.mxu0 0.0
    %5009 = vmatpush1.msra.mxu0 0.0
    %5010 = vmatprep.subr.mxu0 0.0
    %5011 = vmatpush1.msra.mxu0 0.0
    %5012 = vmatprep.subr.mxu0 0.0
    %5013 = vmatpush1.msra.mxu0 0.0
    %5014 = vmatprep.subr.mxu0 0.0
    %5015 = vmatpush1.msra.mxu0 0.0
    %5016 = vmatprep.subr.mxu0 0.0
    %5017 = vmatpush1.msra.mxu0 0.0
    %5018 = vmatprep.subr.mxu0 0.0
    %5019 = vmatpush1.msra.mxu0 0.0
    %5020 = vmatprep.subr.mxu0 0.0
    %5021 = vmatpush1.msra.mxu0 0.0
    %5022 = vmatprep.subr.mxu0 0.0
    %5023 = vmatpush1.msra.mxu0 0.0
    %5024 = vmatprep.subr.mxu0 0.0
    %5025 = vmatpush1.msra.mxu0 0.0
    %5026 = vmatprep.subr.mxu0 0.0
    %5027 = vmatpush1.msra.mxu0 0.0
    %5028 = vmatprep.subr.mxu0 0.0
    %5029 = vmatpush1.msra.mxu0 0.0
    %5030 = vmatprep.subr.mxu0 0.0
    %5031 = vmatpush1.msra.mxu0 0.0
    %5032 = vmatprep.subr.mxu0 0.0
    %5033 = vmatpush1.msra.mxu0 0.0
    %5034 = vmatprep.subr.mxu0 0.0
    %5035 = vmatpush1.msra.mxu0 0.0
    %5036 = vmatprep.subr.mxu0 0.0
    %5037 = vmatpush1.msra.mxu0 0.0
    %5038 = vmatprep.subr.mxu0 0.0
    %5039 = vmatpush1.msra.mxu0 0.0
    %5040 = vmatprep.subr.mxu0 0.0
    %5041 = vmatpush1.msra.mxu0 0.0
    %5042 = vmatprep.subr.mxu0 0.0
    %5043 = vmatpush1.msra.mxu0 0.0
    %5044 = vmatprep.subr.mxu0 0.0
    %5045 = vmatpush1.msra.mxu0 0.0
    %5046 = vmatprep.subr.mxu0 0.0
    %5047 = vmatpush1.msra.mxu0 0.0
    %5048 = vmatprep.subr.mxu0 0.0
    %5049 = vmatpush1.msra.mxu0 0.0
    %5050 = vmatprep.mubr.f32.mxu0 0.0
    %5051 = vmatmul.mubr.f32.gmra.mrb[0].mxu0 %v3494
    %v5052 = vpop.f32.mrb[0].mxu0
    %v5053 = vadd.f32 0.0, %v5052
    %v5054 = vpop.f32.mrb[0].mxu0
    %5055 = vdwg.mxu0
    %v5056 = vadd.f32 %v4449, %v5053
    %5057 = vmatprep.subr.mxu0 0.0
    %5058 = vmatpush1.msra.mxu0 %v4371
    %5059 = vmatprep.subr.mxu0 0.0
    %5060 = vmatpush1.msra.mxu0 %v4372
    %5061 = vmatprep.subr.mxu0 0.0
    %5062 = vmatpush1.msra.mxu0 %v4373
    %5063 = vmatprep.subr.mxu0 0.0
    %5064 = vmatpush1.msra.mxu0 %v4374
    %5065 = vmatprep.subr.mxu0 0.0
    %5066 = vmatpush1.msra.mxu0 0.0
    %5067 = vmatprep.subr.mxu0 0.0
    %5068 = vmatpush1.msra.mxu0 0.0
    %5069 = vmatprep.subr.mxu0 0.0
    %5070 = vmatpush1.msra.mxu0 0.0
    %5071 = vmatprep.subr.mxu0 0.0
    %5072 = vmatpush1.msra.mxu0 0.0
    %5073 = vmatprep.subr.mxu0 0.0
    %5074 = vmatpush1.msra.mxu0 0.0
    %5075 = vmatprep.subr.mxu0 0.0
    %5076 = vmatpush1.msra.mxu0 0.0
    %5077 = vmatprep.subr.mxu0 0.0
    %5078 = vmatpush1.msra.mxu0 0.0
    %5079 = vmatprep.subr.mxu0 0.0
    %5080 = vmatpush1.msra.mxu0 0.0
    %5081 = vmatprep.subr.mxu0 0.0
    %5082 = vmatpush1.msra.mxu0 0.0
    %5083 = vmatprep.subr.mxu0 0.0
    %5084 = vmatpush1.msra.mxu0 0.0
    %5085 = vmatprep.subr.mxu0 0.0
    %5086 = vmatpush1.msra.mxu0 0.0
    %5087 = vmatprep.subr.mxu0 0.0
    %5088 = vmatpush1.msra.mxu0 0.0
    %5089 = vmatprep.subr.mxu0 0.0
    %5090 = vmatpush1.msra.mxu0 0.0
    %5091 = vmatprep.subr.mxu0 0.0
    %5092 = vmatpush1.msra.mxu0 0.0
    %5093 = vmatprep.subr.mxu0 0.0
    %5094 = vmatpush1.msra.mxu0 0.0
    %5095 = vmatprep.subr.mxu0 0.0
    %5096 = vmatpush1.msra.mxu0 0.0
    %5097 = vmatprep.subr.mxu0 0.0
    %5098 = vmatpush1.msra.mxu0 0.0
    %5099 = vmatprep.subr.mxu0 0.0
    %5100 = vmatpush1.msra.mxu0 0.0
    %5101 = vmatprep.subr.mxu0 0.0
    %5102 = vmatpush1.msra.mxu0 0.0
    %5103 = vmatprep.subr.mxu0 0.0
    %5104 = vmatpush1.msra.mxu0 0.0
    %5105 = vmatprep.subr.mxu0 0.0
    %5106 = vmatpush1.msra.mxu0 0.0
    %5107 = vmatprep.subr.mxu0 0.0
    %5108 = vmatpush1.msra.mxu0 0.0
    %5109 = vmatprep.subr.mxu0 0.0
    %5110 = vmatpush1.msra.mxu0 0.0
    %5111 = vmatprep.subr.mxu0 0.0
    %5112 = vmatpush1.msra.mxu0 0.0
    %5113 = vmatprep.subr.mxu0 0.0
    %5114 = vmatpush1.msra.mxu0 0.0
    %5115 = vmatprep.subr.mxu0 0.0
    %5116 = vmatpush1.msra.mxu0 0.0
    %5117 = vmatprep.subr.mxu0 0.0
    %5118 = vmatpush1.msra.mxu0 0.0
    %5119 = vmatprep.subr.mxu0 0.0
    %5120 = vmatpush1.msra.mxu0 0.0
    %5121 = vmatprep.mubr.f32.mxu0 0.0
    %5122 = vmatmul.mubr.f32.gmra.mrb[0].mxu0 %v4045
    %v5123 = vpop.f32.mrb[0].mxu0
    %v5124 = vadd.f32 0.0, %v5123
    %v5125 = vpop.f32.mrb[0].mxu0
    %5126 = vdwg.mxu0
    %v5127 = vadd.f32 %v5056, %v5124
    %v5128 = vxor.u32 %v5127, 2147483648
    %v5129 = vmul.f32 %v5128, 1.442695
    %v5130 = vpow.pop %v5129
    %v5131 = vadd.f32 %v5130, 1.0
    %v5132 = vrcp.pop %v5131
    %v5133 = vmul.f32 1.0, %v5132
    %s5134 = scalar_lea.vmem %s9, 16
    %5135 = vst.msk [vmem:[%s5134] sm:$0xf] %vm4534, %v5133
    %5136 = vmatprep.subr.mxu0 0.0
    %5137 = vmatpush1.msra.mxu0 %v4367
    %5138 = vmatprep.subr.mxu0 0.0
    %5139 = vmatpush1.msra.mxu0 %v4368
    %5140 = vmatprep.subr.mxu0 0.0
    %5141 = vmatpush1.msra.mxu0 %v4369
    %5142 = vmatprep.subr.mxu0 0.0
    %5143 = vmatpush1.msra.mxu0 %v4370
    %5144 = vmatprep.subr.mxu0 0.0
    %5145 = vmatpush1.msra.mxu0 0.0
    %5146 = vmatprep.subr.mxu0 0.0
    %5147 = vmatpush1.msra.mxu0 0.0
    %5148 = vmatprep.subr.mxu0 0.0
    %5149 = vmatpush1.msra.mxu0 0.0
    %5150 = vmatprep.subr.mxu0 0.0
    %5151 = vmatpush1.msra.mxu0 0.0
    %5152 = vmatprep.subr.mxu0 0.0
    %5153 = vmatpush1.msra.mxu0 0.0
    %5154 = vmatprep.subr.mxu0 0.0
    %5155 = vmatpush1.msra.mxu0 0.0
    %5156 = vmatprep.subr.mxu0 0.0
    %5157 = vmatpush1.msra.mxu0 0.0
    %5158 = vmatprep.subr.mxu0 0.0
    %5159 = vmatpush1.msra.mxu0 0.0
    %5160 = vmatprep.subr.mxu0 0.0
    %5161 = vmatpush1.msra.mxu0 0.0
    %5162 = vmatprep.subr.mxu0 0.0
    %5163 = vmatpush1.msra.mxu0 0.0
    %5164 = vmatprep.subr.mxu0 0.0
    %5165 = vmatpush1.msra.mxu0 0.0
    %5166 = vmatprep.subr.mxu0 0.0
    %5167 = vmatpush1.msra.mxu0 0.0
    %5168 = vmatprep.subr.mxu0 0.0
    %5169 = vmatpush1.msra.mxu0 0.0
    %5170 = vmatprep.subr.mxu0 0.0
    %5171 = vmatpush1.msra.mxu0 0.0
    %5172 = vmatprep.subr.mxu0 0.0
    %5173 = vmatpush1.msra.mxu0 0.0
    %5174 = vmatprep.subr.mxu0 0.0
    %5175 = vmatpush1.msra.mxu0 0.0
    %5176 = vmatprep.subr.mxu0 0.0
    %5177 = vmatpush1.msra.mxu0 0.0
    %5178 = vmatprep.subr.mxu0 0.0
    %5179 = vmatpush1.msra.mxu0 0.0
    %5180 = vmatprep.subr.mxu0 0.0
    %5181 = vmatpush1.msra.mxu0 0.0
    %5182 = vmatprep.subr.mxu0 0.0
    %5183 = vmatpush1.msra.mxu0 0.0
    %5184 = vmatprep.subr.mxu0 0.0
    %5185 = vmatpush1.msra.mxu0 0.0
    %5186 = vmatprep.subr.mxu0 0.0
    %5187 = vmatpush1.msra.mxu0 0.0
    %5188 = vmatprep.subr.mxu0 0.0
    %5189 = vmatpush1.msra.mxu0 0.0
    %5190 = vmatprep.subr.mxu0 0.0
    %5191 = vmatpush1.msra.mxu0 0.0
    %5192 = vmatprep.subr.mxu0 0.0
    %5193 = vmatpush1.msra.mxu0 0.0
    %5194 = vmatprep.subr.mxu0 0.0
    %5195 = vmatpush1.msra.mxu0 0.0
    %5196 = vmatprep.subr.mxu0 0.0
    %5197 = vmatpush1.msra.mxu0 0.0
    %5198 = vmatprep.subr.mxu0 0.0
    %5199 = vmatpush1.msra.mxu0 0.0
    %5200 = vmatprep.mubr.f32.mxu0 0.0
    %5201 = vmatmul.mubr.f32.gmra.mrb[0].mxu0 %v3569
    %v5202 = vpop.f32.mrb[0].mxu0
    %v5203 = vadd.f32 0.0, %v5202
    %v5204 = vpop.f32.mrb[0].mxu0
    %5205 = vdwg.mxu0
    %v5206 = vadd.f32 %v4449, %v5203
    %5207 = vmatprep.subr.mxu0 0.0
    %5208 = vmatpush1.msra.mxu0 %v4371
    %5209 = vmatprep.subr.mxu0 0.0
    %5210 = vmatpush1.msra.mxu0 %v4372
    %5211 = vmatprep.subr.mxu0 0.0
    %5212 = vmatpush1.msra.mxu0 %v4373
    %5213 = vmatprep.subr.mxu0 0.0
    %5214 = vmatpush1.msra.mxu0 %v4374
    %5215 = vmatprep.subr.mxu0 0.0
    %5216 = vmatpush1.msra.mxu0 0.0
    %5217 = vmatprep.subr.mxu0 0.0
    %5218 = vmatpush1.msra.mxu0 0.0
    %5219 = vmatprep.subr.mxu0 0.0
    %5220 = vmatpush1.msra.mxu0 0.0
    %5221 = vmatprep.subr.mxu0 0.0
    %5222 = vmatpush1.msra.mxu0 0.0
    %5223 = vmatprep.subr.mxu0 0.0
    %5224 = vmatpush1.msra.mxu0 0.0
    %5225 = vmatprep.subr.mxu0 0.0
    %5226 = vmatpush1.msra.mxu0 0.0
    %5227 = vmatprep.subr.mxu0 0.0
    %5228 = vmatpush1.msra.mxu0 0.0
    %5229 = vmatprep.subr.mxu0 0.0
    %5230 = vmatpush1.msra.mxu0 0.0
    %5231 = vmatprep.subr.mxu0 0.0
    %5232 = vmatpush1.msra.mxu0 0.0
    %5233 = vmatprep.subr.mxu0 0.0
    %5234 = vmatpush1.msra.mxu0 0.0
    %5235 = vmatprep.subr.mxu0 0.0
    %5236 = vmatpush1.msra.mxu0 0.0
    %5237 = vmatprep.subr.mxu0 0.0
    %5238 = vmatpush1.msra.mxu0 0.0
    %5239 = vmatprep.subr.mxu0 0.0
    %5240 = vmatpush1.msra.mxu0 0.0
    %5241 = vmatprep.subr.mxu0 0.0
    %5242 = vmatpush1.msra.mxu0 0.0
    %5243 = vmatprep.subr.mxu0 0.0
    %5244 = vmatpush1.msra.mxu0 0.0
    %5245 = vmatprep.subr.mxu0 0.0
    %5246 = vmatpush1.msra.mxu0 0.0
    %5247 = vmatprep.subr.mxu0 0.0
    %5248 = vmatpush1.msra.mxu0 0.0
    %5249 = vmatprep.subr.mxu0 0.0
    %5250 = vmatpush1.msra.mxu0 0.0
    %5251 = vmatprep.subr.mxu0 0.0
    %5252 = vmatpush1.msra.mxu0 0.0
    %5253 = vmatprep.subr.mxu0 0.0
    %5254 = vmatpush1.msra.mxu0 0.0
    %5255 = vmatprep.subr.mxu0 0.0
    %5256 = vmatpush1.msra.mxu0 0.0
    %5257 = vmatprep.subr.mxu0 0.0
    %5258 = vmatpush1.msra.mxu0 0.0
    %5259 = vmatprep.subr.mxu0 0.0
    %5260 = vmatpush1.msra.mxu0 0.0
    %5261 = vmatprep.subr.mxu0 0.0
    %5262 = vmatpush1.msra.mxu0 0.0
    %5263 = vmatprep.subr.mxu0 0.0
    %5264 = vmatpush1.msra.mxu0 0.0
    %5265 = vmatprep.subr.mxu0 0.0
    %5266 = vmatpush1.msra.mxu0 0.0
    %5267 = vmatprep.subr.mxu0 0.0
    %5268 = vmatpush1.msra.mxu0 0.0
    %5269 = vmatprep.subr.mxu0 0.0
    %5270 = vmatpush1.msra.mxu0 0.0
    %5271 = vmatprep.mubr.f32.mxu0 0.0
    %5272 = vmatmul.mubr.f32.gmra.mrb[0].mxu0 %v3964
    %v5273 = vpop.f32.mrb[0].mxu0
    %v5274 = vadd.f32 0.0, %v5273
    %v5275 = vpop.f32.mrb[0].mxu0
    %5276 = vdwg.mxu0
    %v5277 = vadd.f32 %v5206, %v5274
    %v5278 = vxor.u32 %v5277, 2147483648
    %v5279 = vmul.f32 %v5278, 1.442695
    %v5280 = vpow.pop %v5279
    %v5281 = vadd.f32 %v5280, 1.0
    %v5282 = vrcp.pop %v5281
    %v5283 = vmul.f32 1.0, %v5282
    %s5284 = scalar_lea.vmem %s9, 20
    %5285 = vst.msk [vmem:[%s5284] sm:$0xf] %vm4534, %v5283
    %5286 = vmatprep.subr.mxu0 0.0
    %5287 = vmatpush1.msra.mxu0 %v4367
    %5288 = vmatprep.subr.mxu0 0.0
    %5289 = vmatpush1.msra.mxu0 %v4368
    %5290 = vmatprep.subr.mxu0 0.0
    %5291 = vmatpush1.msra.mxu0 %v4369
    %5292 = vmatprep.subr.mxu0 0.0
    %5293 = vmatpush1.msra.mxu0 %v4370
    %5294 = vmatprep.subr.mxu0 0.0
    %5295 = vmatpush1.msra.mxu0 0.0
    %5296 = vmatprep.subr.mxu0 0.0
    %5297 = vmatpush1.msra.mxu0 0.0
    %5298 = vmatprep.subr.mxu0 0.0
    %5299 = vmatpush1.msra.mxu0 0.0
    %5300 = vmatprep.subr.mxu0 0.0
    %5301 = vmatpush1.msra.mxu0 0.0
    %5302 = vmatprep.subr.mxu0 0.0
    %5303 = vmatpush1.msra.mxu0 0.0
    %5304 = vmatprep.subr.mxu0 0.0
    %5305 = vmatpush1.msra.mxu0 0.0
    %5306 = vmatprep.subr.mxu0 0.0
    %5307 = vmatpush1.msra.mxu0 0.0
    %5308 = vmatprep.subr.mxu0 0.0
    %5309 = vmatpush1.msra.mxu0 0.0
    %5310 = vmatprep.subr.mxu0 0.0
    %5311 = vmatpush1.msra.mxu0 0.0
    %5312 = vmatprep.subr.mxu0 0.0
    %5313 = vmatpush1.msra.mxu0 0.0
    %5314 = vmatprep.subr.mxu0 0.0
    %5315 = vmatpush1.msra.mxu0 0.0
    %5316 = vmatprep.subr.mxu0 0.0
    %5317 = vmatpush1.msra.mxu0 0.0
    %5318 = vmatprep.subr.mxu0 0.0
    %5319 = vmatpush1.msra.mxu0 0.0
    %5320 = vmatprep.subr.mxu0 0.0
    %5321 = vmatpush1.msra.mxu0 0.0
    %5322 = vmatprep.subr.mxu0 0.0
    %5323 = vmatpush1.msra.mxu0 0.0
    %5324 = vmatprep.subr.mxu0 0.0
    %5325 = vmatpush1.msra.mxu0 0.0
    %5326 = vmatprep.subr.mxu0 0.0
    %5327 = vmatpush1.msra.mxu0 0.0
    %5328 = vmatprep.subr.mxu0 0.0
    %5329 = vmatpush1.msra.mxu0 0.0
    %5330 = vmatprep.subr.mxu0 0.0
    %5331 = vmatpush1.msra.mxu0 0.0
    %5332 = vmatprep.subr.mxu0 0.0
    %5333 = vmatpush1.msra.mxu0 0.0
    %5334 = vmatprep.subr.mxu0 0.0
    %5335 = vmatpush1.msra.mxu0 0.0
    %5336 = vmatprep.subr.mxu0 0.0
    %5337 = vmatpush1.msra.mxu0 0.0
    %5338 = vmatprep.subr.mxu0 0.0
    %5339 = vmatpush1.msra.mxu0 0.0
    %5340 = vmatprep.subr.mxu0 0.0
    %5341 = vmatpush1.msra.mxu0 0.0
    %5342 = vmatprep.subr.mxu0 0.0
    %5343 = vmatpush1.msra.mxu0 0.0
    %5344 = vmatprep.subr.mxu0 0.0
    %5345 = vmatpush1.msra.mxu0 0.0
    %5346 = vmatprep.subr.mxu0 0.0
    %5347 = vmatpush1.msra.mxu0 0.0
    %5348 = vmatprep.subr.mxu0 0.0
    %5349 = vmatpush1.msra.mxu0 0.0
    %5350 = vmatprep.mubr.f32.mxu0 0.0
    %5351 = vmatmul.mubr.f32.gmra.mrb[0].mxu0 %v3644
    %v5352 = vpop.f32.mrb[0].mxu0
    %v5353 = vadd.f32 0.0, %v5352
    %v5354 = vpop.f32.mrb[0].mxu0
    %5355 = vdwg.mxu0
    %v5356 = vadd.f32 %v4449, %v5353
    %5357 = vmatprep.subr.mxu0 0.0
    %5358 = vmatpush1.msra.mxu0 %v4371
    %5359 = vmatprep.subr.mxu0 0.0
    %5360 = vmatpush1.msra.mxu0 %v4372
    %5361 = vmatprep.subr.mxu0 0.0
    %5362 = vmatpush1.msra.mxu0 %v4373
    %5363 = vmatprep.subr.mxu0 0.0
    %5364 = vmatpush1.msra.mxu0 %v4374
    %5365 = vmatprep.subr.mxu0 0.0
    %5366 = vmatpush1.msra.mxu0 0.0
    %5367 = vmatprep.subr.mxu0 0.0
    %5368 = vmatpush1.msra.mxu0 0.0
    %5369 = vmatprep.subr.mxu0 0.0
    %5370 = vmatpush1.msra.mxu0 0.0
    %5371 = vmatprep.subr.mxu0 0.0
    %5372 = vmatpush1.msra.mxu0 0.0
    %5373 = vmatprep.subr.mxu0 0.0
    %5374 = vmatpush1.msra.mxu0 0.0
    %5375 = vmatprep.subr.mxu0 0.0
    %5376 = vmatpush1.msra.mxu0 0.0
    %5377 = vmatprep.subr.mxu0 0.0
    %5378 = vmatpush1.msra.mxu0 0.0
    %5379 = vmatprep.subr.mxu0 0.0
    %5380 = vmatpush1.msra.mxu0 0.0
    %5381 = vmatprep.subr.mxu0 0.0
    %5382 = vmatpush1.msra.mxu0 0.0
    %5383 = vmatprep.subr.mxu0 0.0
    %5384 = vmatpush1.msra.mxu0 0.0
    %5385 = vmatprep.subr.mxu0 0.0
    %5386 = vmatpush1.msra.mxu0 0.0
    %5387 = vmatprep.subr.mxu0 0.0
    %5388 = vmatpush1.msra.mxu0 0.0
    %5389 = vmatprep.subr.mxu0 0.0
    %5390 = vmatpush1.msra.mxu0 0.0
    %5391 = vmatprep.subr.mxu0 0.0
    %5392 = vmatpush1.msra.mxu0 0.0
    %5393 = vmatprep.subr.mxu0 0.0
    %5394 = vmatpush1.msra.mxu0 0.0
    %5395 = vmatprep.subr.mxu0 0.0
    %5396 = vmatpush1.msra.mxu0 0.0
    %5397 = vmatprep.subr.mxu0 0.0
    %5398 = vmatpush1.msra.mxu0 0.0
    %5399 = vmatprep.subr.mxu0 0.0
    %5400 = vmatpush1.msra.mxu0 0.0
    %5401 = vmatprep.subr.mxu0 0.0
    %5402 = vmatpush1.msra.mxu0 0.0
    %5403 = vmatprep.subr.mxu0 0.0
    %5404 = vmatpush1.msra.mxu0 0.0
    %5405 = vmatprep.subr.mxu0 0.0
    %5406 = vmatpush1.msra.mxu0 0.0
    %5407 = vmatprep.subr.mxu0 0.0
    %5408 = vmatpush1.msra.mxu0 0.0
    %5409 = vmatprep.subr.mxu0 0.0
    %5410 = vmatpush1.msra.mxu0 0.0
    %5411 = vmatprep.subr.mxu0 0.0
    %5412 = vmatpush1.msra.mxu0 0.0
    %5413 = vmatprep.subr.mxu0 0.0
    %5414 = vmatpush1.msra.mxu0 0.0
    %5415 = vmatprep.subr.mxu0 0.0
    %5416 = vmatpush1.msra.mxu0 0.0
    %5417 = vmatprep.subr.mxu0 0.0
    %5418 = vmatpush1.msra.mxu0 0.0
    %5419 = vmatprep.subr.mxu0 0.0
    %5420 = vmatpush1.msra.mxu0 0.0
    %5421 = vmatprep.mubr.f32.mxu0 0.0
    %5422 = vmatmul.mubr.f32.gmra.mrb[0].mxu0 %v3883
    %v5423 = vpop.f32.mrb[0].mxu0
    %v5424 = vadd.f32 0.0, %v5423
    %v5425 = vpop.f32.mrb[0].mxu0
    %5426 = vdwg.mxu0
    %v5427 = vadd.f32 %v5356, %v5424
    %v5428 = vxor.u32 %v5427, 2147483648
    %v5429 = vmul.f32 %v5428, 1.442695
    %v5430 = vpow.pop %v5429
    %v5431 = vadd.f32 %v5430, 1.0
    %v5432 = vrcp.pop %v5431
    %v5433 = vmul.f32 1.0, %v5432
    %s5434 = scalar_lea.vmem %s9, 24
    %5435 = vst.msk [vmem:[%s5434] sm:$0xf] %vm4534, %v5433
    %v5437 = vsel %vm107, %v3717, 0
    %5439 = vmatprep.subr.mxu0 0.0
    %5440 = vmatpush1.msra.mxu0 %v4367
    %5441 = vmatprep.subr.mxu0 0.0
    %5442 = vmatpush1.msra.mxu0 %v4368
    %5443 = vmatprep.subr.mxu0 0.0
    %5444 = vmatpush1.msra.mxu0 %v4369
    %5445 = vmatprep.subr.mxu0 0.0
    %5446 = vmatpush1.msra.mxu0 %v4370
    %5447 = vmatprep.subr.mxu0 0.0
    %5448 = vmatpush1.msra.mxu0 0.0
    %5449 = vmatprep.subr.mxu0 0.0
    %5450 = vmatpush1.msra.mxu0 0.0
    %5451 = vmatprep.subr.mxu0 0.0
    %5452 = vmatpush1.msra.mxu0 0.0
    %5453 = vmatprep.subr.mxu0 0.0
    %5454 = vmatpush1.msra.mxu0 0.0
    %5455 = vmatprep.subr.mxu0 0.0
    %5456 = vmatpush1.msra.mxu0 0.0
    %5457 = vmatprep.subr.mxu0 0.0
    %5458 = vmatpush1.msra.mxu0 0.0
    %5459 = vmatprep.subr.mxu0 0.0
    %5460 = vmatpush1.msra.mxu0 0.0
    %5461 = vmatprep.subr.mxu0 0.0
    %5462 = vmatpush1.msra.mxu0 0.0
    %5463 = vmatprep.subr.mxu0 0.0
    %5464 = vmatpush1.msra.mxu0 0.0
    %5465 = vmatprep.subr.mxu0 0.0
    %5466 = vmatpush1.msra.mxu0 0.0
    %5467 = vmatprep.subr.mxu0 0.0
    %5468 = vmatpush1.msra.mxu0 0.0
    %5469 = vmatprep.subr.mxu0 0.0
    %5470 = vmatpush1.msra.mxu0 0.0
    %5471 = vmatprep.subr.mxu0 0.0
    %5472 = vmatpush1.msra.mxu0 0.0
    %5473 = vmatprep.subr.mxu0 0.0
    %5474 = vmatpush1.msra.mxu0 0.0
    %5475 = vmatprep.subr.mxu0 0.0
    %5476 = vmatpush1.msra.mxu0 0.0
    %5477 = vmatprep.subr.mxu0 0.0
    %5478 = vmatpush1.msra.mxu0 0.0
    %5479 = vmatprep.subr.mxu0 0.0
    %5480 = vmatpush1.msra.mxu0 0.0
    %5481 = vmatprep.subr.mxu0 0.0
    %5482 = vmatpush1.msra.mxu0 0.0
    %5483 = vmatprep.subr.mxu0 0.0
    %5484 = vmatpush1.msra.mxu0 0.0
    %5485 = vmatprep.subr.mxu0 0.0
    %5486 = vmatpush1.msra.mxu0 0.0
    %5487 = vmatprep.subr.mxu0 0.0
    %5488 = vmatpush1.msra.mxu0 0.0
    %5489 = vmatprep.subr.mxu0 0.0
    %5490 = vmatpush1.msra.mxu0 0.0
    %5491 = vmatprep.subr.mxu0 0.0
    %5492 = vmatpush1.msra.mxu0 0.0
    %5493 = vmatprep.subr.mxu0 0.0
    %5494 = vmatpush1.msra.mxu0 0.0
    %5495 = vmatprep.subr.mxu0 0.0
    %5496 = vmatpush1.msra.mxu0 0.0
    %5497 = vmatprep.subr.mxu0 0.0
    %5498 = vmatpush1.msra.mxu0 0.0
    %5499 = vmatprep.subr.mxu0 0.0
    %5500 = vmatpush1.msra.mxu0 0.0
    %5501 = vmatprep.subr.mxu0 0.0
    %5502 = vmatpush1.msra.mxu0 0.0
    %5503 = vmatprep.mubr.f32.mxu0 0.0
    %5504 = vmatmul.mubr.f32.gmra.mrb[0].mxu0 %v5437
    %v5505 = vpop.f32.mrb[0].mxu0
    %v5506 = vadd.f32 0.0, %v5505
    %v5507 = vpop.f32.mrb[0].mxu0
    %5508 = vdwg.mxu0
    %v5509 = vadd.f32 %v4449, %v5506
    %5510 = vmatprep.subr.mxu0 0.0
    %5511 = vmatpush1.msra.mxu0 %v4371
    %5512 = vmatprep.subr.mxu0 0.0
    %5513 = vmatpush1.msra.mxu0 %v4372
    %5514 = vmatprep.subr.mxu0 0.0
    %5515 = vmatpush1.msra.mxu0 %v4373
    %5516 = vmatprep.subr.mxu0 0.0
    %5517 = vmatpush1.msra.mxu0 %v4374
    %5518 = vmatprep.subr.mxu0 0.0
    %5519 = vmatpush1.msra.mxu0 0.0
    %5520 = vmatprep.subr.mxu0 0.0
    %5521 = vmatpush1.msra.mxu0 0.0
    %5522 = vmatprep.subr.mxu0 0.0
    %5523 = vmatpush1.msra.mxu0 0.0
    %5524 = vmatprep.subr.mxu0 0.0
    %5525 = vmatpush1.msra.mxu0 0.0
    %5526 = vmatprep.subr.mxu0 0.0
    %5527 = vmatpush1.msra.mxu0 0.0
    %5528 = vmatprep.subr.mxu0 0.0
    %5529 = vmatpush1.msra.mxu0 0.0
    %5530 = vmatprep.subr.mxu0 0.0
    %5531 = vmatpush1.msra.mxu0 0.0
    %5532 = vmatprep.subr.mxu0 0.0
    %5533 = vmatpush1.msra.mxu0 0.0
    %5534 = vmatprep.subr.mxu0 0.0
    %5535 = vmatpush1.msra.mxu0 0.0
    %5536 = vmatprep.subr.mxu0 0.0
    %5537 = vmatpush1.msra.mxu0 0.0
    %5538 = vmatprep.subr.mxu0 0.0
    %5539 = vmatpush1.msra.mxu0 0.0
    %5540 = vmatprep.subr.mxu0 0.0
    %5541 = vmatpush1.msra.mxu0 0.0
    %5542 = vmatprep.subr.mxu0 0.0
    %5543 = vmatpush1.msra.mxu0 0.0
    %5544 = vmatprep.subr.mxu0 0.0
    %5545 = vmatpush1.msra.mxu0 0.0
    %5546 = vmatprep.subr.mxu0 0.0
    %5547 = vmatpush1.msra.mxu0 0.0
    %5548 = vmatprep.subr.mxu0 0.0
    %5549 = vmatpush1.msra.mxu0 0.0
    %5550 = vmatprep.subr.mxu0 0.0
    %5551 = vmatpush1.msra.mxu0 0.0
    %5552 = vmatprep.subr.mxu0 0.0
    %5553 = vmatpush1.msra.mxu0 0.0
    %5554 = vmatprep.subr.mxu0 0.0
    %5555 = vmatpush1.msra.mxu0 0.0
    %5556 = vmatprep.subr.mxu0 0.0
    %5557 = vmatpush1.msra.mxu0 0.0
    %5558 = vmatprep.subr.mxu0 0.0
    %5559 = vmatpush1.msra.mxu0 0.0
    %5560 = vmatprep.subr.mxu0 0.0
    %5561 = vmatpush1.msra.mxu0 0.0
    %5562 = vmatprep.subr.mxu0 0.0
    %5563 = vmatpush1.msra.mxu0 0.0
    %5564 = vmatprep.subr.mxu0 0.0
    %5565 = vmatpush1.msra.mxu0 0.0
    %5566 = vmatprep.subr.mxu0 0.0
    %5567 = vmatpush1.msra.mxu0 0.0
    %5568 = vmatprep.subr.mxu0 0.0
    %5569 = vmatpush1.msra.mxu0 0.0
    %5570 = vmatprep.subr.mxu0 0.0
    %5571 = vmatpush1.msra.mxu0 0.0
    %5572 = vmatprep.subr.mxu0 0.0
    %5573 = vmatpush1.msra.mxu0 0.0
    %5574 = vmatprep.mubr.f32.mxu0 0.0
    %5575 = vmatmul.mubr.f32.gmra.mrb[0].mxu0 %v3802
    %v5576 = vpop.f32.mrb[0].mxu0
    %v5577 = vadd.f32 0.0, %v5576
    %v5578 = vpop.f32.mrb[0].mxu0
    %5579 = vdwg.mxu0
    %v5580 = vadd.f32 %v5509, %v5577
    %v5581 = vxor.u32 %v5580, 2147483648
    %v5582 = vmul.f32 %v5581, 1.442695
    %v5583 = vpow.pop %v5582
    %v5584 = vadd.f32 %v5583, 1.0
    %v5585 = vrcp.pop %v5584
    %v5586 = vmul.f32 1.0, %v5585
    %s5587 = scalar_lea.vmem %s9, 28
    %5588 = vst.msk [vmem:[%s5587] sm:$0xf] %vm4534, %v5586
    // Predicated region
    $region54: #{tpu_custom_call.1} parent=1 // pred_check
      _
    $region55: #{tpu_custom_call.1} parent=1 // pred_check_branch
      %5590 = sbr.rel (0) target = $region57
    $region56: #{tpu_custom_call.1} parent=1 // pred_region
      _
    $region57: #{tpu_custom_call.1} parent=1 // pred_fallthru
      _
    // Predicated region
    $region58: #{tpu_custom_call.1} parent=1 // pred_check
      _
    $region59: #{tpu_custom_call.1} parent=1 // pred_check_branch
      %5592 = sbr.rel (0) target = $region61
    $region60: #{tpu_custom_call.1} parent=1 // pred_region
      _
    $region61: #{tpu_custom_call.1} parent=1 // pred_fallthru
      _
    %5593 = vsyncpa [#allocation3], 1
    %5594 = vsyncpa [#allocation5], 1
    %5595 = vsyncpa [#allocation8], 1

</llo_original>
